<compile_context>
chip_gen: v7x
topology: tpu7x:2x2x1
jax: 0.10.0
libtpu: 0.0.40
codegen_flags: <defaults>
</compile_context>

<pallas_src>
import jax
import jax.numpy as jnp
from jax.experimental import pallas as pl
from jax.experimental.pallas import tpu as pltpu

# ----------------------------- model hyper-params (small, lane-dense) ----------------
B = 2            # batch
S = 8            # sequence length
H = 128          # hidden size   (768 in roberta-base) -- multiple of 128 lanes
NH = 4           # attention heads
HD = H // NH     # head dim
F = 512          # ffn intermediate size (4*H)         -- multiple of 128 lanes
LAYERS = 2       # encoder layers
VOCAB = 50
MAX_POS = S + 4
OUT = 1          # classifier output size
OUT_PAD = 128    # lane-dense padded classifier output (sliced back to OUT outside)

Q_OFF, K_OFF, V_OFF = 0, H, 2 * H   # column offsets inside the fused [Q | K | V] weight


# ----------------------------------- fused kernel ------------------------------------
def _layer_norm(x, g, b, eps=1e-5):
    mu = x.mean(-1, keepdims=True)
    var = ((x - mu) ** 2).mean(-1, keepdims=True)
    return (x - mu) * jax.lax.rsqrt(var + eps) * g + b


def fused_roberta_kernel(x_ref, bias_ref,
                         emb_g_ref, emb_b_ref,
                         wqkv_ref, bqkv_ref,
                         wo_ref, bo_ref, ln1_g_ref, ln1_b_ref,
                         w1_ref, b1_ref, w2_ref, b2_ref,
                         ln2_g_ref, ln2_b_ref,
                         wp_ref, bp_ref, wc_ref, bc_ref,
                         o_ref, ctx_ref):
    # x_ref: (B*S, H) f32   bias_ref: (B, 1, S) f32   o_ref: (B, OUT_PAD) f32
    # ctx_ref: (B*S, H) f32 VMEM scratch used to re-assemble per-head contexts
    # into a lane-dense activation for the single K=128 output projection.
    x = _layer_norm(x_ref[...], emb_g_ref[...], emb_b_ref[...])          # embedding LN
    attn_bias = bias_ref[...]                                            # (B, 1, S), hoisted

    # Static unroll over layers (LAYERS == 2).  Stacked weights stay resident in VMEM.
    # TODO(synk): at real depth, move LAYERS to a grid axis / fori_loop with streamed
    #             layer weights to bound VMEM and vreg live ranges.
    for l in range(LAYERS):
        xb = x.astype(jnp.bfloat16)
        # Fused lane-dense QKV projection: one (B*S,H) x (H,3H) bf16 MXU call,
        # f32 accumulation.  1/sqrt(HD) is already folded into the Q columns/bias.
        qkv = jnp.dot(xb, wqkv_ref[l],
                      preferred_element_type=jnp.float32) + bqkv_ref[l]   # (B*S, 3H) f32

        # Per-head attention.  Heads are 32-wide lane slices of qkv; reshapes only
        # split the leading (sublane) dim, never the lane dim.
        for n in range(NH):
            q = qkv[:, Q_OFF + n * HD:Q_OFF + (n + 1) * HD].reshape(B, S, HD)
            k = qkv[:, K_OFF + n * HD:K_OFF + (n + 1) * HD].reshape(B, S, HD)
            v = qkv[:, V_OFF + n * HD:V_OFF + (n + 1) * HD].reshape(B, S, HD)
            s = jnp.einsum('bqd,bkd->bqk',
                           q.astype(jnp.bfloat16), k.astype(jnp.bfloat16),
                           preferred_element_type=jnp.float32) + attn_bias  # f32 scores + f32 bias
            s = s - s.max(axis=-1, keepdims=True)
            p = jnp.exp(s)
            p = p * pl.reciprocal(p.sum(axis=-1, keepdims=True), approx=True)
            c = jnp.einsum('bqk,bkd->bqd',
                           p.astype(jnp.bfloat16), v.astype(jnp.bfloat16),
                           preferred_element_type=jnp.float32)              # (B, S, HD)
            ctx_ref[:, n * HD:(n + 1) * HD] = c.reshape(B * S, HD)

        # Output projection: heads contracted inside ONE lane-dense K=128 matmul.
        attn = jnp.dot(ctx_ref[...].astype(jnp.bfloat16), wo_ref[l],
                       preferred_element_type=jnp.float32) + bo_ref[l]
        h1 = _layer_norm(x + attn, ln1_g_ref[l], ln1_b_ref[l])

        ff = jnp.dot(h1.astype(jnp.bfloat16), w1_ref[l],
                     preferred_element_type=jnp.float32) + b1_ref[l]
        # TODO(synk): HF RoBERTa uses exact erf-based GELU; tanh approximation used here.
        ff = jax.nn.gelu(ff, approximate=True)
        ff = jnp.dot(ff.astype(jnp.bfloat16), w2_ref[l],
                     preferred_element_type=jnp.float32) + b2_ref[l]
        x = _layer_norm(h1 + ff, ln2_g_ref[l], ln2_b_ref[l])

    # Pooler: tanh(Linear(CLS)); Dropout(0.5) is identity at eval; classifier Linear(H,1)
    # uses a zero-padded (H, OUT_PAD) weight so the store is lane-dense.
    cls = x.reshape(B, S, H)[:, 0, :]                                     # (B, H)
    pooled = jnp.tanh(jnp.dot(cls.astype(jnp.bfloat16), wp_ref[...],
                              preferred_element_type=jnp.float32) + bp_ref[...])
    o_ref[...] = jnp.dot(pooled.astype(jnp.bfloat16), wc_ref[...],
                         preferred_element_type=jnp.float32) + bc_ref[...]


# ------------------------------- pallas_call wrapper ---------------------------------
def fused_forward_call(x2d, attn_bias, p):
    weights = [p['emb_ln_g'], p['emb_ln_b'],
               p['wqkv'], p['bqkv'],
               p['wo'], p['bo'], p['ln1_g'], p['ln1_b'],
               p['w1'], p['b1'], p['w2'], p['b2'],
               p['ln2_g'], p['ln2_b'],
               p['pooler_w'], p['pooler_b'], p['cls_w'], p['cls_b']]

    flops = LAYERS * (2 * B * S * H * (3 * H)       # fused QKV projection
                      + 4 * B * NH * S * S * HD     # scores + context
                      + 2 * B * S * H * H           # output projection
                      + 4 * B * S * H * F)          # FFN up + down
    flops += 2 * B * H * H + 2 * B * H * OUT_PAD    # pooler + classifier
    transcendentals = LAYERS * (B * NH * S * S + B * S * F) + B * H
    bytes_accessed = (x2d.size * 4 + attn_bias.size * 4 + B * OUT_PAD * 4
                      + sum(int(w.size) * w.dtype.itemsize for w in weights))

    return pl.pallas_call(
        fused_roberta_kernel,
        out_shape=jax.ShapeDtypeStruct((B, OUT_PAD), jnp.float32),
        scratch_shapes=[pltpu.VMEM((B * S, H), jnp.float32)],
        compiler_params=pltpu.CompilerParams(vmem_limit_bytes=32 * 1024 * 1024),
        cost_estimate=pl.CostEstimate(flops=flops,
                                      transcendentals=transcendentals,
                                      bytes_accessed=bytes_accessed),
    )(x2d, attn_bias, *weights)


# ------------------------------------ forward -----------------------------------------
def roberta_forward(params, ids, mask):
    # Embedding gathers + position-id arithmetic are cheap JAX glue; all heavy compute
    # (LN, attention, FFN, pooler, classifier) runs inside the single fused kernel.
    maskf = mask.astype(jnp.float32)
    # RoBERTa position ids: cumsum of mask with padding_idx = 1 (padded tokens -> pos 1).
    pos_ids = (jnp.cumsum(mask, axis=1) * mask + 1).astype(jnp.int32)     # (B, S)
    word = params['word_emb'][ids]                                        # (B, S, H)
    pos = params['pos_emb'][pos_ids]                                      # (B, S, H)
    tok = params['tok_emb'][0]                                            # (H,)
    x = (word + pos + tok[None, None, :]).astype(jnp.float32)
    x2d = x.reshape(B * S, H)                                             # batch folded
    # Additive attention bias precomputed once in f32 (shared by every layer/head).
    attn_bias = ((1.0 - maskf) * -1e9).reshape(B, 1, S)

    out = fused_forward_call(x2d, attn_bias, params)                      # (B, OUT_PAD)
    return out[:, :OUT]                                                   # (B, 1)


# ------------------------------------- params -----------------------------------------
def init_params(key):
    keys = jax.random.split(key, 5 + LAYERS)
    init = lambda k, shape: (0.02 * jax.random.normal(k, shape)).astype(jnp.float32)
    ones = lambda shape: jnp.ones(shape, jnp.float32)
    zeros = lambda shape: jnp.zeros(shape, jnp.float32)
    scale = 1.0 / (float(HD) ** 0.5)

    # Classifier weight zero-padded to a lane-dense (H, OUT_PAD); only column 0 is real.
    cls_w = zeros((H, OUT_PAD)).at[:, :OUT].set(init(keys[4], (H, OUT)))

    params = {
        'word_emb': init(keys[0], (VOCAB, H)),
        'pos_emb':  init(keys[1], (MAX_POS, H)),
        'tok_emb':  init(keys[2], (1, H)),
        'emb_ln_g': ones((1, H)), 'emb_ln_b': zeros((1, H)),
        'pooler_w': init(keys[3], (H, H)).astype(jnp.bfloat16),
        'pooler_b': zeros((1, H)),
        'cls_w': cls_w.astype(jnp.bfloat16), 'cls_b': zeros((1, OUT_PAD)),
    }

    wqkv, bqkv, wo, bo = [], [], [], []
    ln1_g, ln1_b, w1, b1, w2, b2, ln2_g, ln2_b = [], [], [], [], [], [], [], []
    for l in range(LAYERS):
        lk = jax.random.split(keys[5 + l], 6)
        wq_l, wk_l, wv_l = init(lk[0], (H, H)), init(lk[1], (H, H)), init(lk[2], (H, H))
        bq_l, bk_l, bv_l = zeros((1, H)), zeros((1, H)), zeros((1, H))
        # Fused [Q | K | V] weight/bias; attention scale folded into the Q block+bias
        # so the kernel never multiplies scores by 1/sqrt(HD).
        wqkv.append(jnp.concatenate([wq_l * scale, wk_l, wv_l], axis=1))   # (H, 3H)
        bqkv.append(jnp.concatenate([bq_l * scale, bk_l, bv_l], axis=1))   # (1, 3H)
        wo.append(init(lk[3], (H, H)))
        bo.append(zeros((1, H)))
        ln1_g.append(ones((1, H))); ln1_b.append(zeros((1, H)))
        w1.append(init(lk[4], (H, F))); b1.append(zeros((1, F)))
        w2.append(init(lk[5], (F, H))); b2.append(zeros((1, H)))
        ln2_g.append(ones((1, H))); ln2_b.append(zeros((1, H)))

    stack = lambda xs: jnp.stack(xs, axis=0)
    bf16 = lambda a: a.astype(jnp.bfloat16)
    params.update(
        # Matmul weights in bf16 (halves weight DMA); biases / LN params stay f32 and
        # are added to the f32 MXU accumulators inside the kernel.
        wqkv=bf16(stack(wqkv)), bqkv=stack(bqkv),
        wo=bf16(stack(wo)), bo=stack(bo),
        ln1_g=stack(ln1_g), ln1_b=stack(ln1_b),
        w1=bf16(stack(w1)), b1=stack(b1),
        w2=bf16(stack(w2)), b2=stack(b2),
        ln2_g=stack(ln2_g), ln2_b=stack(ln2_b),
    )
    return params


if __name__ == "__main__":
    key = jax.random.PRNGKey(0)
    pkey, ikey = jax.random.split(key)
    params = init_params(pkey)

    ids = jax.random.randint(ikey, (B, S), 0, VOCAB, dtype=jnp.int32)
    mask = jnp.ones((B, S), dtype=jnp.int32)
    mask = mask.at[1, S - 2:].set(0)    # second sequence has 2 padding positions

    forward = jax.jit(roberta_forward)
    out = forward(params, ids, mask)
    out = jax.block_until_ready(out)
    assert out.shape == (B, OUT) and out.dtype == jnp.float32
    print("KERNEL_OK")
</pallas_src>

<mosaic_0001>
module attributes {stable_mosaic.version = 11 : i64} {
  func.func @fused_roberta_kernel(%arg0: memref<16x128xf32, #tpu.memory_space<vmem>>, %arg1: memref<2x1x8xf32, #tpu.memory_space<vmem>>, %arg2: memref<1x128xf32, #tpu.memory_space<vmem>>, %arg3: memref<1x128xf32, #tpu.memory_space<vmem>>, %arg4: memref<2x128x384xbf16, #tpu.memory_space<vmem>>, %arg5: memref<2x1x384xf32, #tpu.memory_space<vmem>>, %arg6: memref<2x128x128xbf16, #tpu.memory_space<vmem>>, %arg7: memref<2x1x128xf32, #tpu.memory_space<vmem>>, %arg8: memref<2x1x128xf32, #tpu.memory_space<vmem>>, %arg9: memref<2x1x128xf32, #tpu.memory_space<vmem>>, %arg10: memref<2x128x512xbf16, #tpu.memory_space<vmem>>, %arg11: memref<2x1x512xf32, #tpu.memory_space<vmem>>, %arg12: memref<2x512x128xbf16, #tpu.memory_space<vmem>>, %arg13: memref<2x1x128xf32, #tpu.memory_space<vmem>>, %arg14: memref<2x1x128xf32, #tpu.memory_space<vmem>>, %arg15: memref<2x1x128xf32, #tpu.memory_space<vmem>>, %arg16: memref<128x128xbf16, #tpu.memory_space<vmem>>, %arg17: memref<1x128xf32, #tpu.memory_space<vmem>>, %arg18: memref<128x128xbf16, #tpu.memory_space<vmem>>, %arg19: memref<1x128xf32, #tpu.memory_space<vmem>>, %arg20: memref<2x128xf32, #tpu.memory_space<vmem>>, %arg21: memref<16x128xf32, #tpu.memory_space<vmem>>) attributes {dimension_semantics = [], scalar_prefetch = 0 : i64, scratch_operands = 1 : i64, tpu.core_type = #tpu.core_type<tc>} {
    %c0 = arith.constant 0 : index
    %c0_0 = arith.constant 0 : index
    %0 = vector.load %arg0[%c0, %c0_0] : memref<16x128xf32, #tpu.memory_space<vmem>>, vector<16x128xf32>
    %c0_1 = arith.constant 0 : index
    %c0_2 = arith.constant 0 : index
    %1 = vector.load %arg2[%c0_1, %c0_2] : memref<1x128xf32, #tpu.memory_space<vmem>>, vector<1x128xf32>
    %c0_3 = arith.constant 0 : index
    %c0_4 = arith.constant 0 : index
    %2 = vector.load %arg3[%c0_3, %c0_4] : memref<1x128xf32, #tpu.memory_space<vmem>>, vector<1x128xf32>
    %cst = arith.constant dense<0.000000e+00> : vector<16xf32>
    %3 = vector.multi_reduction <add>, %0, %cst [1] : vector<16x128xf32> to vector<16xf32>
    %4 = vector.shape_cast %3 : vector<16xf32> to vector<16x1xf32>
    %cst_5 = arith.constant 1.280000e+02 : f32
    %5 = vector.broadcast %cst_5 : f32 to vector<16x1xf32>
    %6 = arith.divf %4, %5 : vector<16x1xf32>
    %7 = vector.broadcast %6 : vector<16x1xf32> to vector<16x128xf32>
    %8 = arith.subf %0, %7 : vector<16x128xf32>
    %9 = arith.mulf %8, %8 : vector<16x128xf32>
    %cst_6 = arith.constant dense<0.000000e+00> : vector<16xf32>
    %10 = vector.multi_reduction <add>, %9, %cst_6 [1] : vector<16x128xf32> to vector<16xf32>
    %11 = vector.shape_cast %10 : vector<16xf32> to vector<16x1xf32>
    %cst_7 = arith.constant 1.280000e+02 : f32
    %12 = vector.broadcast %cst_7 : f32 to vector<16x1xf32>
    %13 = arith.divf %11, %12 : vector<16x1xf32>
    %14 = vector.broadcast %6 : vector<16x1xf32> to vector<16x128xf32>
    %15 = arith.subf %0, %14 : vector<16x128xf32>
    %cst_8 = arith.constant 9.99999974E-6 : f32
    %16 = vector.broadcast %cst_8 : f32 to vector<16x1xf32>
    %17 = arith.addf %13, %16 : vector<16x1xf32>
    %18 = math.rsqrt %17 : vector<16x1xf32>
    %19 = vector.broadcast %18 : vector<16x1xf32> to vector<16x128xf32>
    %20 = arith.mulf %15, %19 : vector<16x128xf32>
    %21 = vector.broadcast %1 : vector<1x128xf32> to vector<16x128xf32>
    %22 = arith.mulf %20, %21 : vector<16x128xf32>
    %23 = vector.broadcast %2 : vector<1x128xf32> to vector<16x128xf32>
    %24 = arith.addf %22, %23 : vector<16x128xf32>
    %c0_9 = arith.constant 0 : index
    %c0_10 = arith.constant 0 : index
    %c0_11 = arith.constant 0 : index
    %25 = vector.load %arg1[%c0_9, %c0_10, %c0_11] : memref<2x1x8xf32, #tpu.memory_space<vmem>>, vector<2x1x8xf32>
    %26 = arith.truncf %24 : vector<16x128xf32> to vector<16x128xbf16>
    %c0_12 = arith.constant 0 : index
    %c0_13 = arith.constant 0 : index
    %c0_14 = arith.constant 0 : index
    %27 = vector.load %arg4[%c0_12, %c0_13, %c0_14] : memref<2x128x384xbf16, #tpu.memory_space<vmem>>, vector<1x128x384xbf16>
    %28 = vector.shape_cast %27 : vector<1x128x384xbf16> to vector<128x384xbf16>
    %cst_15 = arith.constant dense<0.000000e+00> : vector<16x384xf32>
    %29 = tpu.matmul %26, %28, %cst_15 {dimension_numbers = #tpu.dot_dimension_numbers<[1], [0], [0], [1], [0, 0, 1, 1], [], []>} : vector<16x128xbf16>, vector<128x384xbf16>, vector<16x384xf32> -> vector<16x384xf32>
    %c0_16 = arith.constant 0 : index
    %c0_17 = arith.constant 0 : index
    %c0_18 = arith.constant 0 : index
    %30 = vector.load %arg5[%c0_16, %c0_17, %c0_18] : memref<2x1x384xf32, #tpu.memory_space<vmem>>, vector<1x1x384xf32>
    %31 = vector.shape_cast %30 : vector<1x1x384xf32> to vector<1x384xf32>
    %32 = vector.broadcast %31 : vector<1x384xf32> to vector<16x384xf32>
    %33 = arith.addf %29, %32 : vector<16x384xf32>
    %34 = vector.extract_strided_slice %33 {offsets = [0, 0], sizes = [16, 32], strides = [1, 1]} : vector<16x384xf32> to vector<16x32xf32>
    %35 = vector.shape_cast %34 : vector<16x32xf32> to vector<2x8x32xf32>
    %36 = vector.extract_strided_slice %33 {offsets = [0, 128], sizes = [16, 32], strides = [1, 1]} : vector<16x384xf32> to vector<16x32xf32>
    %37 = vector.shape_cast %36 : vector<16x32xf32> to vector<2x8x32xf32>
    %38 = vector.extract_strided_slice %33 {offsets = [0, 256], sizes = [16, 32], strides = [1, 1]} : vector<16x384xf32> to vector<16x32xf32>
    %39 = vector.shape_cast %38 : vector<16x32xf32> to vector<2x8x32xf32>
    %40 = arith.truncf %35 : vector<2x8x32xf32> to vector<2x8x32xbf16>
    %41 = arith.truncf %37 : vector<2x8x32xf32> to vector<2x8x32xbf16>
    "tpu.trace_start"() <{level = 10 : i32, message = "bqd,bkd->bqk"}> : () -> ()
    %cst_19 = arith.constant dense<0.000000e+00> : vector<2x8x8xf32>
    %42 = tpu.matmul %40, %41, %cst_19 {dimension_numbers = #tpu.dot_dimension_numbers<[2], [2], [1], [1], [0, 0, 0, 1, 1, 1], [0], [0]>} : vector<2x8x32xbf16>, vector<2x8x32xbf16>, vector<2x8x8xf32> -> vector<2x8x8xf32>
    "tpu.trace_stop"() : () -> ()
    %43 = vector.broadcast %25 : vector<2x1x8xf32> to vector<2x8x8xf32>
    %44 = arith.addf %42, %43 : vector<2x8x8xf32>
    %cst_20 = arith.constant dense<0xFF800000> : vector<2x8xf32>
    %45 = vector.multi_reduction <maximumf>, %44, %cst_20 [2] : vector<2x8x8xf32> to vector<2x8xf32>
    %46 = vector.shape_cast %45 : vector<2x8xf32> to vector<2x8x1xf32>
    %47 = vector.broadcast %46 : vector<2x8x1xf32> to vector<2x8x8xf32>
    %48 = arith.subf %44, %47 : vector<2x8x8xf32>
    %49 = math.exp %48 : vector<2x8x8xf32>
    %cst_21 = arith.constant dense<0.000000e+00> : vector<2x8xf32>
    %50 = vector.multi_reduction <add>, %49, %cst_21 [2] : vector<2x8x8xf32> to vector<2x8xf32>
    %51 = vector.shape_cast %50 : vector<2x8xf32> to vector<2x8x1xf32>
    %52 = tpu.reciprocal %51 {approx = true} : vector<2x8x1xf32> -> vector<2x8x1xf32>
    %53 = vector.broadcast %52 : vector<2x8x1xf32> to vector<2x8x8xf32>
    %54 = arith.mulf %49, %53 : vector<2x8x8xf32>
    %55 = arith.truncf %54 : vector<2x8x8xf32> to vector<2x8x8xbf16>
    %56 = arith.truncf %39 : vector<2x8x32xf32> to vector<2x8x32xbf16>
    "tpu.trace_start"() <{level = 10 : i32, message = "bqk,bkd->bqd"}> : () -> ()
    %cst_22 = arith.constant dense<0.000000e+00> : vector<2x8x32xf32>
    %57 = tpu.matmul %55, %56, %cst_22 {dimension_numbers = #tpu.dot_dimension_numbers<[2], [1], [1], [2], [0, 0, 0, 1, 1, 2], [0], [0]>} : vector<2x8x8xbf16>, vector<2x8x32xbf16>, vector<2x8x32xf32> -> vector<2x8x32xf32>
    "tpu.trace_stop"() : () -> ()
    %58 = vector.shape_cast %57 : vector<2x8x32xf32> to vector<16x32xf32>
    %c0_23 = arith.constant 0 : index
    %c0_24 = arith.constant 0 : index
    %59 = vector.load %arg21[%c0_23, %c0_24] : memref<16x128xf32, #tpu.memory_space<vmem>>, vector<16x32xf32>
    tpu.vector_store %arg21[%c0_23, %c0_24], %58 {strides = array<i32>} : memref<16x128xf32, #tpu.memory_space<vmem>>, vector<16x32xf32>,
    %60 = vector.extract_strided_slice %33 {offsets = [0, 32], sizes = [16, 32], strides = [1, 1]} : vector<16x384xf32> to vector<16x32xf32>
    %61 = vector.shape_cast %60 : vector<16x32xf32> to vector<2x8x32xf32>
    %62 = vector.extract_strided_slice %33 {offsets = [0, 160], sizes = [16, 32], strides = [1, 1]} : vector<16x384xf32> to vector<16x32xf32>
    %63 = vector.shape_cast %62 : vector<16x32xf32> to vector<2x8x32xf32>
    %64 = vector.extract_strided_slice %33 {offsets = [0, 288], sizes = [16, 32], strides = [1, 1]} : vector<16x384xf32> to vector<16x32xf32>
    %65 = vector.shape_cast %64 : vector<16x32xf32> to vector<2x8x32xf32>
    %66 = arith.truncf %61 : vector<2x8x32xf32> to vector<2x8x32xbf16>
    %67 = arith.truncf %63 : vector<2x8x32xf32> to vector<2x8x32xbf16>
    "tpu.trace_start"() <{level = 10 : i32, message = "bqd,bkd->bqk"}> : () -> ()
    %cst_25 = arith.constant dense<0.000000e+00> : vector<2x8x8xf32>
    %68 = tpu.matmul %66, %67, %cst_25 {dimension_numbers = #tpu.dot_dimension_numbers<[2], [2], [1], [1], [0, 0, 0, 1, 1, 1], [0], [0]>} : vector<2x8x32xbf16>, vector<2x8x32xbf16>, vector<2x8x8xf32> -> vector<2x8x8xf32>
    "tpu.trace_stop"() : () -> ()
    %69 = vector.broadcast %25 : vector<2x1x8xf32> to vector<2x8x8xf32>
    %70 = arith.addf %68, %69 : vector<2x8x8xf32>
    %cst_26 = arith.constant dense<0xFF800000> : vector<2x8xf32>
    %71 = vector.multi_reduction <maximumf>, %70, %cst_26 [2] : vector<2x8x8xf32> to vector<2x8xf32>
    %72 = vector.shape_cast %71 : vector<2x8xf32> to vector<2x8x1xf32>
    %73 = vector.broadcast %72 : vector<2x8x1xf32> to vector<2x8x8xf32>
    %74 = arith.subf %70, %73 : vector<2x8x8xf32>
    %75 = math.exp %74 : vector<2x8x8xf32>
    %cst_27 = arith.constant dense<0.000000e+00> : vector<2x8xf32>
    %76 = vector.multi_reduction <add>, %75, %cst_27 [2] : vector<2x8x8xf32> to vector<2x8xf32>
    %77 = vector.shape_cast %76 : vector<2x8xf32> to vector<2x8x1xf32>
    %78 = tpu.reciprocal %77 {approx = true} : vector<2x8x1xf32> -> vector<2x8x1xf32>
    %79 = vector.broadcast %78 : vector<2x8x1xf32> to vector<2x8x8xf32>
    %80 = arith.mulf %75, %79 : vector<2x8x8xf32>
    %81 = arith.truncf %80 : vector<2x8x8xf32> to vector<2x8x8xbf16>
    %82 = arith.truncf %65 : vector<2x8x32xf32> to vector<2x8x32xbf16>
    "tpu.trace_start"() <{level = 10 : i32, message = "bqk,bkd->bqd"}> : () -> ()
    %cst_28 = arith.constant dense<0.000000e+00> : vector<2x8x32xf32>
    %83 = tpu.matmul %81, %82, %cst_28 {dimension_numbers = #tpu.dot_dimension_numbers<[2], [1], [1], [2], [0, 0, 0, 1, 1, 2], [0], [0]>} : vector<2x8x8xbf16>, vector<2x8x32xbf16>, vector<2x8x32xf32> -> vector<2x8x32xf32>
    "tpu.trace_stop"() : () -> ()
    %84 = vector.shape_cast %83 : vector<2x8x32xf32> to vector<16x32xf32>
    %c0_29 = arith.constant 0 : index
    %c32 = arith.constant 32 : index
    %85 = vector.load %arg21[%c0_29, %c32] : memref<16x128xf32, #tpu.memory_space<vmem>>, vector<16x32xf32>
    tpu.vector_store %arg21[%c0_29, %c32], %84 {strides = array<i32>} : memref<16x128xf32, #tpu.memory_space<vmem>>, vector<16x32xf32>,
    %86 = vector.extract_strided_slice %33 {offsets = [0, 64], sizes = [16, 32], strides = [1, 1]} : vector<16x384xf32> to vector<16x32xf32>
    %87 = vector.shape_cast %86 : vector<16x32xf32> to vector<2x8x32xf32>
    %88 = vector.extract_strided_slice %33 {offsets = [0, 192], sizes = [16, 32], strides = [1, 1]} : vector<16x384xf32> to vector<16x32xf32>
    %89 = vector.shape_cast %88 : vector<16x32xf32> to vector<2x8x32xf32>
    %90 = vector.extract_strided_slice %33 {offsets = [0, 320], sizes = [16, 32], strides = [1, 1]} : vector<16x384xf32> to vector<16x32xf32>
    %91 = vector.shape_cast %90 : vector<16x32xf32> to vector<2x8x32xf32>
    %92 = arith.truncf %87 : vector<2x8x32xf32> to vector<2x8x32xbf16>
    %93 = arith.truncf %89 : vector<2x8x32xf32> to vector<2x8x32xbf16>
    "tpu.trace_start"() <{level = 10 : i32, message = "bqd,bkd->bqk"}> : () -> ()
    %cst_30 = arith.constant dense<0.000000e+00> : vector<2x8x8xf32>
    %94 = tpu.matmul %92, %93, %cst_30 {dimension_numbers = #tpu.dot_dimension_numbers<[2], [2], [1], [1], [0, 0, 0, 1, 1, 1], [0], [0]>} : vector<2x8x32xbf16>, vector<2x8x32xbf16>, vector<2x8x8xf32> -> vector<2x8x8xf32>
    "tpu.trace_stop"() : () -> ()
    %95 = vector.broadcast %25 : vector<2x1x8xf32> to vector<2x8x8xf32>
    %96 = arith.addf %94, %95 : vector<2x8x8xf32>
    %cst_31 = arith.constant dense<0xFF800000> : vector<2x8xf32>
    %97 = vector.multi_reduction <maximumf>, %96, %cst_31 [2] : vector<2x8x8xf32> to vector<2x8xf32>
    %98 = vector.shape_cast %97 : vector<2x8xf32> to vector<2x8x1xf32>
    %99 = vector.broadcast %98 : vector<2x8x1xf32> to vector<2x8x8xf32>
    %100 = arith.subf %96, %99 : vector<2x8x8xf32>
    %101 = math.exp %100 : vector<2x8x8xf32>
    %cst_32 = arith.constant dense<0.000000e+00> : vector<2x8xf32>
    %102 = vector.multi_reduction <add>, %101, %cst_32 [2] : vector<2x8x8xf32> to vector<2x8xf32>
    %103 = vector.shape_cast %102 : vector<2x8xf32> to vector<2x8x1xf32>
    %104 = tpu.reciprocal %103 {approx = true} : vector<2x8x1xf32> -> vector<2x8x1xf32>
    %105 = vector.broadcast %104 : vector<2x8x1xf32> to vector<2x8x8xf32>
    %106 = arith.mulf %101, %105 : vector<2x8x8xf32>
    %107 = arith.truncf %106 : vector<2x8x8xf32> to vector<2x8x8xbf16>
    %108 = arith.truncf %91 : vector<2x8x32xf32> to vector<2x8x32xbf16>
    "tpu.trace_start"() <{level = 10 : i32, message = "bqk,bkd->bqd"}> : () -> ()
    %cst_33 = arith.constant dense<0.000000e+00> : vector<2x8x32xf32>
    %109 = tpu.matmul %107, %108, %cst_33 {dimension_numbers = #tpu.dot_dimension_numbers<[2], [1], [1], [2], [0, 0, 0, 1, 1, 2], [0], [0]>} : vector<2x8x8xbf16>, vector<2x8x32xbf16>, vector<2x8x32xf32> -> vector<2x8x32xf32>
    "tpu.trace_stop"() : () -> ()
    %110 = vector.shape_cast %109 : vector<2x8x32xf32> to vector<16x32xf32>
    %c0_34 = arith.constant 0 : index
    %c64 = arith.constant 64 : index
    %111 = vector.load %arg21[%c0_34, %c64] : memref<16x128xf32, #tpu.memory_space<vmem>>, vector<16x32xf32>
    tpu.vector_store %arg21[%c0_34, %c64], %110 {strides = array<i32>} : memref<16x128xf32, #tpu.memory_space<vmem>>, vector<16x32xf32>,
    %112 = vector.extract_strided_slice %33 {offsets = [0, 96], sizes = [16, 32], strides = [1, 1]} : vector<16x384xf32> to vector<16x32xf32>
    %113 = vector.shape_cast %112 : vector<16x32xf32> to vector<2x8x32xf32>
    %114 = vector.extract_strided_slice %33 {offsets = [0, 224], sizes = [16, 32], strides = [1, 1]} : vector<16x384xf32> to vector<16x32xf32>
    %115 = vector.shape_cast %114 : vector<16x32xf32> to vector<2x8x32xf32>
    %116 = vector.extract_strided_slice %33 {offsets = [0, 352], sizes = [16, 32], strides = [1, 1]} : vector<16x384xf32> to vector<16x32xf32>
    %117 = vector.shape_cast %116 : vector<16x32xf32> to vector<2x8x32xf32>
    %118 = arith.truncf %113 : vector<2x8x32xf32> to vector<2x8x32xbf16>
    %119 = arith.truncf %115 : vector<2x8x32xf32> to vector<2x8x32xbf16>
    "tpu.trace_start"() <{level = 10 : i32, message = "bqd,bkd->bqk"}> : () -> ()
    %cst_35 = arith.constant dense<0.000000e+00> : vector<2x8x8xf32>
    %120 = tpu.matmul %118, %119, %cst_35 {dimension_numbers = #tpu.dot_dimension_numbers<[2], [2], [1], [1], [0, 0, 0, 1, 1, 1], [0], [0]>} : vector<2x8x32xbf16>, vector<2x8x32xbf16>, vector<2x8x8xf32> -> vector<2x8x8xf32>
    "tpu.trace_stop"() : () -> ()
    %121 = vector.broadcast %25 : vector<2x1x8xf32> to vector<2x8x8xf32>
    %122 = arith.addf %120, %121 : vector<2x8x8xf32>
    %cst_36 = arith.constant dense<0xFF800000> : vector<2x8xf32>
    %123 = vector.multi_reduction <maximumf>, %122, %cst_36 [2] : vector<2x8x8xf32> to vector<2x8xf32>
    %124 = vector.shape_cast %123 : vector<2x8xf32> to vector<2x8x1xf32>
    %125 = vector.broadcast %124 : vector<2x8x1xf32> to vector<2x8x8xf32>
    %126 = arith.subf %122, %125 : vector<2x8x8xf32>
    %127 = math.exp %126 : vector<2x8x8xf32>
    %cst_37 = arith.constant dense<0.000000e+00> : vector<2x8xf32>
    %128 = vector.multi_reduction <add>, %127, %cst_37 [2] : vector<2x8x8xf32> to vector<2x8xf32>
    %129 = vector.shape_cast %128 : vector<2x8xf32> to vector<2x8x1xf32>
    %130 = tpu.reciprocal %129 {approx = true} : vector<2x8x1xf32> -> vector<2x8x1xf32>
    %131 = vector.broadcast %130 : vector<2x8x1xf32> to vector<2x8x8xf32>
    %132 = arith.mulf %127, %131 : vector<2x8x8xf32>
    %133 = arith.truncf %132 : vector<2x8x8xf32> to vector<2x8x8xbf16>
    %134 = arith.truncf %117 : vector<2x8x32xf32> to vector<2x8x32xbf16>
    "tpu.trace_start"() <{level = 10 : i32, message = "bqk,bkd->bqd"}> : () -> ()
    %cst_38 = arith.constant dense<0.000000e+00> : vector<2x8x32xf32>
    %135 = tpu.matmul %133, %134, %cst_38 {dimension_numbers = #tpu.dot_dimension_numbers<[2], [1], [1], [2], [0, 0, 0, 1, 1, 2], [0], [0]>} : vector<2x8x8xbf16>, vector<2x8x32xbf16>, vector<2x8x32xf32> -> vector<2x8x32xf32>
    "tpu.trace_stop"() : () -> ()
    %136 = vector.shape_cast %135 : vector<2x8x32xf32> to vector<16x32xf32>
    %c0_39 = arith.constant 0 : index
    %c96 = arith.constant 96 : index
    %137 = vector.load %arg21[%c0_39, %c96] : memref<16x128xf32, #tpu.memory_space<vmem>>, vector<16x32xf32>
    tpu.vector_store %arg21[%c0_39, %c96], %136 {strides = array<i32>} : memref<16x128xf32, #tpu.memory_space<vmem>>, vector<16x32xf32>,
    %c0_40 = arith.constant 0 : index
    %c0_41 = arith.constant 0 : index
    %138 = vector.load %arg21[%c0_40, %c0_41] : memref<16x128xf32, #tpu.memory_space<vmem>>, vector<16x128xf32>
    %139 = arith.truncf %138 : vector<16x128xf32> to vector<16x128xbf16>
    %c0_42 = arith.constant 0 : index
    %c0_43 = arith.constant 0 : index
    %c0_44 = arith.constant 0 : index
    %140 = vector.load %arg6[%c0_42, %c0_43, %c0_44] : memref<2x128x128xbf16, #tpu.memory_space<vmem>>, vector<1x128x128xbf16>
    %141 = vector.shape_cast %140 : vector<1x128x128xbf16> to vector<128x128xbf16>
    %cst_45 = arith.constant dense<0.000000e+00> : vector<16x128xf32>
    %142 = tpu.matmul %139, %141, %cst_45 {dimension_numbers = #tpu.dot_dimension_numbers<[1], [0], [0], [1], [0, 0, 1, 1], [], []>} : vector<16x128xbf16>, vector<128x128xbf16>, vector<16x128xf32> -> vector<16x128xf32>
    %c0_46 = arith.constant 0 : index
    %c0_47 = arith.constant 0 : index
    %c0_48 = arith.constant 0 : index
    %143 = vector.load %arg7[%c0_46, %c0_47, %c0_48] : memref<2x1x128xf32, #tpu.memory_space<vmem>>, vector<1x1x128xf32>
    %144 = vector.shape_cast %143 : vector<1x1x128xf32> to vector<1x128xf32>
    %145 = vector.broadcast %144 : vector<1x128xf32> to vector<16x128xf32>
    %146 = arith.addf %142, %145 : vector<16x128xf32>
    %147 = arith.addf %24, %146 : vector<16x128xf32>
    %c0_49 = arith.constant 0 : index
    %c0_50 = arith.constant 0 : index
    %c0_51 = arith.constant 0 : index
    %148 = vector.load %arg8[%c0_49, %c0_50, %c0_51] : memref<2x1x128xf32, #tpu.memory_space<vmem>>, vector<1x1x128xf32>
    %149 = vector.shape_cast %148 : vector<1x1x128xf32> to vector<1x128xf32>
    %c0_52 = arith.constant 0 : index
    %c0_53 = arith.constant 0 : index
    %c0_54 = arith.constant 0 : index
    %150 = vector.load %arg9[%c0_52, %c0_53, %c0_54] : memref<2x1x128xf32, #tpu.memory_space<vmem>>, vector<1x1x128xf32>
    %151 = vector.shape_cast %150 : vector<1x1x128xf32> to vector<1x128xf32>
    %cst_55 = arith.constant dense<0.000000e+00> : vector<16xf32>
    %152 = vector.multi_reduction <add>, %147, %cst_55 [1] : vector<16x128xf32> to vector<16xf32>
    %153 = vector.shape_cast %152 : vector<16xf32> to vector<16x1xf32>
    %cst_56 = arith.constant 1.280000e+02 : f32
    %154 = vector.broadcast %cst_56 : f32 to vector<16x1xf32>
    %155 = arith.divf %153, %154 : vector<16x1xf32>
    %156 = vector.broadcast %155 : vector<16x1xf32> to vector<16x128xf32>
    %157 = arith.subf %147, %156 : vector<16x128xf32>
    %158 = arith.mulf %157, %157 : vector<16x128xf32>
    %cst_57 = arith.constant dense<0.000000e+00> : vector<16xf32>
    %159 = vector.multi_reduction <add>, %158, %cst_57 [1] : vector<16x128xf32> to vector<16xf32>
    %160 = vector.shape_cast %159 : vector<16xf32> to vector<16x1xf32>
    %cst_58 = arith.constant 1.280000e+02 : f32
    %161 = vector.broadcast %cst_58 : f32 to vector<16x1xf32>
    %162 = arith.divf %160, %161 : vector<16x1xf32>
    %163 = vector.broadcast %155 : vector<16x1xf32> to vector<16x128xf32>
    %164 = arith.subf %147, %163 : vector<16x128xf32>
    %cst_59 = arith.constant 9.99999974E-6 : f32
    %165 = vector.broadcast %cst_59 : f32 to vector<16x1xf32>
    %166 = arith.addf %162, %165 : vector<16x1xf32>
    %167 = math.rsqrt %166 : vector<16x1xf32>
    %168 = vector.broadcast %167 : vector<16x1xf32> to vector<16x128xf32>
    %169 = arith.mulf %164, %168 : vector<16x128xf32>
    %170 = vector.broadcast %149 : vector<1x128xf32> to vector<16x128xf32>
    %171 = arith.mulf %169, %170 : vector<16x128xf32>
    %172 = vector.broadcast %151 : vector<1x128xf32> to vector<16x128xf32>
    %173 = arith.addf %171, %172 : vector<16x128xf32>
    %174 = arith.truncf %173 : vector<16x128xf32> to vector<16x128xbf16>
    %c0_60 = arith.constant 0 : index
    %c0_61 = arith.constant 0 : index
    %c0_62 = arith.constant 0 : index
    %175 = vector.load %arg10[%c0_60, %c0_61, %c0_62] : memref<2x128x512xbf16, #tpu.memory_space<vmem>>, vector<1x128x512xbf16>
    %176 = vector.shape_cast %175 : vector<1x128x512xbf16> to vector<128x512xbf16>
    %cst_63 = arith.constant dense<0.000000e+00> : vector<16x512xf32>
    %177 = tpu.matmul %174, %176, %cst_63 {dimension_numbers = #tpu.dot_dimension_numbers<[1], [0], [0], [1], [0, 0, 1, 1], [], []>} : vector<16x128xbf16>, vector<128x512xbf16>, vector<16x512xf32> -> vector<16x512xf32>
    %c0_64 = arith.constant 0 : index
    %c0_65 = arith.constant 0 : index
    %c0_66 = arith.constant 0 : index
    %178 = vector.load %arg11[%c0_64, %c0_65, %c0_66] : memref<2x1x512xf32, #tpu.memory_space<vmem>>, vector<1x1x512xf32>
    %179 = vector.shape_cast %178 : vector<1x1x512xf32> to vector<1x512xf32>
    %180 = vector.broadcast %179 : vector<1x512xf32> to vector<16x512xf32>
    %181 = arith.addf %177, %180 : vector<16x512xf32>
    %182 = arith.mulf %181, %181 : vector<16x512xf32>
    %183 = arith.mulf %181, %182 : vector<16x512xf32>
    %cst_67 = arith.constant 4.471500e-02 : f32
    %184 = vector.broadcast %cst_67 : f32 to vector<16x512xf32>
    %185 = arith.mulf %184, %183 : vector<16x512xf32>
    %186 = arith.addf %181, %185 : vector<16x512xf32>
    %cst_68 = arith.constant 0.797884583 : f32
    %187 = vector.broadcast %cst_68 : f32 to vector<16x512xf32>
    %188 = arith.mulf %187, %186 : vector<16x512xf32>
    %189 = math.tanh %188 : vector<16x512xf32>
    %cst_69 = arith.constant 1.000000e+00 : f32
    %190 = vector.broadcast %cst_69 : f32 to vector<16x512xf32>
    %191 = arith.addf %190, %189 : vector<16x512xf32>
    %cst_70 = arith.constant 5.000000e-01 : f32
    %192 = vector.broadcast %cst_70 : f32 to vector<16x512xf32>
    %193 = arith.mulf %192, %191 : vector<16x512xf32>
    %194 = arith.mulf %181, %193 : vector<16x512xf32>
    %195 = arith.truncf %194 : vector<16x512xf32> to vector<16x512xbf16>
    %c0_71 = arith.constant 0 : index
    %c0_72 = arith.constant 0 : index
    %c0_73 = arith.constant 0 : index
    %196 = vector.load %arg12[%c0_71, %c0_72, %c0_73] : memref<2x512x128xbf16, #tpu.memory_space<vmem>>, vector<1x512x128xbf16>
    %197 = vector.shape_cast %196 : vector<1x512x128xbf16> to vector<512x128xbf16>
    %cst_74 = arith.constant dense<0.000000e+00> : vector<16x128xf32>
    %198 = tpu.matmul %195, %197, %cst_74 {dimension_numbers = #tpu.dot_dimension_numbers<[1], [0], [0], [1], [0, 0, 1, 1], [], []>} : vector<16x512xbf16>, vector<512x128xbf16>, vector<16x128xf32> -> vector<16x128xf32>
    %c0_75 = arith.constant 0 : index
    %c0_76 = arith.constant 0 : index
    %c0_77 = arith.constant 0 : index
    %199 = vector.load %arg13[%c0_75, %c0_76, %c0_77] : memref<2x1x128xf32, #tpu.memory_space<vmem>>, vector<1x1x128xf32>
    %200 = vector.shape_cast %199 : vector<1x1x128xf32> to vector<1x128xf32>
    %201 = vector.broadcast %200 : vector<1x128xf32> to vector<16x128xf32>
    %202 = arith.addf %198, %201 : vector<16x128xf32>
    %203 = arith.addf %173, %202 : vector<16x128xf32>
    %c0_78 = arith.constant 0 : index
    %c0_79 = arith.constant 0 : index
    %c0_80 = arith.constant 0 : index
    %204 = vector.load %arg14[%c0_78, %c0_79, %c0_80] : memref<2x1x128xf32, #tpu.memory_space<vmem>>, vector<1x1x128xf32>
    %205 = vector.shape_cast %204 : vector<1x1x128xf32> to vector<1x128xf32>
    %c0_81 = arith.constant 0 : index
    %c0_82 = arith.constant 0 : index
    %c0_83 = arith.constant 0 : index
    %206 = vector.load %arg15[%c0_81, %c0_82, %c0_83] : memref<2x1x128xf32, #tpu.memory_space<vmem>>, vector<1x1x128xf32>
    %207 = vector.shape_cast %206 : vector<1x1x128xf32> to vector<1x128xf32>
    %cst_84 = arith.constant dense<0.000000e+00> : vector<16xf32>
    %208 = vector.multi_reduction <add>, %203, %cst_84 [1] : vector<16x128xf32> to vector<16xf32>
    %209 = vector.shape_cast %208 : vector<16xf32> to vector<16x1xf32>
    %cst_85 = arith.constant 1.280000e+02 : f32
    %210 = vector.broadcast %cst_85 : f32 to vector<16x1xf32>
    %211 = arith.divf %209, %210 : vector<16x1xf32>
    %212 = vector.broadcast %211 : vector<16x1xf32> to vector<16x128xf32>
    %213 = arith.subf %203, %212 : vector<16x128xf32>
    %214 = arith.mulf %213, %213 : vector<16x128xf32>
    %cst_86 = arith.constant dense<0.000000e+00> : vector<16xf32>
    %215 = vector.multi_reduction <add>, %214, %cst_86 [1] : vector<16x128xf32> to vector<16xf32>
    %216 = vector.shape_cast %215 : vector<16xf32> to vector<16x1xf32>
    %cst_87 = arith.constant 1.280000e+02 : f32
    %217 = vector.broadcast %cst_87 : f32 to vector<16x1xf32>
    %218 = arith.divf %216, %217 : vector<16x1xf32>
    %219 = vector.broadcast %211 : vector<16x1xf32> to vector<16x128xf32>
    %220 = arith.subf %203, %219 : vector<16x128xf32>
    %cst_88 = arith.constant 9.99999974E-6 : f32
    %221 = vector.broadcast %cst_88 : f32 to vector<16x1xf32>
    %222 = arith.addf %218, %221 : vector<16x1xf32>
    %223 = math.rsqrt %222 : vector<16x1xf32>
    %224 = vector.broadcast %223 : vector<16x1xf32> to vector<16x128xf32>
    %225 = arith.mulf %220, %224 : vector<16x128xf32>
    %226 = vector.broadcast %205 : vector<1x128xf32> to vector<16x128xf32>
    %227 = arith.mulf %225, %226 : vector<16x128xf32>
    %228 = vector.broadcast %207 : vector<1x128xf32> to vector<16x128xf32>
    %229 = arith.addf %227, %228 : vector<16x128xf32>
    %230 = arith.truncf %229 : vector<16x128xf32> to vector<16x128xbf16>
    %c1 = arith.constant 1 : index
    %c0_89 = arith.constant 0 : index
    %c0_90 = arith.constant 0 : index
    %231 = vector.load %arg4[%c1, %c0_89, %c0_90] : memref<2x128x384xbf16, #tpu.memory_space<vmem>>, vector<1x128x384xbf16>
    %232 = vector.shape_cast %231 : vector<1x128x384xbf16> to vector<128x384xbf16>
    %cst_91 = arith.constant dense<0.000000e+00> : vector<16x384xf32>
    %233 = tpu.matmul %230, %232, %cst_91 {dimension_numbers = #tpu.dot_dimension_numbers<[1], [0], [0], [1], [0, 0, 1, 1], [], []>} : vector<16x128xbf16>, vector<128x384xbf16>, vector<16x384xf32> -> vector<16x384xf32>
    %c1_92 = arith.constant 1 : index
    %c0_93 = arith.constant 0 : index
    %c0_94 = arith.constant 0 : index
    %234 = vector.load %arg5[%c1_92, %c0_93, %c0_94] : memref<2x1x384xf32, #tpu.memory_space<vmem>>, vector<1x1x384xf32>
    %235 = vector.shape_cast %234 : vector<1x1x384xf32> to vector<1x384xf32>
    %236 = vector.broadcast %235 : vector<1x384xf32> to vector<16x384xf32>
    %237 = arith.addf %233, %236 : vector<16x384xf32>
    %238 = vector.extract_strided_slice %237 {offsets = [0, 0], sizes = [16, 32], strides = [1, 1]} : vector<16x384xf32> to vector<16x32xf32>
    %239 = vector.shape_cast %238 : vector<16x32xf32> to vector<2x8x32xf32>
    %240 = vector.extract_strided_slice %237 {offsets = [0, 128], sizes = [16, 32], strides = [1, 1]} : vector<16x384xf32> to vector<16x32xf32>
    %241 = vector.shape_cast %240 : vector<16x32xf32> to vector<2x8x32xf32>
    %242 = vector.extract_strided_slice %237 {offsets = [0, 256], sizes = [16, 32], strides = [1, 1]} : vector<16x384xf32> to vector<16x32xf32>
    %243 = vector.shape_cast %242 : vector<16x32xf32> to vector<2x8x32xf32>
    %244 = arith.truncf %239 : vector<2x8x32xf32> to vector<2x8x32xbf16>
    %245 = arith.truncf %241 : vector<2x8x32xf32> to vector<2x8x32xbf16>
    "tpu.trace_start"() <{level = 10 : i32, message = "bqd,bkd->bqk"}> : () -> ()
    %cst_95 = arith.constant dense<0.000000e+00> : vector<2x8x8xf32>
    %246 = tpu.matmul %244, %245, %cst_95 {dimension_numbers = #tpu.dot_dimension_numbers<[2], [2], [1], [1], [0, 0, 0, 1, 1, 1], [0], [0]>} : vector<2x8x32xbf16>, vector<2x8x32xbf16>, vector<2x8x8xf32> -> vector<2x8x8xf32>
    "tpu.trace_stop"() : () -> ()
    %247 = vector.broadcast %25 : vector<2x1x8xf32> to vector<2x8x8xf32>
    %248 = arith.addf %246, %247 : vector<2x8x8xf32>
    %cst_96 = arith.constant dense<0xFF800000> : vector<2x8xf32>
    %249 = vector.multi_reduction <maximumf>, %248, %cst_96 [2] : vector<2x8x8xf32> to vector<2x8xf32>
    %250 = vector.shape_cast %249 : vector<2x8xf32> to vector<2x8x1xf32>
    %251 = vector.broadcast %250 : vector<2x8x1xf32> to vector<2x8x8xf32>
    %252 = arith.subf %248, %251 : vector<2x8x8xf32>
    %253 = math.exp %252 : vector<2x8x8xf32>
    %cst_97 = arith.constant dense<0.000000e+00> : vector<2x8xf32>
    %254 = vector.multi_reduction <add>, %253, %cst_97 [2] : vector<2x8x8xf32> to vector<2x8xf32>
    %255 = vector.shape_cast %254 : vector<2x8xf32> to vector<2x8x1xf32>
    %256 = tpu.reciprocal %255 {approx = true} : vector<2x8x1xf32> -> vector<2x8x1xf32>
    %257 = vector.broadcast %256 : vector<2x8x1xf32> to vector<2x8x8xf32>
    %258 = arith.mulf %253, %257 : vector<2x8x8xf32>
    %259 = arith.truncf %258 : vector<2x8x8xf32> to vector<2x8x8xbf16>
    %260 = arith.truncf %243 : vector<2x8x32xf32> to vector<2x8x32xbf16>
    "tpu.trace_start"() <{level = 10 : i32, message = "bqk,bkd->bqd"}> : () -> ()
    %cst_98 = arith.constant dense<0.000000e+00> : vector<2x8x32xf32>
    %261 = tpu.matmul %259, %260, %cst_98 {dimension_numbers = #tpu.dot_dimension_numbers<[2], [1], [1], [2], [0, 0, 0, 1, 1, 2], [0], [0]>} : vector<2x8x8xbf16>, vector<2x8x32xbf16>, vector<2x8x32xf32> -> vector<2x8x32xf32>
    "tpu.trace_stop"() : () -> ()
    %262 = vector.shape_cast %261 : vector<2x8x32xf32> to vector<16x32xf32>
    %c0_99 = arith.constant 0 : index
    %c0_100 = arith.constant 0 : index
    %263 = vector.load %arg21[%c0_99, %c0_100] : memref<16x128xf32, #tpu.memory_space<vmem>>, vector<16x32xf32>
    tpu.vector_store %arg21[%c0_99, %c0_100], %262 {strides = array<i32>} : memref<16x128xf32, #tpu.memory_space<vmem>>, vector<16x32xf32>,
    %264 = vector.extract_strided_slice %237 {offsets = [0, 32], sizes = [16, 32], strides = [1, 1]} : vector<16x384xf32> to vector<16x32xf32>
    %265 = vector.shape_cast %264 : vector<16x32xf32> to vector<2x8x32xf32>
    %266 = vector.extract_strided_slice %237 {offsets = [0, 160], sizes = [16, 32], strides = [1, 1]} : vector<16x384xf32> to vector<16x32xf32>
    %267 = vector.shape_cast %266 : vector<16x32xf32> to vector<2x8x32xf32>
    %268 = vector.extract_strided_slice %237 {offsets = [0, 288], sizes = [16, 32], strides = [1, 1]} : vector<16x384xf32> to vector<16x32xf32>
    %269 = vector.shape_cast %268 : vector<16x32xf32> to vector<2x8x32xf32>
    %270 = arith.truncf %265 : vector<2x8x32xf32> to vector<2x8x32xbf16>
    %271 = arith.truncf %267 : vector<2x8x32xf32> to vector<2x8x32xbf16>
    "tpu.trace_start"() <{level = 10 : i32, message = "bqd,bkd->bqk"}> : () -> ()
    %cst_101 = arith.constant dense<0.000000e+00> : vector<2x8x8xf32>
    %272 = tpu.matmul %270, %271, %cst_101 {dimension_numbers = #tpu.dot_dimension_numbers<[2], [2], [1], [1], [0, 0, 0, 1, 1, 1], [0], [0]>} : vector<2x8x32xbf16>, vector<2x8x32xbf16>, vector<2x8x8xf32> -> vector<2x8x8xf32>
    "tpu.trace_stop"() : () -> ()
    %273 = vector.broadcast %25 : vector<2x1x8xf32> to vector<2x8x8xf32>
    %274 = arith.addf %272, %273 : vector<2x8x8xf32>
    %cst_102 = arith.constant dense<0xFF800000> : vector<2x8xf32>
    %275 = vector.multi_reduction <maximumf>, %274, %cst_102 [2] : vector<2x8x8xf32> to vector<2x8xf32>
    %276 = vector.shape_cast %275 : vector<2x8xf32> to vector<2x8x1xf32>
    %277 = vector.broadcast %276 : vector<2x8x1xf32> to vector<2x8x8xf32>
    %278 = arith.subf %274, %277 : vector<2x8x8xf32>
    %279 = math.exp %278 : vector<2x8x8xf32>
    %cst_103 = arith.constant dense<0.000000e+00> : vector<2x8xf32>
    %280 = vector.multi_reduction <add>, %279, %cst_103 [2] : vector<2x8x8xf32> to vector<2x8xf32>
    %281 = vector.shape_cast %280 : vector<2x8xf32> to vector<2x8x1xf32>
    %282 = tpu.reciprocal %281 {approx = true} : vector<2x8x1xf32> -> vector<2x8x1xf32>
    %283 = vector.broadcast %282 : vector<2x8x1xf32> to vector<2x8x8xf32>
    %284 = arith.mulf %279, %283 : vector<2x8x8xf32>
    %285 = arith.truncf %284 : vector<2x8x8xf32> to vector<2x8x8xbf16>
    %286 = arith.truncf %269 : vector<2x8x32xf32> to vector<2x8x32xbf16>
    "tpu.trace_start"() <{level = 10 : i32, message = "bqk,bkd->bqd"}> : () -> ()
    %cst_104 = arith.constant dense<0.000000e+00> : vector<2x8x32xf32>
    %287 = tpu.matmul %285, %286, %cst_104 {dimension_numbers = #tpu.dot_dimension_numbers<[2], [1], [1], [2], [0, 0, 0, 1, 1, 2], [0], [0]>} : vector<2x8x8xbf16>, vector<2x8x32xbf16>, vector<2x8x32xf32> -> vector<2x8x32xf32>
    "tpu.trace_stop"() : () -> ()
    %288 = vector.shape_cast %287 : vector<2x8x32xf32> to vector<16x32xf32>
    %c0_105 = arith.constant 0 : index
    %c32_106 = arith.constant 32 : index
    %289 = vector.load %arg21[%c0_105, %c32_106] : memref<16x128xf32, #tpu.memory_space<vmem>>, vector<16x32xf32>
    tpu.vector_store %arg21[%c0_105, %c32_106], %288 {strides = array<i32>} : memref<16x128xf32, #tpu.memory_space<vmem>>, vector<16x32xf32>,
    %290 = vector.extract_strided_slice %237 {offsets = [0, 64], sizes = [16, 32], strides = [1, 1]} : vector<16x384xf32> to vector<16x32xf32>
    %291 = vector.shape_cast %290 : vector<16x32xf32> to vector<2x8x32xf32>
    %292 = vector.extract_strided_slice %237 {offsets = [0, 192], sizes = [16, 32], strides = [1, 1]} : vector<16x384xf32> to vector<16x32xf32>
    %293 = vector.shape_cast %292 : vector<16x32xf32> to vector<2x8x32xf32>
    %294 = vector.extract_strided_slice %237 {offsets = [0, 320], sizes = [16, 32], strides = [1, 1]} : vector<16x384xf32> to vector<16x32xf32>
    %295 = vector.shape_cast %294 : vector<16x32xf32> to vector<2x8x32xf32>
    %296 = arith.truncf %291 : vector<2x8x32xf32> to vector<2x8x32xbf16>
    %297 = arith.truncf %293 : vector<2x8x32xf32> to vector<2x8x32xbf16>
    "tpu.trace_start"() <{level = 10 : i32, message = "bqd,bkd->bqk"}> : () -> ()
    %cst_107 = arith.constant dense<0.000000e+00> : vector<2x8x8xf32>
    %298 = tpu.matmul %296, %297, %cst_107 {dimension_numbers = #tpu.dot_dimension_numbers<[2], [2], [1], [1], [0, 0, 0, 1, 1, 1], [0], [0]>} : vector<2x8x32xbf16>, vector<2x8x32xbf16>, vector<2x8x8xf32> -> vector<2x8x8xf32>
    "tpu.trace_stop"() : () -> ()
    %299 = vector.broadcast %25 : vector<2x1x8xf32> to vector<2x8x8xf32>
    %300 = arith.addf %298, %299 : vector<2x8x8xf32>
    %cst_108 = arith.constant dense<0xFF800000> : vector<2x8xf32>
    %301 = vector.multi_reduction <maximumf>, %300, %cst_108 [2] : vector<2x8x8xf32> to vector<2x8xf32>
    %302 = vector.shape_cast %301 : vector<2x8xf32> to vector<2x8x1xf32>
    %303 = vector.broadcast %302 : vector<2x8x1xf32> to vector<2x8x8xf32>
    %304 = arith.subf %300, %303 : vector<2x8x8xf32>
    %305 = math.exp %304 : vector<2x8x8xf32>
    %cst_109 = arith.constant dense<0.000000e+00> : vector<2x8xf32>
    %306 = vector.multi_reduction <add>, %305, %cst_109 [2] : vector<2x8x8xf32> to vector<2x8xf32>
    %307 = vector.shape_cast %306 : vector<2x8xf32> to vector<2x8x1xf32>
    %308 = tpu.reciprocal %307 {approx = true} : vector<2x8x1xf32> -> vector<2x8x1xf32>
    %309 = vector.broadcast %308 : vector<2x8x1xf32> to vector<2x8x8xf32>
    %310 = arith.mulf %305, %309 : vector<2x8x8xf32>
    %311 = arith.truncf %310 : vector<2x8x8xf32> to vector<2x8x8xbf16>
    %312 = arith.truncf %295 : vector<2x8x32xf32> to vector<2x8x32xbf16>
    "tpu.trace_start"() <{level = 10 : i32, message = "bqk,bkd->bqd"}> : () -> ()
    %cst_110 = arith.constant dense<0.000000e+00> : vector<2x8x32xf32>
    %313 = tpu.matmul %311, %312, %cst_110 {dimension_numbers = #tpu.dot_dimension_numbers<[2], [1], [1], [2], [0, 0, 0, 1, 1, 2], [0], [0]>} : vector<2x8x8xbf16>, vector<2x8x32xbf16>, vector<2x8x32xf32> -> vector<2x8x32xf32>
    "tpu.trace_stop"() : () -> ()
    %314 = vector.shape_cast %313 : vector<2x8x32xf32> to vector<16x32xf32>
    %c0_111 = arith.constant 0 : index
    %c64_112 = arith.constant 64 : index
    %315 = vector.load %arg21[%c0_111, %c64_112] : memref<16x128xf32, #tpu.memory_space<vmem>>, vector<16x32xf32>
    tpu.vector_store %arg21[%c0_111, %c64_112], %314 {strides = array<i32>} : memref<16x128xf32, #tpu.memory_space<vmem>>, vector<16x32xf32>,
    %316 = vector.extract_strided_slice %237 {offsets = [0, 96], sizes = [16, 32], strides = [1, 1]} : vector<16x384xf32> to vector<16x32xf32>
    %317 = vector.shape_cast %316 : vector<16x32xf32> to vector<2x8x32xf32>
    %318 = vector.extract_strided_slice %237 {offsets = [0, 224], sizes = [16, 32], strides = [1, 1]} : vector<16x384xf32> to vector<16x32xf32>
    %319 = vector.shape_cast %318 : vector<16x32xf32> to vector<2x8x32xf32>
    %320 = vector.extract_strided_slice %237 {offsets = [0, 352], sizes = [16, 32], strides = [1, 1]} : vector<16x384xf32> to vector<16x32xf32>
    %321 = vector.shape_cast %320 : vector<16x32xf32> to vector<2x8x32xf32>
    %322 = arith.truncf %317 : vector<2x8x32xf32> to vector<2x8x32xbf16>
    %323 = arith.truncf %319 : vector<2x8x32xf32> to vector<2x8x32xbf16>
    "tpu.trace_start"() <{level = 10 : i32, message = "bqd,bkd->bqk"}> : () -> ()
    %cst_113 = arith.constant dense<0.000000e+00> : vector<2x8x8xf32>
    %324 = tpu.matmul %322, %323, %cst_113 {dimension_numbers = #tpu.dot_dimension_numbers<[2], [2], [1], [1], [0, 0, 0, 1, 1, 1], [0], [0]>} : vector<2x8x32xbf16>, vector<2x8x32xbf16>, vector<2x8x8xf32> -> vector<2x8x8xf32>
    "tpu.trace_stop"() : () -> ()
    %325 = vector.broadcast %25 : vector<2x1x8xf32> to vector<2x8x8xf32>
    %326 = arith.addf %324, %325 : vector<2x8x8xf32>
    %cst_114 = arith.constant dense<0xFF800000> : vector<2x8xf32>
    %327 = vector.multi_reduction <maximumf>, %326, %cst_114 [2] : vector<2x8x8xf32> to vector<2x8xf32>
    %328 = vector.shape_cast %327 : vector<2x8xf32> to vector<2x8x1xf32>
    %329 = vector.broadcast %328 : vector<2x8x1xf32> to vector<2x8x8xf32>
    %330 = arith.subf %326, %329 : vector<2x8x8xf32>
    %331 = math.exp %330 : vector<2x8x8xf32>
    %cst_115 = arith.constant dense<0.000000e+00> : vector<2x8xf32>
    %332 = vector.multi_reduction <add>, %331, %cst_115 [2] : vector<2x8x8xf32> to vector<2x8xf32>
    %333 = vector.shape_cast %332 : vector<2x8xf32> to vector<2x8x1xf32>
    %334 = tpu.reciprocal %333 {approx = true} : vector<2x8x1xf32> -> vector<2x8x1xf32>
    %335 = vector.broadcast %334 : vector<2x8x1xf32> to vector<2x8x8xf32>
    %336 = arith.mulf %331, %335 : vector<2x8x8xf32>
    %337 = arith.truncf %336 : vector<2x8x8xf32> to vector<2x8x8xbf16>
    %338 = arith.truncf %321 : vector<2x8x32xf32> to vector<2x8x32xbf16>
    "tpu.trace_start"() <{level = 10 : i32, message = "bqk,bkd->bqd"}> : () -> ()
    %cst_116 = arith.constant dense<0.000000e+00> : vector<2x8x32xf32>
    %339 = tpu.matmul %337, %338, %cst_116 {dimension_numbers = #tpu.dot_dimension_numbers<[2], [1], [1], [2], [0, 0, 0, 1, 1, 2], [0], [0]>} : vector<2x8x8xbf16>, vector<2x8x32xbf16>, vector<2x8x32xf32> -> vector<2x8x32xf32>
    "tpu.trace_stop"() : () -> ()
    %340 = vector.shape_cast %339 : vector<2x8x32xf32> to vector<16x32xf32>
    %c0_117 = arith.constant 0 : index
    %c96_118 = arith.constant 96 : index
    %341 = vector.load %arg21[%c0_117, %c96_118] : memref<16x128xf32, #tpu.memory_space<vmem>>, vector<16x32xf32>
    tpu.vector_store %arg21[%c0_117, %c96_118], %340 {strides = array<i32>} : memref<16x128xf32, #tpu.memory_space<vmem>>, vector<16x32xf32>,
    %c0_119 = arith.constant 0 : index
    %c0_120 = arith.constant 0 : index
    %342 = vector.load %arg21[%c0_119, %c0_120] : memref<16x128xf32, #tpu.memory_space<vmem>>, vector<16x128xf32>
    %343 = arith.truncf %342 : vector<16x128xf32> to vector<16x128xbf16>
    %c1_121 = arith.constant 1 : index
    %c0_122 = arith.constant 0 : index
    %c0_123 = arith.constant 0 : index
    %344 = vector.load %arg6[%c1_121, %c0_122, %c0_123] : memref<2x128x128xbf16, #tpu.memory_space<vmem>>, vector<1x128x128xbf16>
    %345 = vector.shape_cast %344 : vector<1x128x128xbf16> to vector<128x128xbf16>
    %cst_124 = arith.constant dense<0.000000e+00> : vector<16x128xf32>
    %346 = tpu.matmul %343, %345, %cst_124 {dimension_numbers = #tpu.dot_dimension_numbers<[1], [0], [0], [1], [0, 0, 1, 1], [], []>} : vector<16x128xbf16>, vector<128x128xbf16>, vector<16x128xf32> -> vector<16x128xf32>
    %c1_125 = arith.constant 1 : index
    %c0_126 = arith.constant 0 : index
    %c0_127 = arith.constant 0 : index
    %347 = vector.load %arg7[%c1_125, %c0_126, %c0_127] : memref<2x1x128xf32, #tpu.memory_space<vmem>>, vector<1x1x128xf32>
    %348 = vector.shape_cast %347 : vector<1x1x128xf32> to vector<1x128xf32>
    %349 = vector.broadcast %348 : vector<1x128xf32> to vector<16x128xf32>
    %350 = arith.addf %346, %349 : vector<16x128xf32>
    %351 = arith.addf %229, %350 : vector<16x128xf32>
    %c1_128 = arith.constant 1 : index
    %c0_129 = arith.constant 0 : index
    %c0_130 = arith.constant 0 : index
    %352 = vector.load %arg8[%c1_128, %c0_129, %c0_130] : memref<2x1x128xf32, #tpu.memory_space<vmem>>, vector<1x1x128xf32>
    %353 = vector.shape_cast %352 : vector<1x1x128xf32> to vector<1x128xf32>
    %c1_131 = arith.constant 1 : index
    %c0_132 = arith.constant 0 : index
    %c0_133 = arith.constant 0 : index
    %354 = vector.load %arg9[%c1_131, %c0_132, %c0_133] : memref<2x1x128xf32, #tpu.memory_space<vmem>>, vector<1x1x128xf32>
    %355 = vector.shape_cast %354 : vector<1x1x128xf32> to vector<1x128xf32>
    %cst_134 = arith.constant dense<0.000000e+00> : vector<16xf32>
    %356 = vector.multi_reduction <add>, %351, %cst_134 [1] : vector<16x128xf32> to vector<16xf32>
    %357 = vector.shape_cast %356 : vector<16xf32> to vector<16x1xf32>
    %cst_135 = arith.constant 1.280000e+02 : f32
    %358 = vector.broadcast %cst_135 : f32 to vector<16x1xf32>
    %359 = arith.divf %357, %358 : vector<16x1xf32>
    %360 = vector.broadcast %359 : vector<16x1xf32> to vector<16x128xf32>
    %361 = arith.subf %351, %360 : vector<16x128xf32>
    %362 = arith.mulf %361, %361 : vector<16x128xf32>
    %cst_136 = arith.constant dense<0.000000e+00> : vector<16xf32>
    %363 = vector.multi_reduction <add>, %362, %cst_136 [1] : vector<16x128xf32> to vector<16xf32>
    %364 = vector.shape_cast %363 : vector<16xf32> to vector<16x1xf32>
    %cst_137 = arith.constant 1.280000e+02 : f32
    %365 = vector.broadcast %cst_137 : f32 to vector<16x1xf32>
    %366 = arith.divf %364, %365 : vector<16x1xf32>
    %367 = vector.broadcast %359 : vector<16x1xf32> to vector<16x128xf32>
    %368 = arith.subf %351, %367 : vector<16x128xf32>
    %cst_138 = arith.constant 9.99999974E-6 : f32
    %369 = vector.broadcast %cst_138 : f32 to vector<16x1xf32>
    %370 = arith.addf %366, %369 : vector<16x1xf32>
    %371 = math.rsqrt %370 : vector<16x1xf32>
    %372 = vector.broadcast %371 : vector<16x1xf32> to vector<16x128xf32>
    %373 = arith.mulf %368, %372 : vector<16x128xf32>
    %374 = vector.broadcast %353 : vector<1x128xf32> to vector<16x128xf32>
    %375 = arith.mulf %373, %374 : vector<16x128xf32>
    %376 = vector.broadcast %355 : vector<1x128xf32> to vector<16x128xf32>
    %377 = arith.addf %375, %376 : vector<16x128xf32>
    %378 = arith.truncf %377 : vector<16x128xf32> to vector<16x128xbf16>
    %c1_139 = arith.constant 1 : index
    %c0_140 = arith.constant 0 : index
    %c0_141 = arith.constant 0 : index
    %379 = vector.load %arg10[%c1_139, %c0_140, %c0_141] : memref<2x128x512xbf16, #tpu.memory_space<vmem>>, vector<1x128x512xbf16>
    %380 = vector.shape_cast %379 : vector<1x128x512xbf16> to vector<128x512xbf16>
    %cst_142 = arith.constant dense<0.000000e+00> : vector<16x512xf32>
    %381 = tpu.matmul %378, %380, %cst_142 {dimension_numbers = #tpu.dot_dimension_numbers<[1], [0], [0], [1], [0, 0, 1, 1], [], []>} : vector<16x128xbf16>, vector<128x512xbf16>, vector<16x512xf32> -> vector<16x512xf32>
    %c1_143 = arith.constant 1 : index
    %c0_144 = arith.constant 0 : index
    %c0_145 = arith.constant 0 : index
    %382 = vector.load %arg11[%c1_143, %c0_144, %c0_145] : memref<2x1x512xf32, #tpu.memory_space<vmem>>, vector<1x1x512xf32>
    %383 = vector.shape_cast %382 : vector<1x1x512xf32> to vector<1x512xf32>
    %384 = vector.broadcast %383 : vector<1x512xf32> to vector<16x512xf32>
    %385 = arith.addf %381, %384 : vector<16x512xf32>
    %386 = arith.mulf %385, %385 : vector<16x512xf32>
    %387 = arith.mulf %385, %386 : vector<16x512xf32>
    %cst_146 = arith.constant 4.471500e-02 : f32
    %388 = vector.broadcast %cst_146 : f32 to vector<16x512xf32>
    %389 = arith.mulf %388, %387 : vector<16x512xf32>
    %390 = arith.addf %385, %389 : vector<16x512xf32>
    %cst_147 = arith.constant 0.797884583 : f32
    %391 = vector.broadcast %cst_147 : f32 to vector<16x512xf32>
    %392 = arith.mulf %391, %390 : vector<16x512xf32>
    %393 = math.tanh %392 : vector<16x512xf32>
    %cst_148 = arith.constant 1.000000e+00 : f32
    %394 = vector.broadcast %cst_148 : f32 to vector<16x512xf32>
    %395 = arith.addf %394, %393 : vector<16x512xf32>
    %cst_149 = arith.constant 5.000000e-01 : f32
    %396 = vector.broadcast %cst_149 : f32 to vector<16x512xf32>
    %397 = arith.mulf %396, %395 : vector<16x512xf32>
    %398 = arith.mulf %385, %397 : vector<16x512xf32>
    %399 = arith.truncf %398 : vector<16x512xf32> to vector<16x512xbf16>
    %c1_150 = arith.constant 1 : index
    %c0_151 = arith.constant 0 : index
    %c0_152 = arith.constant 0 : index
    %400 = vector.load %arg12[%c1_150, %c0_151, %c0_152] : memref<2x512x128xbf16, #tpu.memory_space<vmem>>, vector<1x512x128xbf16>
    %401 = vector.shape_cast %400 : vector<1x512x128xbf16> to vector<512x128xbf16>
    %cst_153 = arith.constant dense<0.000000e+00> : vector<16x128xf32>
    %402 = tpu.matmul %399, %401, %cst_153 {dimension_numbers = #tpu.dot_dimension_numbers<[1], [0], [0], [1], [0, 0, 1, 1], [], []>} : vector<16x512xbf16>, vector<512x128xbf16>, vector<16x128xf32> -> vector<16x128xf32>
    %c1_154 = arith.constant 1 : index
    %c0_155 = arith.constant 0 : index
    %c0_156 = arith.constant 0 : index
    %403 = vector.load %arg13[%c1_154, %c0_155, %c0_156] : memref<2x1x128xf32, #tpu.memory_space<vmem>>, vector<1x1x128xf32>
    %404 = vector.shape_cast %403 : vector<1x1x128xf32> to vector<1x128xf32>
    %405 = vector.broadcast %404 : vector<1x128xf32> to vector<16x128xf32>
    %406 = arith.addf %402, %405 : vector<16x128xf32>
    %407 = arith.addf %377, %406 : vector<16x128xf32>
    %c1_157 = arith.constant 1 : index
    %c0_158 = arith.constant 0 : index
    %c0_159 = arith.constant 0 : index
    %408 = vector.load %arg14[%c1_157, %c0_158, %c0_159] : memref<2x1x128xf32, #tpu.memory_space<vmem>>, vector<1x1x128xf32>
    %409 = vector.shape_cast %408 : vector<1x1x128xf32> to vector<1x128xf32>
    %c1_160 = arith.constant 1 : index
    %c0_161 = arith.constant 0 : index
    %c0_162 = arith.constant 0 : index
    %410 = vector.load %arg15[%c1_160, %c0_161, %c0_162] : memref<2x1x128xf32, #tpu.memory_space<vmem>>, vector<1x1x128xf32>
    %411 = vector.shape_cast %410 : vector<1x1x128xf32> to vector<1x128xf32>
    %cst_163 = arith.constant dense<0.000000e+00> : vector<16xf32>
    %412 = vector.multi_reduction <add>, %407, %cst_163 [1] : vector<16x128xf32> to vector<16xf32>
    %413 = vector.shape_cast %412 : vector<16xf32> to vector<16x1xf32>
    %cst_164 = arith.constant 1.280000e+02 : f32
    %414 = vector.broadcast %cst_164 : f32 to vector<16x1xf32>
    %415 = arith.divf %413, %414 : vector<16x1xf32>
    %416 = vector.broadcast %415 : vector<16x1xf32> to vector<16x128xf32>
    %417 = arith.subf %407, %416 : vector<16x128xf32>
    %418 = arith.mulf %417, %417 : vector<16x128xf32>
    %cst_165 = arith.constant dense<0.000000e+00> : vector<16xf32>
    %419 = vector.multi_reduction <add>, %418, %cst_165 [1] : vector<16x128xf32> to vector<16xf32>
    %420 = vector.shape_cast %419 : vector<16xf32> to vector<16x1xf32>
    %cst_166 = arith.constant 1.280000e+02 : f32
    %421 = vector.broadcast %cst_166 : f32 to vector<16x1xf32>
    %422 = arith.divf %420, %421 : vector<16x1xf32>
    %423 = vector.broadcast %415 : vector<16x1xf32> to vector<16x128xf32>
    %424 = arith.subf %407, %423 : vector<16x128xf32>
    %cst_167 = arith.constant 9.99999974E-6 : f32
    %425 = vector.broadcast %cst_167 : f32 to vector<16x1xf32>
    %426 = arith.addf %422, %425 : vector<16x1xf32>
    %427 = math.rsqrt %426 : vector<16x1xf32>
    %428 = vector.broadcast %427 : vector<16x1xf32> to vector<16x128xf32>
    %429 = arith.mulf %424, %428 : vector<16x128xf32>
    %430 = vector.broadcast %409 : vector<1x128xf32> to vector<16x128xf32>
    %431 = arith.mulf %429, %430 : vector<16x128xf32>
    %432 = vector.broadcast %411 : vector<1x128xf32> to vector<16x128xf32>
    %433 = arith.addf %431, %432 : vector<16x128xf32>
    %434 = vector.shape_cast %433 : vector<16x128xf32> to vector<2x8x128xf32>
    %435 = vector.extract_strided_slice %434 {offsets = [0, 0, 0], sizes = [2, 1, 128], strides = [1, 1, 1]} : vector<2x8x128xf32> to vector<2x1x128xf32>
    %436 = vector.shape_cast %435 : vector<2x1x128xf32> to vector<2x128xf32>
    %437 = arith.truncf %436 : vector<2x128xf32> to vector<2x128xbf16>
    %c0_168 = arith.constant 0 : index
    %c0_169 = arith.constant 0 : index
    %438 = vector.load %arg16[%c0_168, %c0_169] : memref<128x128xbf16, #tpu.memory_space<vmem>>, vector<128x128xbf16>
    %cst_170 = arith.constant dense<0.000000e+00> : vector<2x128xf32>
    %439 = tpu.matmul %437, %438, %cst_170 {dimension_numbers = #tpu.dot_dimension_numbers<[1], [0], [0], [1], [0, 0, 1, 1], [], []>} : vector<2x128xbf16>, vector<128x128xbf16>, vector<2x128xf32> -> vector<2x128xf32>
    %c0_171 = arith.constant 0 : index
    %c0_172 = arith.constant 0 : index
    %440 = vector.load %arg17[%c0_171, %c0_172] : memref<1x128xf32, #tpu.memory_space<vmem>>, vector<1x128xf32>
    %441 = vector.broadcast %440 : vector<1x128xf32> to vector<2x128xf32>
    %442 = arith.addf %439, %441 : vector<2x128xf32>
    %443 = math.tanh %442 : vector<2x128xf32>
    %444 = arith.truncf %443 : vector<2x128xf32> to vector<2x128xbf16>
    %c0_173 = arith.constant 0 : index
    %c0_174 = arith.constant 0 : index
    %445 = vector.load %arg18[%c0_173, %c0_174] : memref<128x128xbf16, #tpu.memory_space<vmem>>, vector<128x128xbf16>
    %cst_175 = arith.constant dense<0.000000e+00> : vector<2x128xf32>
    %446 = tpu.matmul %444, %445, %cst_175 {dimension_numbers = #tpu.dot_dimension_numbers<[1], [0], [0], [1], [0, 0, 1, 1], [], []>} : vector<2x128xbf16>, vector<128x128xbf16>, vector<2x128xf32> -> vector<2x128xf32>
    %c0_176 = arith.constant 0 : index
    %c0_177 = arith.constant 0 : index
    %447 = vector.load %arg19[%c0_176, %c0_177] : memref<1x128xf32, #tpu.memory_space<vmem>>, vector<1x128xf32>
    %448 = vector.broadcast %447 : vector<1x128xf32> to vector<2x128xf32>
    %449 = arith.addf %446, %448 : vector<2x128xf32>
    %c0_178 = arith.constant 0 : index
    %c0_179 = arith.constant 0 : index
    %450 = vector.load %arg20[%c0_178, %c0_179] : memref<2x128xf32, #tpu.memory_space<vmem>>, vector<2x128xf32>
    tpu.vector_store %arg20[%c0_178, %c0_179], %449 {strides = array<i32>} : memref<2x128xf32, #tpu.memory_space<vmem>>, vector<2x128xf32>,
    return
  }
}

</mosaic_0001>

<llo_original>
// kernel: roberta_forward.1
$region0: #{roberta_forward.1}
  #allocation0 [shape = 'u32[]', space=smem, size = 0x4, offset = 0x4, fixed_abs, tag = 'smem constant byte address 0x4 - core index']
  #allocation1 [shape = 'u32[144,128]{1,0:T(1,128)}', space=vmem, size = 0x12000, scoped, tag = 'internal scratch']
  #allocation2 [shape = 'f32[16,128]{1,0:T(8,128)}', space=vmem, size = 0x2000, scoped, tag = 'scratch operand']
  %s0 = inlined_call_operand.vmem [shape: f32[16,128], index: 0, kind: input, shape index: {}]
  %s1 = inlined_call_operand.vmem [shape: f32[2,1,8], index: 1, kind: input, shape index: {}]
  %s2 = inlined_call_operand.vmem [shape: f32[1,128], index: 2, kind: input, shape index: {}]
  %s3 = inlined_call_operand.vmem [shape: f32[1,128], index: 3, kind: input, shape index: {}]
  %s4 = inlined_call_operand.vmem [shape: bf16[2,128,384], index: 4, kind: input, shape index: {}]
  %s5 = inlined_call_operand.vmem [shape: f32[2,1,384], index: 5, kind: input, shape index: {}]
  %s6 = inlined_call_operand.hbm [shape: bf16[2,128,128], index: 6, kind: input, shape index: {}]
  %s7 = inlined_call_operand.vmem [shape: f32[2,1,128], index: 7, kind: input, shape index: {}]
  %s8 = inlined_call_operand.vmem [shape: f32[2,1,128], index: 8, kind: input, shape index: {}]
  %s9 = inlined_call_operand.vmem [shape: f32[2,1,128], index: 9, kind: input, shape index: {}]
  %s10 = inlined_call_operand.hbm [shape: bf16[2,128,512], index: 10, kind: input, shape index: {}]
  %s11 = inlined_call_operand.vmem [shape: f32[2,1,512], index: 11, kind: input, shape index: {}]
  %s12 = inlined_call_operand.hbm [shape: bf16[2,512,128], index: 12, kind: input, shape index: {}]
  %s13 = inlined_call_operand.vmem [shape: f32[2,1,128], index: 13, kind: input, shape index: {}]
  %s14 = inlined_call_operand.hbm [shape: f32[2,1,128], index: 14, kind: input, shape index: {}]
  %s15 = inlined_call_operand.hbm [shape: f32[2,1,128], index: 15, kind: input, shape index: {}]
  %s16 = inlined_call_operand.hbm [shape: bf16[128,128], index: 16, kind: input, shape index: {}]
  %s17 = inlined_call_operand.hbm [shape: f32[1,128], index: 17, kind: input, shape index: {}]
  %s18 = inlined_call_operand.hbm [shape: bf16[128,128], index: 18, kind: input, shape index: {}]
  %s19 = inlined_call_operand.vmem [shape: f32[1,128], index: 19, kind: input, shape index: {}]
  %s20 = inlined_call_operand.vmem [shape: f32[2,128], index: 20, kind: output, shape index: {}]
  %s21 = sld [smem:[#allocation0]]
  $region122: #{roberta_forward.1} parent=0
    _
  %s23 = ssub.s32 1, %s21
  %s24 = scalar_select 0, %s23, %s21
  $region1: #{roberta_forward.1} parent=0
    #allocation3 [shape = 'u8[65536]{0}', space=vmem, size = 0x10000, scoped, tag = 'input window, operand 6, single buffered']
    #allocation4 [shape = 's32[1]{0}', space=sflag, size = 0x4, scoped, tag = 'scoped memory for roberta_forward.1']
    #allocation5 [shape = 'u8[262144]{0}', space=vmem, size = 0x40000, scoped, tag = 'input window, operand 10, single buffered']
    #allocation6 [shape = 's32[1]{0}', space=sflag, size = 0x4, scoped, tag = 'scoped memory for roberta_forward.1']
    #allocation7 [shape = 'u8[262144]{0}', space=vmem, size = 0x40000, scoped, tag = 'input window, operand 12, single buffered']
    #allocation8 [shape = 'u8[1024]{0}', space=vmem, size = 0x400, scoped, tag = 'input window, operand 14, single buffered']
    #allocation9 [shape = 's32[1]{0}', space=sflag, size = 0x4, scoped, tag = 'scoped memory for roberta_forward.1']
    #allocation10 [shape = 'u8[1024]{0}', space=vmem, size = 0x400, scoped, tag = 'input window, operand 15, single buffered']
    #allocation11 [shape = 'u8[32768]{0}', space=vmem, size = 0x8000, scoped, tag = 'input window, operand 16, single buffered']
    #allocation12 [shape = 's32[1]{0}', space=sflag, size = 0x4, scoped, tag = 'scoped memory for roberta_forward.1']
    #allocation13 [shape = 'u8[512]{0}', space=vmem, size = 0x400, scoped, tag = 'input window, operand 17, single buffered']
    #allocation14 [shape = 'u8[32768]{0}', space=vmem, size = 0x8000, scoped, tag = 'input window, operand 18, single buffered']
    #allocation15 [shape = 's32[1]{0}', space=sflag, size = 0x4, scoped, tag = 'scoped memory for roberta_forward.1']
    %25 = vsyncpa [#allocation4], 0
    %26 = vsyncpa [#allocation6], 0
    %27 = vsyncpa [#allocation9], 0
    %28 = vsyncpa [#allocation12], 0
    %29 = vsyncpa [#allocation15], 0
    // Predicated region
    $region2: #{roberta_forward.1} parent=1 // pred_check
      _
    $region3: #{roberta_forward.1} parent=1 // pred_check_branch
      %31 = sbr.rel (0) target = $region5
    $region4: #{roberta_forward.1} parent=1 // pred_region
      _
    $region5: #{roberta_forward.1} parent=1 // pred_fallthru
      _
    // Predicated region
    $region6: #{roberta_forward.1} parent=1 // pred_check
      _
    $region7: #{roberta_forward.1} parent=1 // pred_check_branch
      %33 = sbr.rel (0) target = $region9
    $region8: #{roberta_forward.1} parent=1 // pred_region
      _
    $region9: #{roberta_forward.1} parent=1 // pred_fallthru
      _
    // Predicated region
    $region10: #{roberta_forward.1} parent=1 // pred_check
      _
    $region11: #{roberta_forward.1} parent=1 // pred_check_branch
      %35 = sbr.rel (0) target = $region13
    $region12: #{roberta_forward.1} parent=1 // pred_region
      _
    $region13: #{roberta_forward.1} parent=1 // pred_fallthru
      _
    // Predicated region
    $region14: #{roberta_forward.1} parent=1 // pred_check
      _
    $region15: #{roberta_forward.1} parent=1 // pred_check_branch
      %37 = sbr.rel (0) target = $region17
    $region16: #{roberta_forward.1} parent=1 // pred_region
      _
    $region17: #{roberta_forward.1} parent=1 // pred_fallthru
      _
    // Predicated region
    $region18: #{roberta_forward.1} parent=1 // pred_check
      _
    $region19: #{roberta_forward.1} parent=1 // pred_check_branch
      %39 = sbr.rel (0) target = $region21
    $region20: #{roberta_forward.1} parent=1 // pred_region
      _
    $region21: #{roberta_forward.1} parent=1 // pred_fallthru
      _
    // Predicated region
    $region22: #{roberta_forward.1} parent=1 // pred_check
      _
    $region23: #{roberta_forward.1} parent=1 // pred_check_branch
      %41 = sbr.rel (0) target = $region25
    $region24: #{roberta_forward.1} parent=1 // pred_region
      _
    $region25: #{roberta_forward.1} parent=1 // pred_fallthru
      _
    // Predicated region
    $region26: #{roberta_forward.1} parent=1 // pred_check
      _
    $region27: #{roberta_forward.1} parent=1 // pred_check_branch
      %43 = sbr.rel (0) target = $region29
    $region28: #{roberta_forward.1} parent=1 // pred_region
      %s45 = ssub.s32 2048, 2048
      %46 = vsyncadd [#allocation4], %s45
      %s47 = sshll.u32 [#allocation3], 4
      %s48 = int_to_ptr.vmem [resolvable:$true] %s47
      %53 = dma.hbm_to_vmem [thread:$0]  %s6, 2048, %s48, [#allocation4], 64, 64, 4
    $region29: #{roberta_forward.1} parent=1 // pred_fallthru
      _
    // Predicated region
    $region30: #{roberta_forward.1} parent=1 // pred_check
      _
    $region31: #{roberta_forward.1} parent=1 // pred_check_branch
      %55 = sbr.rel (0) target = $region33
    $region32: #{roberta_forward.1} parent=1 // pred_region
      _
    $region33: #{roberta_forward.1} parent=1 // pred_fallthru
      _
    // Predicated region
    $region34: #{roberta_forward.1} parent=1 // pred_check
      _
    $region35: #{roberta_forward.1} parent=1 // pred_check_branch
      %57 = sbr.rel (0) target = $region37
    $region36: #{roberta_forward.1} parent=1 // pred_region
      _
    $region37: #{roberta_forward.1} parent=1 // pred_fallthru
      _
    // Predicated region
    $region38: #{roberta_forward.1} parent=1 // pred_check
      _
    $region39: #{roberta_forward.1} parent=1 // pred_check_branch
      %59 = sbr.rel (0) target = $region41
    $region40: #{roberta_forward.1} parent=1 // pred_region
      _
    $region41: #{roberta_forward.1} parent=1 // pred_fallthru
      _
    // Predicated region
    $region42: #{roberta_forward.1} parent=1 // pred_check
      _
    $region43: #{roberta_forward.1} parent=1 // pred_check_branch
      %61 = sbr.rel (0) target = $region45
    $region44: #{roberta_forward.1} parent=1 // pred_region
      %s63 = ssub.s32 8192, 8192
      %64 = vsyncadd [#allocation6], %s63
      %s65 = sshll.u32 [#allocation5], 4
      %s66 = int_to_ptr.vmem [resolvable:$true] %s65
      %71 = dma.hbm_to_vmem [thread:$0]  %s10, 8192, %s66, [#allocation6], 256, 256, 16
    $region45: #{roberta_forward.1} parent=1 // pred_fallthru
      _
    // Predicated region
    $region46: #{roberta_forward.1} parent=1 // pred_check
      _
    $region47: #{roberta_forward.1} parent=1 // pred_check_branch
      %73 = sbr.rel (0) target = $region49
    $region48: #{roberta_forward.1} parent=1 // pred_region
      _
    $region49: #{roberta_forward.1} parent=1 // pred_fallthru
      _
    // Predicated region
    $region50: #{roberta_forward.1} parent=1 // pred_check
      _
    $region51: #{roberta_forward.1} parent=1 // pred_check_branch
      %75 = sbr.rel (0) target = $region53
    $region52: #{roberta_forward.1} parent=1 // pred_region
      %s77 = ssub.s32 8192, 8192
      %78 = vsyncadd [#allocation6], %s77
      %s79 = sshll.u32 [#allocation7], 4
      %s80 = int_to_ptr.vmem [resolvable:$true] %s79
      %85 = dma.hbm_to_vmem [thread:$0]  %s12, 8192, %s80, [#allocation6], 64, 64, 4
    $region53: #{roberta_forward.1} parent=1 // pred_fallthru
      _
    // Predicated region
    $region54: #{roberta_forward.1} parent=1 // pred_check
      _
    $region55: #{roberta_forward.1} parent=1 // pred_check_branch
      %87 = sbr.rel (0) target = $region57
    $region56: #{roberta_forward.1} parent=1 // pred_region
      _
    $region57: #{roberta_forward.1} parent=1 // pred_fallthru
      _
    // Predicated region
    $region58: #{roberta_forward.1} parent=1 // pred_check
      _
    $region59: #{roberta_forward.1} parent=1 // pred_check_branch
      %89 = sbr.rel (0) target = $region61
    $region60: #{roberta_forward.1} parent=1 // pred_region
      %s91 = ssub.s32 32, 32
      %92 = vsyncadd [#allocation9], %s91
      %s93 = sshll.u32 [#allocation8], 4
      %s94 = int_to_ptr.vmem [resolvable:$true] %s93
      %99 = dma.hbm_to_vmem [thread:$0]  %s14, 32, %s94, [#allocation9], 16, 16, 1
    $region61: #{roberta_forward.1} parent=1 // pred_fallthru
      _
    // Predicated region
    $region62: #{roberta_forward.1} parent=1 // pred_check
      _
    $region63: #{roberta_forward.1} parent=1 // pred_check_branch
      %101 = sbr.rel (0) target = $region65
    $region64: #{roberta_forward.1} parent=1 // pred_region
      %s103 = ssub.s32 32, 32
      %104 = vsyncadd [#allocation9], %s103
      %s105 = sshll.u32 [#allocation10], 4
      %s106 = int_to_ptr.vmem [resolvable:$true] %s105
      %111 = dma.hbm_to_vmem [thread:$0]  %s15, 32, %s106, [#allocation9], 16, 16, 1
    $region65: #{roberta_forward.1} parent=1 // pred_fallthru
      _
    // Predicated region
    $region66: #{roberta_forward.1} parent=1 // pred_check
      _
    $region67: #{roberta_forward.1} parent=1 // pred_check_branch
      %113 = sbr.rel (0) target = $region69
    $region68: #{roberta_forward.1} parent=1 // pred_region
      %s115 = ssub.s32 1024, 1024
      %116 = vsyncadd [#allocation12], %s115
      %s117 = sshll.u32 [#allocation11], 4
      %s118 = int_to_ptr.vmem [resolvable:$true] %s117
      %123 = dma.hbm_to_vmem [thread:$0]  %s16, 1024, %s118, [#allocation12], 64, 64, 4
    $region69: #{roberta_forward.1} parent=1 // pred_fallthru
      _
    // Predicated region
    $region70: #{roberta_forward.1} parent=1 // pred_check
      _
    $region71: #{roberta_forward.1} parent=1 // pred_check_branch
      %125 = sbr.rel (0) target = $region73
    $region72: #{roberta_forward.1} parent=1 // pred_region
      %s127 = ssub.s32 16, 16
      %128 = vsyncadd [#allocation12], %s127
      %s130 = sshll.u32 [#allocation13], 4
      %s131 = int_to_ptr.vmem [resolvable:$true] %s130
      %133 = dma.hbm_to_vmem [thread:$0]  %s17, 16, %s131, [#allocation12]
    $region73: #{roberta_forward.1} parent=1 // pred_fallthru
      _
    // Predicated region
    $region74: #{roberta_forward.1} parent=1 // pred_check
      _
    $region75: #{roberta_forward.1} parent=1 // pred_check_branch
      %135 = sbr.rel (0) target = $region77
    $region76: #{roberta_forward.1} parent=1 // pred_region
      %s137 = ssub.s32 1024, 1024
      %138 = vsyncadd [#allocation15], %s137
      %s139 = sshll.u32 [#allocation14], 4
      %s140 = int_to_ptr.vmem [resolvable:$true] %s139
      %145 = dma.hbm_to_vmem [thread:$0]  %s18, 1024, %s140, [#allocation15], 64, 64, 4
    $region77: #{roberta_forward.1} parent=1 // pred_fallthru
      _
    // Predicated region
    $region78: #{roberta_forward.1} parent=1 // pred_check
      _
    $region79: #{roberta_forward.1} parent=1 // pred_check_branch
      %147 = sbr.rel (0) target = $region81
    $region80: #{roberta_forward.1} parent=1 // pred_region
      _
    $region81: #{roberta_forward.1} parent=1 // pred_fallthru
      _
    // Predicated region
    $region82: #{roberta_forward.1} parent=1 // pred_check
      _
    $region83: #{roberta_forward.1} parent=1 // pred_check_branch
      %149 = sbr.rel (0) target = $region85
    $region84: #{roberta_forward.1} parent=1 // pred_region
      %150 = dma.done [#allocation4], 2048
    $region85: #{roberta_forward.1} parent=1 // pred_fallthru
      _
    // Predicated region
    $region86: #{roberta_forward.1} parent=1 // pred_check
      _
    $region87: #{roberta_forward.1} parent=1 // pred_check_branch
      %152 = sbr.rel (0) target = $region89
    $region88: #{roberta_forward.1} parent=1 // pred_region
      %153 = dma.done [#allocation6], 8192
    $region89: #{roberta_forward.1} parent=1 // pred_fallthru
      _
    // Predicated region
    $region90: #{roberta_forward.1} parent=1 // pred_check
      _
    $region91: #{roberta_forward.1} parent=1 // pred_check_branch
      %155 = sbr.rel (0) target = $region93
    $region92: #{roberta_forward.1} parent=1 // pred_region
      %156 = dma.done [#allocation6], 8192
    $region93: #{roberta_forward.1} parent=1 // pred_fallthru
      _
    // Predicated region
    $region94: #{roberta_forward.1} parent=1 // pred_check
      _
    $region95: #{roberta_forward.1} parent=1 // pred_check_branch
      %158 = sbr.rel (0) target = $region97
    $region96: #{roberta_forward.1} parent=1 // pred_region
      %159 = dma.done [#allocation9], 32
    $region97: #{roberta_forward.1} parent=1 // pred_fallthru
      _
    // Predicated region
    $region98: #{roberta_forward.1} parent=1 // pred_check
      _
    $region99: #{roberta_forward.1} parent=1 // pred_check_branch
      %161 = sbr.rel (0) target = $region101
    $region100: #{roberta_forward.1} parent=1 // pred_region
      %162 = dma.done [#allocation9], 32
    $region101: #{roberta_forward.1} parent=1 // pred_fallthru
      _
    // Predicated region
    $region102: #{roberta_forward.1} parent=1 // pred_check
      _
    $region103: #{roberta_forward.1} parent=1 // pred_check_branch
      %164 = sbr.rel (0) target = $region105
    $region104: #{roberta_forward.1} parent=1 // pred_region
      %165 = dma.done [#allocation12], 1024
    $region105: #{roberta_forward.1} parent=1 // pred_fallthru
      _
    // Predicated region
    $region106: #{roberta_forward.1} parent=1 // pred_check
      _
    $region107: #{roberta_forward.1} parent=1 // pred_check_branch
      %167 = sbr.rel (0) target = $region109
    $region108: #{roberta_forward.1} parent=1 // pred_region
      %168 = dma.done [#allocation12], 16
    $region109: #{roberta_forward.1} parent=1 // pred_fallthru
      _
    // Predicated region
    $region110: #{roberta_forward.1} parent=1 // pred_check
      _
    $region111: #{roberta_forward.1} parent=1 // pred_check_branch
      %170 = sbr.rel (0) target = $region113
    $region112: #{roberta_forward.1} parent=1 // pred_region
      %171 = dma.done [#allocation15], 1024
    $region113: #{roberta_forward.1} parent=1 // pred_fallthru
      _
    %v173 = vld [vmem:[%s0] sm:$0xff]
    %v174 = vld [vmem:[%s0 + $0x8] sm:$0xff]
    %v175 = vld [vmem:[%s2] sm:$0x1]
    %v176 = vld [vmem:[%s3] sm:$0x1]
    %177 = vadd.xlane.f32.xlu0 %v173
    %v178 = vpop.xlane.xlu0 %177
    %179 = vadd.xlane.f32.xlu0 %v174
    %v180 = vpop.xlane.xlu0 %179
    %v181 = vrcp.pop 128.0
    %v182 = vmul.f32 %v178, %v181
    %v183 = vmul.f32 %v180, %v181
    %v184 = vsub.f32 %v173, %v182
    %v185 = vsub.f32 %v174, %v183
    %v186 = vmul.f32 %v184, %v184
    %v187 = vmul.f32 %v185, %v185
    %188 = vadd.xlane.f32.xlu0 %v186
    %v189 = vpop.xlane.xlu0 %188
    %190 = vadd.xlane.f32.xlu0 %v187
    %v191 = vpop.xlane.xlu0 %190
    %v192 = vmul.f32 %v189, %v181
    %v193 = vmul.f32 %v191, %v181
    %v194 = vadd.f32 %v192, 1e-05
    %v195 = vadd.f32 %v193, 1e-05
    %v196 = vrsqrt.pop %v194
    %v197 = vrsqrt.pop %v195
    %v198 = vmul.f32 %v184, %v196
    %v199 = vmul.f32 %v185, %v197
    %v201 = vlaneseq
    %v202 = vshrl.u32 %v201, 7
    %v203 = vsub.s32 0, %v202
    %v204 = vrot.slane %v175, %v203
    %v206 = vmul.f32 %v198, %v204
    %v207 = vmul.f32 %v199, %v204
    %v209 = vlaneseq
    %v210 = vshrl.u32 %v209, 7
    %v211 = vsub.s32 0, %v210
    %v212 = vrot.slane %v176, %v211
    %v214 = vadd.f32 %v206, %v212
    %v215 = vadd.f32 %v207, %v212
    %v216 = vld [vmem:[%s1] sm:$0x1]
    %v217 = vld [vmem:[%s1 + $0x1] sm:$0x1]
    %v218 = vpack.c.bf16 %v215, %v214
    %v219 = vld [vmem:[%s4] sm:$0xff]
    %v220 = vld [vmem:[%s4 + $0x8] sm:$0xf]
    %v221 = vld [vmem:[%s4 + $0xc] sm:$0xff]
    %v222 = vld [vmem:[%s4 + $0x14] sm:$0xf]
    %v223 = vld [vmem:[%s4 + $0x18] sm:$0xff]
    %v224 = vld [vmem:[%s4 + $0x20] sm:$0xf]
    %v225 = vld [vmem:[%s4 + $0x24] sm:$0xff]
    %v226 = vld [vmem:[%s4 + $0x2c] sm:$0xf]
    %v227 = vld [vmem:[%s4 + $0x30] sm:$0xff]
    %v228 = vld [vmem:[%s4 + $0x38] sm:$0xf]
    %v229 = vld [vmem:[%s4 + $0x3c] sm:$0xff]
    %v230 = vld [vmem:[%s4 + $0x44] sm:$0xf]
    %v231 = vld [vmem:[%s4 + $0x48] sm:$0xff]
    %v232 = vld [vmem:[%s4 + $0x50] sm:$0xf]
    %v233 = vld [vmem:[%s4 + $0x54] sm:$0xff]
    %v234 = vld [vmem:[%s4 + $0x5c] sm:$0xf]
    %v235 = vld [vmem:[%s4 + $0x60] sm:$0xff]
    %v236 = vld [vmem:[%s4 + $0x68] sm:$0xf]
    %v237 = vld [vmem:[%s4 + $0x6c] sm:$0xff]
    %v238 = vld [vmem:[%s4 + $0x74] sm:$0xf]
    %v239 = vld [vmem:[%s4 + $0x78] sm:$0xff]
    %v240 = vld [vmem:[%s4 + $0x80] sm:$0xf]
    %v241 = vld [vmem:[%s4 + $0x84] sm:$0xff]
    %v242 = vld [vmem:[%s4 + $0x8c] sm:$0xf]
    %v243 = vld [vmem:[%s4 + $0x90] sm:$0xff]
    %v244 = vld [vmem:[%s4 + $0x98] sm:$0xf]
    %v245 = vld [vmem:[%s4 + $0x9c] sm:$0xff]
    %v246 = vld [vmem:[%s4 + $0xa4] sm:$0xf]
    %v247 = vld [vmem:[%s4 + $0xa8] sm:$0xff]
    %v248 = vld [vmem:[%s4 + $0xb0] sm:$0xf]
    %v249 = vld [vmem:[%s4 + $0xb4] sm:$0xff]
    %v250 = vld [vmem:[%s4 + $0xbc] sm:$0xf]
    %v251 = vld [vmem:[%s5] sm:$0x7]
    %v253 = vlaneseq
    %v254 = vshrl.u32 %v253, 7
    %v255 = vsub.s32 0, %v254
    %v256 = vrot.slane %v251, %v255
    %v257 = vlaneseq
    %v258 = vshrl.u32 %v257, 7
    %v259 = vsub.s32 1, %v258
    %v260 = vrot.slane %v251, %v259
    %v261 = vlaneseq
    %v262 = vshrl.u32 %v261, 7
    %v263 = vsub.s32 2, %v262
    %v264 = vrot.slane %v251, %v263
    %v300 = vunpack.c.l.b16 %v219
    %v301 = vunpack.c.h.b16 %v219
    %v302 = vunpack.c.l.b16 %v220
    %v303 = vunpack.c.l.b16 %v221
    %v304 = vunpack.c.h.b16 %v221
    %v305 = vunpack.c.l.b16 %v222
    %v306 = vunpack.c.l.b16 %v223
    %v307 = vunpack.c.h.b16 %v223
    %v308 = vunpack.c.l.b16 %v224
    %v309 = vunpack.c.l.b16 %v225
    %v310 = vunpack.c.h.b16 %v225
    %v311 = vunpack.c.l.b16 %v226
    %v312 = vunpack.c.l.b16 %v227
    %v313 = vunpack.c.h.b16 %v227
    %v314 = vunpack.c.l.b16 %v228
    %v315 = vunpack.c.l.b16 %v229
    %v316 = vunpack.c.h.b16 %v229
    %v317 = vunpack.c.l.b16 %v230
    %v318 = vunpack.c.l.b16 %v231
    %v319 = vunpack.c.h.b16 %v231
    %v320 = vunpack.c.l.b16 %v232
    %v321 = vunpack.c.l.b16 %v233
    %v322 = vunpack.c.h.b16 %v233
    %v323 = vunpack.c.l.b16 %v234
    %v324 = vunpack.c.l.b16 %v235
    %v325 = vunpack.c.h.b16 %v235
    %v326 = vunpack.c.l.b16 %v236
    %v327 = vunpack.c.l.b16 %v237
    %v328 = vunpack.c.h.b16 %v237
    %v329 = vunpack.c.l.b16 %v238
    %v330 = vunpack.c.l.b16 %v239
    %v331 = vunpack.c.h.b16 %v239
    %v332 = vunpack.c.l.b16 %v240
    %v333 = vunpack.c.l.b16 %v241
    %v334 = vunpack.c.h.b16 %v241
    %v335 = vunpack.c.l.b16 %v242
    %v336 = vunpack.c.l.b16 %v243
    %v337 = vunpack.c.h.b16 %v243
    %v338 = vunpack.c.l.b16 %v244
    %v339 = vunpack.c.l.b16 %v245
    %v340 = vunpack.c.h.b16 %v245
    %v341 = vunpack.c.l.b16 %v246
    %v342 = vunpack.c.l.b16 %v247
    %v343 = vunpack.c.h.b16 %v247
    %v344 = vunpack.c.l.b16 %v248
    %v345 = vunpack.c.l.b16 %v249
    %v346 = vunpack.c.h.b16 %v249
    %v347 = vunpack.c.l.b16 %v250
    %v348 = vpack.c.b16 %v303, %v300
    %v349 = vpack.c.b16 %v304, %v301
    %v350 = vpack.c.b16 %v305, %v302
    %v351 = vpack.c.b16 %v309, %v306
    %v352 = vpack.c.b16 %v310, %v307
    %v353 = vpack.c.b16 %v311, %v308
    %v354 = vpack.c.b16 %v315, %v312
    %v355 = vpack.c.b16 %v316, %v313
    %v356 = vpack.c.b16 %v317, %v314
    %v357 = vpack.c.b16 %v321, %v318
    %v358 = vpack.c.b16 %v322, %v319
    %v359 = vpack.c.b16 %v323, %v320
    %v360 = vpack.c.b16 %v327, %v324
    %v361 = vpack.c.b16 %v328, %v325
    %v362 = vpack.c.b16 %v329, %v326
    %v363 = vpack.c.b16 %v333, %v330
    %v364 = vpack.c.b16 %v334, %v331
    %v365 = vpack.c.b16 %v335, %v332
    %v366 = vpack.c.b16 %v339, %v336
    %v367 = vpack.c.b16 %v340, %v337
    %v368 = vpack.c.b16 %v341, %v338
    %v369 = vpack.c.b16 %v345, %v342
    %v370 = vpack.c.b16 %v346, %v343
    %v371 = vpack.c.b16 %v347, %v344
    %396 = vmatprep.subr.bf16.mxu0 %v349
    %397 = vmatpush1.bf16.msra.mxu0 %v348
    %398 = vmatprep.subr.bf16.mxu0 %v352
    %399 = vmatpush1.bf16.msra.mxu0 %v351
    %400 = vmatprep.subr.bf16.mxu0 %v355
    %401 = vmatpush1.bf16.msra.mxu0 %v354
    %402 = vmatprep.subr.bf16.mxu0 %v358
    %403 = vmatpush1.bf16.msra.mxu0 %v357
    %404 = vmatprep.subr.bf16.mxu0 %v361
    %405 = vmatpush1.bf16.msra.mxu0 %v360
    %406 = vmatprep.subr.bf16.mxu0 %v364
    %407 = vmatpush1.bf16.msra.mxu0 %v363
    %408 = vmatprep.subr.bf16.mxu0 %v367
    %409 = vmatpush1.bf16.msra.mxu0 %v366
    %410 = vmatprep.subr.bf16.mxu0 %v370
    %411 = vmatpush1.bf16.msra.mxu0 %v369
    %412 = vmatprep.subr.bf16.mxu0 0
    %413 = vmatpush1.bf16.msra.mxu0 0
    %414 = vmatprep.subr.bf16.mxu0 0
    %415 = vmatpush1.bf16.msra.mxu0 0
    %416 = vmatprep.subr.bf16.mxu0 0
    %417 = vmatpush1.bf16.msra.mxu0 0
    %418 = vmatprep.subr.bf16.mxu0 0
    %419 = vmatpush1.bf16.msra.mxu0 0
    %420 = vmatprep.subr.bf16.mxu0 0
    %421 = vmatpush1.bf16.msra.mxu0 0
    %422 = vmatprep.subr.bf16.mxu0 0
    %423 = vmatpush1.bf16.msra.mxu0 0
    %424 = vmatprep.subr.bf16.mxu0 0
    %425 = vmatpush1.bf16.msra.mxu0 0
    %426 = vmatprep.subr.bf16.mxu0 0
    %427 = vmatpush1.bf16.msra.mxu0 0
    %428 = vmatprep.mubr.bf16.mxu0 0
    %429 = vmatmul.mubr.bf16.gmra.mrb[0].mxu0 %v218
    %v430 = vpop.f32.mrb[0].mxu0
    %v431 = vadd.f32 %v256, %v430
    %v432 = vpop.f32.mrb[0].mxu0
    %v433 = vadd.f32 %v260, %v432
    %v434 = vpop.f32.mrb[0].mxu0
    %v435 = vadd.f32 %v256, %v434
    %v436 = vpop.f32.mrb[0].mxu0
    %v437 = vadd.f32 %v260, %v436
    %438 = vdwg.mxu0
    %439 = vmatprep.subr.bf16.mxu0 0
    %440 = vmatpush1.bf16.msra.mxu0 %v350
    %441 = vmatprep.subr.bf16.mxu0 0
    %442 = vmatpush1.bf16.msra.mxu0 %v353
    %443 = vmatprep.subr.bf16.mxu0 0
    %444 = vmatpush1.bf16.msra.mxu0 %v356
    %445 = vmatprep.subr.bf16.mxu0 0
    %446 = vmatpush1.bf16.msra.mxu0 %v359
    %447 = vmatprep.subr.bf16.mxu0 0
    %448 = vmatpush1.bf16.msra.mxu0 %v362
    %449 = vmatprep.subr.bf16.mxu0 0
    %450 = vmatpush1.bf16.msra.mxu0 %v365
    %451 = vmatprep.subr.bf16.mxu0 0
    %452 = vmatpush1.bf16.msra.mxu0 %v368
    %453 = vmatprep.subr.bf16.mxu0 0
    %454 = vmatpush1.bf16.msra.mxu0 %v371
    %455 = vmatprep.subr.bf16.mxu0 0
    %456 = vmatpush1.bf16.msra.mxu0 0
    %457 = vmatprep.subr.bf16.mxu0 0
    %458 = vmatpush1.bf16.msra.mxu0 0
    %459 = vmatprep.subr.bf16.mxu0 0
    %460 = vmatpush1.bf16.msra.mxu0 0
    %461 = vmatprep.subr.bf16.mxu0 0
    %462 = vmatpush1.bf16.msra.mxu0 0
    %463 = vmatprep.subr.bf16.mxu0 0
    %464 = vmatpush1.bf16.msra.mxu0 0
    %465 = vmatprep.subr.bf16.mxu0 0
    %466 = vmatpush1.bf16.msra.mxu0 0
    %467 = vmatprep.subr.bf16.mxu0 0
    %468 = vmatpush1.bf16.msra.mxu0 0
    %469 = vmatprep.subr.bf16.mxu0 0
    %470 = vmatpush1.bf16.msra.mxu0 0
    %471 = vmatprep.mubr.bf16.mxu0 0
    %472 = vmatmul.mubr.bf16.gmra.mrb[0].mxu0 %v218
    %v473 = vpop.f32.mrb[0].mxu0
    %v474 = vadd.f32 %v264, %v473
    %v475 = vpop.f32.mrb[0].mxu0
    %v476 = vpop.f32.mrb[0].mxu0
    %v477 = vadd.f32 %v264, %v476
    %v478 = vpop.f32.mrb[0].mxu0
    %479 = vdwg.mxu0
    %v480 = vpack.c.bf16 %v431, %v431
    %v481 = vpack.c.bf16 %v435, %v435
    %v482 = vpack.c.bf16 %v433, %v433
    %v483 = vpack.c.bf16 %v437, %v437
    %v486 = vlaneseq
    %v487 = vshrl.u32 %v486, 7
    %v488 = vsub.s32 0, %v487
    %v489 = vrot.slane %v216, %v488
    %v490 = vlaneseq
    %v491 = vshrl.u32 %v490, 7
    %v492 = vsub.s32 0, %v491
    %v493 = vrot.slane %v217, %v492
    %vm496 = vcmask 261120
    %v498 = vsel %vm496, %v480, 0
    %v501 = vsel %vm496, %v482, 0
    %503 = vmatprep.subr.bf16.mxu0 0
    %504 = vmatpush1.bf16.xpose.msra.mxu0 %v501
    %505 = vmatprep.subr.bf16.mxu0 0
    %506 = vmatpush1.bf16.xpose.msra.mxu0 0
    %507 = vmatprep.subr.bf16.mxu0 0
    %508 = vmatpush1.bf16.xpose.msra.mxu0 0
    %509 = vmatprep.subr.bf16.mxu0 0
    %510 = vmatpush1.bf16.xpose.msra.mxu0 0
    %511 = vmatprep.subr.bf16.mxu0 0
    %512 = vmatpush1.bf16.xpose.msra.mxu0 0
    %513 = vmatprep.subr.bf16.mxu0 0
    %514 = vmatpush1.bf16.xpose.msra.mxu0 0
    %515 = vmatprep.subr.bf16.mxu0 0
    %516 = vmatpush1.bf16.xpose.msra.mxu0 0
    %517 = vmatprep.subr.bf16.mxu0 0
    %518 = vmatpush1.bf16.xpose.msra.mxu0 0
    %519 = vmatprep.subr.bf16.mxu0 0
    %520 = vmatpush1.bf16.xpose.msra.mxu0 0
    %521 = vmatprep.subr.bf16.mxu0 0
    %522 = vmatpush1.bf16.xpose.msra.mxu0 0
    %523 = vmatprep.subr.bf16.mxu0 0
    %524 = vmatpush1.bf16.xpose.msra.mxu0 0
    %525 = vmatprep.subr.bf16.mxu0 0
    %526 = vmatpush1.bf16.xpose.msra.mxu0 0
    %527 = vmatprep.subr.bf16.mxu0 0
    %528 = vmatpush1.bf16.xpose.msra.mxu0 0
    %529 = vmatprep.subr.bf16.mxu0 0
    %530 = vmatpush1.bf16.xpose.msra.mxu0 0
    %531 = vmatprep.subr.bf16.mxu0 0
    %532 = vmatpush1.bf16.xpose.msra.mxu0 0
    %533 = vmatprep.subr.bf16.mxu0 0
    %534 = vmatpush1.bf16.xpose.msra.mxu0 0
    %535 = vmatprep.mubr.bf16.mxu0 0
    %536 = vmatmul.mubr.bf16.gmra.mrb[0].mxu0 %v498
    %v537 = vpop.f32.mrb[0].mxu0
    %v538 = vadd.f32 %v489, %v537
    %v539 = vpop.f32.mrb[0].mxu0
    %v540 = vpop.f32.mrb[0].mxu0
    %v541 = vpop.f32.mrb[0].mxu0
    %542 = vdwg.mxu0
    %v544 = vsel %vm496, %v481, 0
    %v547 = vsel %vm496, %v483, 0
    %549 = vmatprep.subr.bf16.mxu0 0
    %550 = vmatpush1.bf16.xpose.msra.mxu0 %v547
    %551 = vmatprep.subr.bf16.mxu0 0
    %552 = vmatpush1.bf16.xpose.msra.mxu0 0
    %553 = vmatprep.subr.bf16.mxu0 0
    %554 = vmatpush1.bf16.xpose.msra.mxu0 0
    %555 = vmatprep.subr.bf16.mxu0 0
    %556 = vmatpush1.bf16.xpose.msra.mxu0 0
    %557 = vmatprep.subr.bf16.mxu0 0
    %558 = vmatpush1.bf16.xpose.msra.mxu0 0
    %559 = vmatprep.subr.bf16.mxu0 0
    %560 = vmatpush1.bf16.xpose.msra.mxu0 0
    %561 = vmatprep.subr.bf16.mxu0 0
    %562 = vmatpush1.bf16.xpose.msra.mxu0 0
    %563 = vmatprep.subr.bf16.mxu0 0
    %564 = vmatpush1.bf16.xpose.msra.mxu0 0
    %565 = vmatprep.subr.bf16.mxu0 0
    %566 = vmatpush1.bf16.xpose.msra.mxu0 0
    %567 = vmatprep.subr.bf16.mxu0 0
    %568 = vmatpush1.bf16.xpose.msra.mxu0 0
    %569 = vmatprep.subr.bf16.mxu0 0
    %570 = vmatpush1.bf16.xpose.msra.mxu0 0
    %571 = vmatprep.subr.bf16.mxu0 0
    %572 = vmatpush1.bf16.xpose.msra.mxu0 0
    %573 = vmatprep.subr.bf16.mxu0 0
    %574 = vmatpush1.bf16.xpose.msra.mxu0 0
    %575 = vmatprep.subr.bf16.mxu0 0
    %576 = vmatpush1.bf16.xpose.msra.mxu0 0
    %577 = vmatprep.subr.bf16.mxu0 0
    %578 = vmatpush1.bf16.xpose.msra.mxu0 0
    %579 = vmatprep.subr.bf16.mxu0 0
    %580 = vmatpush1.bf16.xpose.msra.mxu0 0
    %581 = vmatprep.mubr.bf16.mxu0 0
    %582 = vmatmul.mubr.bf16.gmra.mrb[0].mxu0 %v544
    %v583 = vpop.f32.mrb[0].mxu0
    %v584 = vadd.f32 %v493, %v583
    %v585 = vpop.f32.mrb[0].mxu0
    %v586 = vpop.f32.mrb[0].mxu0
    %v587 = vpop.f32.mrb[0].mxu0
    %588 = vdwg.mxu0
    %vm589 = vcmask 64512
    %v590 = vsel %vm589, %v538, -inf
    %591 = vmax.xlane.f32.xlu0 %v590
    %v592 = vpop.xlane.xlu0 %591
    %v593 = vsel %vm589, %v584, -inf
    %594 = vmax.xlane.f32.xlu0 %v593
    %v595 = vpop.xlane.xlu0 %594
    %v596 = vsub.f32 %v538, %v592
    %v597 = vsub.f32 %v584, %v595
    %v598 = vmul.f32 %v596, 1.442695
    %v599 = vpow.pop %v598
    %v600 = vmul.f32 %v597, 1.442695
    %v601 = vpow.pop %v600
    %v602 = vsel %vm589, %v599, 0.0
    %603 = vadd.xlane.f32.xlu0 %v602
    %v604 = vpop.xlane.xlu0 %603
    %v605 = vsel %vm589, %v601, 0.0
    %606 = vadd.xlane.f32.xlu0 %v605
    %v607 = vpop.xlane.xlu0 %606
    %v608 = vrcp.pop %v604
    %v609 = vrcp.pop %v607
    %v610 = vmul.f32 %v599, %v608
    %v611 = vmul.f32 %v601, %v609
    %v612 = vpack.c.bf16 %v610, %v610
    %v613 = vpack.c.bf16 %v611, %v611
    %v614 = vpack.c.bf16 %v474, %v474
    %v615 = vpack.c.bf16 %v477, %v477
    %v617 = vsel %vm589, %v612, 0
    %vm619 = vcmask 1043456
    %v621 = vsel %vm619, %v614, 0
    %623 = vmatprep.subr.bf16.mxu0 0
    %624 = vmatpush1.bf16.msra.mxu0 %v621
    %625 = vmatprep.subr.bf16.mxu0 0
    %626 = vmatpush1.bf16.msra.mxu0 0
    %627 = vmatprep.subr.bf16.mxu0 0
    %628 = vmatpush1.bf16.msra.mxu0 0
    %629 = vmatprep.subr.bf16.mxu0 0
    %630 = vmatpush1.bf16.msra.mxu0 0
    %631 = vmatprep.subr.bf16.mxu0 0
    %632 = vmatpush1.bf16.msra.mxu0 0
    %633 = vmatprep.subr.bf16.mxu0 0
    %634 = vmatpush1.bf16.msra.mxu0 0
    %635 = vmatprep.subr.bf16.mxu0 0
    %636 = vmatpush1.bf16.msra.mxu0 0
    %637 = vmatprep.subr.bf16.mxu0 0
    %638 = vmatpush1.bf16.msra.mxu0 0
    %639 = vmatprep.subr.bf16.mxu0 0
    %640 = vmatpush1.bf16.msra.mxu0 0
    %641 = vmatprep.subr.bf16.mxu0 0
    %642 = vmatpush1.bf16.msra.mxu0 0
    %643 = vmatprep.subr.bf16.mxu0 0
    %644 = vmatpush1.bf16.msra.mxu0 0
    %645 = vmatprep.subr.bf16.mxu0 0
    %646 = vmatpush1.bf16.msra.mxu0 0
    %647 = vmatprep.subr.bf16.mxu0 0
    %648 = vmatpush1.bf16.msra.mxu0 0
    %649 = vmatprep.subr.bf16.mxu0 0
    %650 = vmatpush1.bf16.msra.mxu0 0
    %651 = vmatprep.subr.bf16.mxu0 0
    %652 = vmatpush1.bf16.msra.mxu0 0
    %653 = vmatprep.subr.bf16.mxu0 0
    %654 = vmatpush1.bf16.msra.mxu0 0
    %655 = vmatprep.mubr.bf16.mxu0 0
    %656 = vmatmul.mubr.bf16.gmra.mrb[0].mxu0 %v617
    %v657 = vpop.f32.mrb[0].mxu0
    %v658 = vadd.f32 0.0, %v657
    %v659 = vpop.f32.mrb[0].mxu0
    %v660 = vpop.f32.mrb[0].mxu0
    %v661 = vpop.f32.mrb[0].mxu0
    %662 = vdwg.mxu0
    %v664 = vsel %vm589, %v613, 0
    %v667 = vsel %vm619, %v615, 0
    %669 = vmatprep.subr.bf16.mxu0 0
    %670 = vmatpush1.bf16.msra.mxu0 %v667
    %671 = vmatprep.subr.bf16.mxu0 0
    %672 = vmatpush1.bf16.msra.mxu0 0
    %673 = vmatprep.subr.bf16.mxu0 0
    %674 = vmatpush1.bf16.msra.mxu0 0
    %675 = vmatprep.subr.bf16.mxu0 0
    %676 = vmatpush1.bf16.msra.mxu0 0
    %677 = vmatprep.subr.bf16.mxu0 0
    %678 = vmatpush1.bf16.msra.mxu0 0
    %679 = vmatprep.subr.bf16.mxu0 0
    %680 = vmatpush1.bf16.msra.mxu0 0
    %681 = vmatprep.subr.bf16.mxu0 0
    %682 = vmatpush1.bf16.msra.mxu0 0
    %683 = vmatprep.subr.bf16.mxu0 0
    %684 = vmatpush1.bf16.msra.mxu0 0
    %685 = vmatprep.subr.bf16.mxu0 0
    %686 = vmatpush1.bf16.msra.mxu0 0
    %687 = vmatprep.subr.bf16.mxu0 0
    %688 = vmatpush1.bf16.msra.mxu0 0
    %689 = vmatprep.subr.bf16.mxu0 0
    %690 = vmatpush1.bf16.msra.mxu0 0
    %691 = vmatprep.subr.bf16.mxu0 0
    %692 = vmatpush1.bf16.msra.mxu0 0
    %693 = vmatprep.subr.bf16.mxu0 0
    %694 = vmatpush1.bf16.msra.mxu0 0
    %695 = vmatprep.subr.bf16.mxu0 0
    %696 = vmatpush1.bf16.msra.mxu0 0
    %697 = vmatprep.subr.bf16.mxu0 0
    %698 = vmatpush1.bf16.msra.mxu0 0
    %699 = vmatprep.subr.bf16.mxu0 0
    %700 = vmatpush1.bf16.msra.mxu0 0
    %701 = vmatprep.mubr.bf16.mxu0 0
    %702 = vmatmul.mubr.bf16.gmra.mrb[0].mxu0 %v664
    %v703 = vpop.f32.mrb[0].mxu0
    %v704 = vadd.f32 0.0, %v703
    %v705 = vpop.f32.mrb[0].mxu0
    %v706 = vpop.f32.mrb[0].mxu0
    %v707 = vpop.f32.mrb[0].mxu0
    %708 = vdwg.mxu0
    %709 = vst.msk [vmem:[#allocation2] sm:$0xff] %vm496, %v658
    %710 = vst.msk [vmem:[#allocation2 + $0x8] sm:$0xff] %vm496, %v704
    %712 = vrot.lane.b32.xlu0 %v480, 96
    %v713 = vpop.permute.xlu0 %712
    %715 = vrot.lane.b32.xlu0 %v482, 96
    %v716 = vpop.permute.xlu0 %715
    %v718 = vsel %vm496, %v713, 0
    %v721 = vsel %vm496, %v716, 0
    %723 = vmatprep.subr.bf16.mxu0 0
    %724 = vmatpush1.bf16.xpose.msra.mxu0 %v721
    %725 = vmatprep.subr.bf16.mxu0 0
    %726 = vmatpush1.bf16.xpose.msra.mxu0 0
    %727 = vmatprep.subr.bf16.mxu0 0
    %728 = vmatpush1.bf16.xpose.msra.mxu0 0
    %729 = vmatprep.subr.bf16.mxu0 0
    %730 = vmatpush1.bf16.xpose.msra.mxu0 0
    %731 = vmatprep.subr.bf16.mxu0 0
    %732 = vmatpush1.bf16.xpose.msra.mxu0 0
    %733 = vmatprep.subr.bf16.mxu0 0
    %734 = vmatpush1.bf16.xpose.msra.mxu0 0
    %735 = vmatprep.subr.bf16.mxu0 0
    %736 = vmatpush1.bf16.xpose.msra.mxu0 0
    %737 = vmatprep.subr.bf16.mxu0 0
    %738 = vmatpush1.bf16.xpose.msra.mxu0 0
    %739 = vmatprep.subr.bf16.mxu0 0
    %740 = vmatpush1.bf16.xpose.msra.mxu0 0
    %741 = vmatprep.subr.bf16.mxu0 0
    %742 = vmatpush1.bf16.xpose.msra.mxu0 0
    %743 = vmatprep.subr.bf16.mxu0 0
    %744 = vmatpush1.bf16.xpose.msra.mxu0 0
    %745 = vmatprep.subr.bf16.mxu0 0
    %746 = vmatpush1.bf16.xpose.msra.mxu0 0
    %747 = vmatprep.subr.bf16.mxu0 0
    %748 = vmatpush1.bf16.xpose.msra.mxu0 0
    %749 = vmatprep.subr.bf16.mxu0 0
    %750 = vmatpush1.bf16.xpose.msra.mxu0 0
    %751 = vmatprep.subr.bf16.mxu0 0
    %752 = vmatpush1.bf16.xpose.msra.mxu0 0
    %753 = vmatprep.subr.bf16.mxu0 0
    %754 = vmatpush1.bf16.xpose.msra.mxu0 0
    %755 = vmatprep.mubr.bf16.mxu0 0
    %756 = vmatmul.mubr.bf16.gmra.mrb[0].mxu0 %v718
    %v757 = vpop.f32.mrb[0].mxu0
    %v758 = vadd.f32 %v489, %v757
    %v759 = vpop.f32.mrb[0].mxu0
    %v760 = vpop.f32.mrb[0].mxu0
    %v761 = vpop.f32.mrb[0].mxu0
    %762 = vdwg.mxu0
    %764 = vrot.lane.b32.xlu0 %v481, 96
    %v765 = vpop.permute.xlu0 %764
    %767 = vrot.lane.b32.xlu0 %v483, 96
    %v768 = vpop.permute.xlu0 %767
    %v770 = vsel %vm496, %v765, 0
    %v773 = vsel %vm496, %v768, 0
    %775 = vmatprep.subr.bf16.mxu0 0
    %776 = vmatpush1.bf16.xpose.msra.mxu0 %v773
    %777 = vmatprep.subr.bf16.mxu0 0
    %778 = vmatpush1.bf16.xpose.msra.mxu0 0
    %779 = vmatprep.subr.bf16.mxu0 0
    %780 = vmatpush1.bf16.xpose.msra.mxu0 0
    %781 = vmatprep.subr.bf16.mxu0 0
    %782 = vmatpush1.bf16.xpose.msra.mxu0 0
    %783 = vmatprep.subr.bf16.mxu0 0
    %784 = vmatpush1.bf16.xpose.msra.mxu0 0
    %785 = vmatprep.subr.bf16.mxu0 0
    %786 = vmatpush1.bf16.xpose.msra.mxu0 0
    %787 = vmatprep.subr.bf16.mxu0 0
    %788 = vmatpush1.bf16.xpose.msra.mxu0 0
    %789 = vmatprep.subr.bf16.mxu0 0
    %790 = vmatpush1.bf16.xpose.msra.mxu0 0
    %791 = vmatprep.subr.bf16.mxu0 0
    %792 = vmatpush1.bf16.xpose.msra.mxu0 0
    %793 = vmatprep.subr.bf16.mxu0 0
    %794 = vmatpush1.bf16.xpose.msra.mxu0 0
    %795 = vmatprep.subr.bf16.mxu0 0
    %796 = vmatpush1.bf16.xpose.msra.mxu0 0
    %797 = vmatprep.subr.bf16.mxu0 0
    %798 = vmatpush1.bf16.xpose.msra.mxu0 0
    %799 = vmatprep.subr.bf16.mxu0 0
    %800 = vmatpush1.bf16.xpose.msra.mxu0 0
    %801 = vmatprep.subr.bf16.mxu0 0
    %802 = vmatpush1.bf16.xpose.msra.mxu0 0
    %803 = vmatprep.subr.bf16.mxu0 0
    %804 = vmatpush1.bf16.xpose.msra.mxu0 0
    %805 = vmatprep.subr.bf16.mxu0 0
    %806 = vmatpush1.bf16.xpose.msra.mxu0 0
    %807 = vmatprep.mubr.bf16.mxu0 0
    %808 = vmatmul.mubr.bf16.gmra.mrb[0].mxu0 %v770
    %v809 = vpop.f32.mrb[0].mxu0
    %v810 = vadd.f32 %v493, %v809
    %v811 = vpop.f32.mrb[0].mxu0
    %v812 = vpop.f32.mrb[0].mxu0
    %v813 = vpop.f32.mrb[0].mxu0
    %814 = vdwg.mxu0
    %v815 = vsel %vm589, %v758, -inf
    %816 = vmax.xlane.f32.xlu0 %v815
    %v817 = vpop.xlane.xlu0 %816
    %v818 = vsel %vm589, %v810, -inf
    %819 = vmax.xlane.f32.xlu0 %v818
    %v820 = vpop.xlane.xlu0 %819
    %v821 = vsub.f32 %v758, %v817
    %v822 = vsub.f32 %v810, %v820
    %v823 = vmul.f32 %v821, 1.442695
    %v824 = vpow.pop %v823
    %v825 = vmul.f32 %v822, 1.442695
    %v826 = vpow.pop %v825
    %v827 = vsel %vm589, %v824, 0.0
    %828 = vadd.xlane.f32.xlu0 %v827
    %v829 = vpop.xlane.xlu0 %828
    %v830 = vsel %vm589, %v826, 0.0
    %831 = vadd.xlane.f32.xlu0 %v830
    %v832 = vpop.xlane.xlu0 %831
    %v833 = vrcp.pop %v829
    %v834 = vrcp.pop %v832
    %v835 = vmul.f32 %v824, %v833
    %v836 = vmul.f32 %v826, %v834
    %v837 = vpack.c.bf16 %v835, %v835
    %v838 = vpack.c.bf16 %v836, %v836
    %840 = vrot.lane.b32.xlu0 %v614, 96
    %v841 = vpop.permute.xlu0 %840
    %v843 = vsel %vm589, %v837, 0
    %v846 = vsel %vm619, %v841, 0
    %848 = vmatprep.subr.bf16.mxu0 0
    %849 = vmatpush1.bf16.msra.mxu0 %v846
    %850 = vmatprep.subr.bf16.mxu0 0
    %851 = vmatpush1.bf16.msra.mxu0 0
    %852 = vmatprep.subr.bf16.mxu0 0
    %853 = vmatpush1.bf16.msra.mxu0 0
    %854 = vmatprep.subr.bf16.mxu0 0
    %855 = vmatpush1.bf16.msra.mxu0 0
    %856 = vmatprep.subr.bf16.mxu0 0
    %857 = vmatpush1.bf16.msra.mxu0 0
    %858 = vmatprep.subr.bf16.mxu0 0
    %859 = vmatpush1.bf16.msra.mxu0 0
    %860 = vmatprep.subr.bf16.mxu0 0
    %861 = vmatpush1.bf16.msra.mxu0 0
    %862 = vmatprep.subr.bf16.mxu0 0
    %863 = vmatpush1.bf16.msra.mxu0 0
    %864 = vmatprep.subr.bf16.mxu0 0
    %865 = vmatpush1.bf16.msra.mxu0 0
    %866 = vmatprep.subr.bf16.mxu0 0
    %867 = vmatpush1.bf16.msra.mxu0 0
    %868 = vmatprep.subr.bf16.mxu0 0
    %869 = vmatpush1.bf16.msra.mxu0 0
    %870 = vmatprep.subr.bf16.mxu0 0
    %871 = vmatpush1.bf16.msra.mxu0 0
    %872 = vmatprep.subr.bf16.mxu0 0
    %873 = vmatpush1.bf16.msra.mxu0 0
    %874 = vmatprep.subr.bf16.mxu0 0
    %875 = vmatpush1.bf16.msra.mxu0 0
    %876 = vmatprep.subr.bf16.mxu0 0
    %877 = vmatpush1.bf16.msra.mxu0 0
    %878 = vmatprep.subr.bf16.mxu0 0
    %879 = vmatpush1.bf16.msra.mxu0 0
    %880 = vmatprep.mubr.bf16.mxu0 0
    %881 = vmatmul.mubr.bf16.gmra.mrb[0].mxu0 %v843
    %v882 = vpop.f32.mrb[0].mxu0
    %v883 = vadd.f32 0.0, %v882
    %v884 = vpop.f32.mrb[0].mxu0
    %v885 = vpop.f32.mrb[0].mxu0
    %v886 = vpop.f32.mrb[0].mxu0
    %887 = vdwg.mxu0
    %889 = vrot.lane.b32.xlu0 %v615, 96
    %v890 = vpop.permute.xlu0 %889
    %v892 = vsel %vm589, %v838, 0
    %v895 = vsel %vm619, %v890, 0
    %897 = vmatprep.subr.bf16.mxu0 0
    %898 = vmatpush1.bf16.msra.mxu0 %v895
    %899 = vmatprep.subr.bf16.mxu0 0
    %900 = vmatpush1.bf16.msra.mxu0 0
    %901 = vmatprep.subr.bf16.mxu0 0
    %902 = vmatpush1.bf16.msra.mxu0 0
    %903 = vmatprep.subr.bf16.mxu0 0
    %904 = vmatpush1.bf16.msra.mxu0 0
    %905 = vmatprep.subr.bf16.mxu0 0
    %906 = vmatpush1.bf16.msra.mxu0 0
    %907 = vmatprep.subr.bf16.mxu0 0
    %908 = vmatpush1.bf16.msra.mxu0 0
    %909 = vmatprep.subr.bf16.mxu0 0
    %910 = vmatpush1.bf16.msra.mxu0 0
    %911 = vmatprep.subr.bf16.mxu0 0
    %912 = vmatpush1.bf16.msra.mxu0 0
    %913 = vmatprep.subr.bf16.mxu0 0
    %914 = vmatpush1.bf16.msra.mxu0 0
    %915 = vmatprep.subr.bf16.mxu0 0
    %916 = vmatpush1.bf16.msra.mxu0 0
    %917 = vmatprep.subr.bf16.mxu0 0
    %918 = vmatpush1.bf16.msra.mxu0 0
    %919 = vmatprep.subr.bf16.mxu0 0
    %920 = vmatpush1.bf16.msra.mxu0 0
    %921 = vmatprep.subr.bf16.mxu0 0
    %922 = vmatpush1.bf16.msra.mxu0 0
    %923 = vmatprep.subr.bf16.mxu0 0
    %924 = vmatpush1.bf16.msra.mxu0 0
    %925 = vmatprep.subr.bf16.mxu0 0
    %926 = vmatpush1.bf16.msra.mxu0 0
    %927 = vmatprep.subr.bf16.mxu0 0
    %928 = vmatpush1.bf16.msra.mxu0 0
    %929 = vmatprep.mubr.bf16.mxu0 0
    %930 = vmatmul.mubr.bf16.gmra.mrb[0].mxu0 %v892
    %v931 = vpop.f32.mrb[0].mxu0
    %v932 = vadd.f32 0.0, %v931
    %v933 = vpop.f32.mrb[0].mxu0
    %v934 = vpop.f32.mrb[0].mxu0
    %v935 = vpop.f32.mrb[0].mxu0
    %936 = vdwg.mxu0
    %939 = vrot.lane.b32.xlu0 %v883, 32
    %v940 = vpop.permute.xlu0 %939
    %941 = vrot.lane.b32.xlu0 %v932, 32
    %v942 = vpop.permute.xlu0 %941
    %vm945 = vcmask 523520
    %946 = vst.msk [vmem:[#allocation2] sm:$0xff] %vm945, %v940
    %947 = vst.msk [vmem:[#allocation2 + $0x8] sm:$0xff] %vm945, %v942
    %948 = vrot.lane.b32.xlu0 %v480, 64
    %v949 = vpop.permute.xlu0 %948
    %950 = vrot.lane.b32.xlu0 %v482, 64
    %v951 = vpop.permute.xlu0 %950
    %v953 = vsel %vm496, %v949, 0
    %v956 = vsel %vm496, %v951, 0
    %958 = vmatprep.subr.bf16.mxu0 0
    %959 = vmatpush1.bf16.xpose.msra.mxu0 %v956
    %960 = vmatprep.subr.bf16.mxu0 0
    %961 = vmatpush1.bf16.xpose.msra.mxu0 0
    %962 = vmatprep.subr.bf16.mxu0 0
    %963 = vmatpush1.bf16.xpose.msra.mxu0 0
    %964 = vmatprep.subr.bf16.mxu0 0
    %965 = vmatpush1.bf16.xpose.msra.mxu0 0
    %966 = vmatprep.subr.bf16.mxu0 0
    %967 = vmatpush1.bf16.xpose.msra.mxu0 0
    %968 = vmatprep.subr.bf16.mxu0 0
    %969 = vmatpush1.bf16.xpose.msra.mxu0 0
    %970 = vmatprep.subr.bf16.mxu0 0
    %971 = vmatpush1.bf16.xpose.msra.mxu0 0
    %972 = vmatprep.subr.bf16.mxu0 0
    %973 = vmatpush1.bf16.xpose.msra.mxu0 0
    %974 = vmatprep.subr.bf16.mxu0 0
    %975 = vmatpush1.bf16.xpose.msra.mxu0 0
    %976 = vmatprep.subr.bf16.mxu0 0
    %977 = vmatpush1.bf16.xpose.msra.mxu0 0
    %978 = vmatprep.subr.bf16.mxu0 0
    %979 = vmatpush1.bf16.xpose.msra.mxu0 0
    %980 = vmatprep.subr.bf16.mxu0 0
    %981 = vmatpush1.bf16.xpose.msra.mxu0 0
    %982 = vmatprep.subr.bf16.mxu0 0
    %983 = vmatpush1.bf16.xpose.msra.mxu0 0
    %984 = vmatprep.subr.bf16.mxu0 0
    %985 = vmatpush1.bf16.xpose.msra.mxu0 0
    %986 = vmatprep.subr.bf16.mxu0 0
    %987 = vmatpush1.bf16.xpose.msra.mxu0 0
    %988 = vmatprep.subr.bf16.mxu0 0
    %989 = vmatpush1.bf16.xpose.msra.mxu0 0
    %990 = vmatprep.mubr.bf16.mxu0 0
    %991 = vmatmul.mubr.bf16.gmra.mrb[0].mxu0 %v953
    %v992 = vpop.f32.mrb[0].mxu0
    %v993 = vadd.f32 %v489, %v992
    %v994 = vpop.f32.mrb[0].mxu0
    %v995 = vpop.f32.mrb[0].mxu0
    %v996 = vpop.f32.mrb[0].mxu0
    %997 = vdwg.mxu0
    %998 = vrot.lane.b32.xlu0 %v481, 64
    %v999 = vpop.permute.xlu0 %998
    %1000 = vrot.lane.b32.xlu0 %v483, 64
    %v1001 = vpop.permute.xlu0 %1000
    %v1003 = vsel %vm496, %v999, 0
    %v1006 = vsel %vm496, %v1001, 0
    %1008 = vmatprep.subr.bf16.mxu0 0
    %1009 = vmatpush1.bf16.xpose.msra.mxu0 %v1006
    %1010 = vmatprep.subr.bf16.mxu0 0
    %1011 = vmatpush1.bf16.xpose.msra.mxu0 0
    %1012 = vmatprep.subr.bf16.mxu0 0
    %1013 = vmatpush1.bf16.xpose.msra.mxu0 0
    %1014 = vmatprep.subr.bf16.mxu0 0
    %1015 = vmatpush1.bf16.xpose.msra.mxu0 0
    %1016 = vmatprep.subr.bf16.mxu0 0
    %1017 = vmatpush1.bf16.xpose.msra.mxu0 0
    %1018 = vmatprep.subr.bf16.mxu0 0
    %1019 = vmatpush1.bf16.xpose.msra.mxu0 0
    %1020 = vmatprep.subr.bf16.mxu0 0
    %1021 = vmatpush1.bf16.xpose.msra.mxu0 0
    %1022 = vmatprep.subr.bf16.mxu0 0
    %1023 = vmatpush1.bf16.xpose.msra.mxu0 0
    %1024 = vmatprep.subr.bf16.mxu0 0
    %1025 = vmatpush1.bf16.xpose.msra.mxu0 0
    %1026 = vmatprep.subr.bf16.mxu0 0
    %1027 = vmatpush1.bf16.xpose.msra.mxu0 0
    %1028 = vmatprep.subr.bf16.mxu0 0
    %1029 = vmatpush1.bf16.xpose.msra.mxu0 0
    %1030 = vmatprep.subr.bf16.mxu0 0
    %1031 = vmatpush1.bf16.xpose.msra.mxu0 0
    %1032 = vmatprep.subr.bf16.mxu0 0
    %1033 = vmatpush1.bf16.xpose.msra.mxu0 0
    %1034 = vmatprep.subr.bf16.mxu0 0
    %1035 = vmatpush1.bf16.xpose.msra.mxu0 0
    %1036 = vmatprep.subr.bf16.mxu0 0
    %1037 = vmatpush1.bf16.xpose.msra.mxu0 0
    %1038 = vmatprep.subr.bf16.mxu0 0
    %1039 = vmatpush1.bf16.xpose.msra.mxu0 0
    %1040 = vmatprep.mubr.bf16.mxu0 0
    %1041 = vmatmul.mubr.bf16.gmra.mrb[0].mxu0 %v1003
    %v1042 = vpop.f32.mrb[0].mxu0
    %v1043 = vadd.f32 %v493, %v1042
    %v1044 = vpop.f32.mrb[0].mxu0
    %v1045 = vpop.f32.mrb[0].mxu0
    %v1046 = vpop.f32.mrb[0].mxu0
    %1047 = vdwg.mxu0
    %v1048 = vsel %vm589, %v993, -inf
    %1049 = vmax.xlane.f32.xlu0 %v1048
    %v1050 = vpop.xlane.xlu0 %1049
    %v1051 = vsel %vm589, %v1043, -inf
    %1052 = vmax.xlane.f32.xlu0 %v1051
    %v1053 = vpop.xlane.xlu0 %1052
    %v1054 = vsub.f32 %v993, %v1050
    %v1055 = vsub.f32 %v1043, %v1053
    %v1056 = vmul.f32 %v1054, 1.442695
    %v1057 = vpow.pop %v1056
    %v1058 = vmul.f32 %v1055, 1.442695
    %v1059 = vpow.pop %v1058
    %v1060 = vsel %vm589, %v1057, 0.0
    %1061 = vadd.xlane.f32.xlu0 %v1060
    %v1062 = vpop.xlane.xlu0 %1061
    %v1063 = vsel %vm589, %v1059, 0.0
    %1064 = vadd.xlane.f32.xlu0 %v1063
    %v1065 = vpop.xlane.xlu0 %1064
    %v1066 = vrcp.pop %v1062
    %v1067 = vrcp.pop %v1065
    %v1068 = vmul.f32 %v1057, %v1066
    %v1069 = vmul.f32 %v1059, %v1067
    %v1070 = vpack.c.bf16 %v1068, %v1068
    %v1071 = vpack.c.bf16 %v1069, %v1069
    %1072 = vrot.lane.b32.xlu0 %v614, 64
    %v1073 = vpop.permute.xlu0 %1072
    %v1075 = vsel %vm589, %v1070, 0
    %v1078 = vsel %vm619, %v1073, 0
    %1080 = vmatprep.subr.bf16.mxu0 0
    %1081 = vmatpush1.bf16.msra.mxu0 %v1078
    %1082 = vmatprep.subr.bf16.mxu0 0
    %1083 = vmatpush1.bf16.msra.mxu0 0
    %1084 = vmatprep.subr.bf16.mxu0 0
    %1085 = vmatpush1.bf16.msra.mxu0 0
    %1086 = vmatprep.subr.bf16.mxu0 0
    %1087 = vmatpush1.bf16.msra.mxu0 0
    %1088 = vmatprep.subr.bf16.mxu0 0
    %1089 = vmatpush1.bf16.msra.mxu0 0
    %1090 = vmatprep.subr.bf16.mxu0 0
    %1091 = vmatpush1.bf16.msra.mxu0 0
    %1092 = vmatprep.subr.bf16.mxu0 0
    %1093 = vmatpush1.bf16.msra.mxu0 0
    %1094 = vmatprep.subr.bf16.mxu0 0
    %1095 = vmatpush1.bf16.msra.mxu0 0
    %1096 = vmatprep.subr.bf16.mxu0 0
    %1097 = vmatpush1.bf16.msra.mxu0 0
    %1098 = vmatprep.subr.bf16.mxu0 0
    %1099 = vmatpush1.bf16.msra.mxu0 0
    %1100 = vmatprep.subr.bf16.mxu0 0
    %1101 = vmatpush1.bf16.msra.mxu0 0
    %1102 = vmatprep.subr.bf16.mxu0 0
    %1103 = vmatpush1.bf16.msra.mxu0 0
    %1104 = vmatprep.subr.bf16.mxu0 0
    %1105 = vmatpush1.bf16.msra.mxu0 0
    %1106 = vmatprep.subr.bf16.mxu0 0
    %1107 = vmatpush1.bf16.msra.mxu0 0
    %1108 = vmatprep.subr.bf16.mxu0 0
    %1109 = vmatpush1.bf16.msra.mxu0 0
    %1110 = vmatprep.subr.bf16.mxu0 0
    %1111 = vmatpush1.bf16.msra.mxu0 0
    %1112 = vmatprep.mubr.bf16.mxu0 0
    %1113 = vmatmul.mubr.bf16.gmra.mrb[0].mxu0 %v1075
    %v1114 = vpop.f32.mrb[0].mxu0
    %v1115 = vadd.f32 0.0, %v1114
    %v1116 = vpop.f32.mrb[0].mxu0
    %v1117 = vpop.f32.mrb[0].mxu0
    %v1118 = vpop.f32.mrb[0].mxu0
    %1119 = vdwg.mxu0
    %1120 = vrot.lane.b32.xlu0 %v615, 64
    %v1121 = vpop.permute.xlu0 %1120
    %v1123 = vsel %vm589, %v1071, 0
    %v1126 = vsel %vm619, %v1121, 0
    %1128 = vmatprep.subr.bf16.mxu0 0
    %1129 = vmatpush1.bf16.msra.mxu0 %v1126
    %1130 = vmatprep.subr.bf16.mxu0 0
    %1131 = vmatpush1.bf16.msra.mxu0 0
    %1132 = vmatprep.subr.bf16.mxu0 0
    %1133 = vmatpush1.bf16.msra.mxu0 0
    %1134 = vmatprep.subr.bf16.mxu0 0
    %1135 = vmatpush1.bf16.msra.mxu0 0
    %1136 = vmatprep.subr.bf16.mxu0 0
    %1137 = vmatpush1.bf16.msra.mxu0 0
    %1138 = vmatprep.subr.bf16.mxu0 0
    %1139 = vmatpush1.bf16.msra.mxu0 0
    %1140 = vmatprep.subr.bf16.mxu0 0
    %1141 = vmatpush1.bf16.msra.mxu0 0
    %1142 = vmatprep.subr.bf16.mxu0 0
    %1143 = vmatpush1.bf16.msra.mxu0 0
    %1144 = vmatprep.subr.bf16.mxu0 0
    %1145 = vmatpush1.bf16.msra.mxu0 0
    %1146 = vmatprep.subr.bf16.mxu0 0
    %1147 = vmatpush1.bf16.msra.mxu0 0
    %1148 = vmatprep.subr.bf16.mxu0 0
    %1149 = vmatpush1.bf16.msra.mxu0 0
    %1150 = vmatprep.subr.bf16.mxu0 0
    %1151 = vmatpush1.bf16.msra.mxu0 0
    %1152 = vmatprep.subr.bf16.mxu0 0
    %1153 = vmatpush1.bf16.msra.mxu0 0
    %1154 = vmatprep.subr.bf16.mxu0 0
    %1155 = vmatpush1.bf16.msra.mxu0 0
    %1156 = vmatprep.subr.bf16.mxu0 0
    %1157 = vmatpush1.bf16.msra.mxu0 0
    %1158 = vmatprep.subr.bf16.mxu0 0
    %1159 = vmatpush1.bf16.msra.mxu0 0
    %1160 = vmatprep.mubr.bf16.mxu0 0
    %1161 = vmatmul.mubr.bf16.gmra.mrb[0].mxu0 %v1123
    %v1162 = vpop.f32.mrb[0].mxu0
    %v1163 = vadd.f32 0.0, %v1162
    %v1164 = vpop.f32.mrb[0].mxu0
    %v1165 = vpop.f32.mrb[0].mxu0
    %v1166 = vpop.f32.mrb[0].mxu0
    %1167 = vdwg.mxu0
    %1170 = vrot.lane.b32.xlu0 %v1115, 64
    %v1171 = vpop.permute.xlu0 %1170
    %1172 = vrot.lane.b32.xlu0 %v1163, 64
    %v1173 = vpop.permute.xlu0 %1172
    %vm1176 = vcmask 785920
    %1177 = vst.msk [vmem:[#allocation2] sm:$0xff] %vm1176, %v1171
    %1178 = vst.msk [vmem:[#allocation2 + $0x8] sm:$0xff] %vm1176, %v1173
    %1179 = vrot.lane.b32.xlu0 %v480, 32
    %v1180 = vpop.permute.xlu0 %1179
    %1181 = vrot.lane.b32.xlu0 %v482, 32
    %v1182 = vpop.permute.xlu0 %1181
    %v1184 = vsel %vm496, %v1180, 0
    %v1187 = vsel %vm496, %v1182, 0
    %1189 = vmatprep.subr.bf16.mxu0 0
    %1190 = vmatpush1.bf16.xpose.msra.mxu0 %v1187
    %1191 = vmatprep.subr.bf16.mxu0 0
    %1192 = vmatpush1.bf16.xpose.msra.mxu0 0
    %1193 = vmatprep.subr.bf16.mxu0 0
    %1194 = vmatpush1.bf16.xpose.msra.mxu0 0
    %1195 = vmatprep.subr.bf16.mxu0 0
    %1196 = vmatpush1.bf16.xpose.msra.mxu0 0
    %1197 = vmatprep.subr.bf16.mxu0 0
    %1198 = vmatpush1.bf16.xpose.msra.mxu0 0
    %1199 = vmatprep.subr.bf16.mxu0 0
    %1200 = vmatpush1.bf16.xpose.msra.mxu0 0
    %1201 = vmatprep.subr.bf16.mxu0 0
    %1202 = vmatpush1.bf16.xpose.msra.mxu0 0
    %1203 = vmatprep.subr.bf16.mxu0 0
    %1204 = vmatpush1.bf16.xpose.msra.mxu0 0
    %1205 = vmatprep.subr.bf16.mxu0 0
    %1206 = vmatpush1.bf16.xpose.msra.mxu0 0
    %1207 = vmatprep.subr.bf16.mxu0 0
    %1208 = vmatpush1.bf16.xpose.msra.mxu0 0
    %1209 = vmatprep.subr.bf16.mxu0 0
    %1210 = vmatpush1.bf16.xpose.msra.mxu0 0
    %1211 = vmatprep.subr.bf16.mxu0 0
    %1212 = vmatpush1.bf16.xpose.msra.mxu0 0
    %1213 = vmatprep.subr.bf16.mxu0 0
    %1214 = vmatpush1.bf16.xpose.msra.mxu0 0
    %1215 = vmatprep.subr.bf16.mxu0 0
    %1216 = vmatpush1.bf16.xpose.msra.mxu0 0
    %1217 = vmatprep.subr.bf16.mxu0 0
    %1218 = vmatpush1.bf16.xpose.msra.mxu0 0
    %1219 = vmatprep.subr.bf16.mxu0 0
    %1220 = vmatpush1.bf16.xpose.msra.mxu0 0
    %1221 = vmatprep.mubr.bf16.mxu0 0
    %1222 = vmatmul.mubr.bf16.gmra.mrb[0].mxu0 %v1184
    %v1223 = vpop.f32.mrb[0].mxu0
    %v1224 = vadd.f32 %v489, %v1223
    %v1225 = vpop.f32.mrb[0].mxu0
    %v1226 = vpop.f32.mrb[0].mxu0
    %v1227 = vpop.f32.mrb[0].mxu0
    %1228 = vdwg.mxu0
    %1229 = vrot.lane.b32.xlu0 %v481, 32
    %v1230 = vpop.permute.xlu0 %1229
    %1231 = vrot.lane.b32.xlu0 %v483, 32
    %v1232 = vpop.permute.xlu0 %1231
    %v1234 = vsel %vm496, %v1230, 0
    %v1237 = vsel %vm496, %v1232, 0
    %1239 = vmatprep.subr.bf16.mxu0 0
    %1240 = vmatpush1.bf16.xpose.msra.mxu0 %v1237
    %1241 = vmatprep.subr.bf16.mxu0 0
    %1242 = vmatpush1.bf16.xpose.msra.mxu0 0
    %1243 = vmatprep.subr.bf16.mxu0 0
    %1244 = vmatpush1.bf16.xpose.msra.mxu0 0
    %1245 = vmatprep.subr.bf16.mxu0 0
    %1246 = vmatpush1.bf16.xpose.msra.mxu0 0
    %1247 = vmatprep.subr.bf16.mxu0 0
    %1248 = vmatpush1.bf16.xpose.msra.mxu0 0
    %1249 = vmatprep.subr.bf16.mxu0 0
    %1250 = vmatpush1.bf16.xpose.msra.mxu0 0
    %1251 = vmatprep.subr.bf16.mxu0 0
    %1252 = vmatpush1.bf16.xpose.msra.mxu0 0
    %1253 = vmatprep.subr.bf16.mxu0 0
    %1254 = vmatpush1.bf16.xpose.msra.mxu0 0
    %1255 = vmatprep.subr.bf16.mxu0 0
    %1256 = vmatpush1.bf16.xpose.msra.mxu0 0
    %1257 = vmatprep.subr.bf16.mxu0 0
    %1258 = vmatpush1.bf16.xpose.msra.mxu0 0
    %1259 = vmatprep.subr.bf16.mxu0 0
    %1260 = vmatpush1.bf16.xpose.msra.mxu0 0
    %1261 = vmatprep.subr.bf16.mxu0 0
    %1262 = vmatpush1.bf16.xpose.msra.mxu0 0
    %1263 = vmatprep.subr.bf16.mxu0 0
    %1264 = vmatpush1.bf16.xpose.msra.mxu0 0
    %1265 = vmatprep.subr.bf16.mxu0 0
    %1266 = vmatpush1.bf16.xpose.msra.mxu0 0
    %1267 = vmatprep.subr.bf16.mxu0 0
    %1268 = vmatpush1.bf16.xpose.msra.mxu0 0
    %1269 = vmatprep.subr.bf16.mxu0 0
    %1270 = vmatpush1.bf16.xpose.msra.mxu0 0
    %1271 = vmatprep.mubr.bf16.mxu0 0
    %1272 = vmatmul.mubr.bf16.gmra.mrb[0].mxu0 %v1234
    %v1273 = vpop.f32.mrb[0].mxu0
    %v1274 = vadd.f32 %v493, %v1273
    %v1275 = vpop.f32.mrb[0].mxu0
    %v1276 = vpop.f32.mrb[0].mxu0
    %v1277 = vpop.f32.mrb[0].mxu0
    %1278 = vdwg.mxu0
    %v1279 = vsel %vm589, %v1224, -inf
    %1280 = vmax.xlane.f32.xlu0 %v1279
    %v1281 = vpop.xlane.xlu0 %1280
    %v1282 = vsel %vm589, %v1274, -inf
    %1283 = vmax.xlane.f32.xlu0 %v1282
    %v1284 = vpop.xlane.xlu0 %1283
    %v1285 = vsub.f32 %v1224, %v1281
    %v1286 = vsub.f32 %v1274, %v1284
    %v1287 = vmul.f32 %v1285, 1.442695
    %v1288 = vpow.pop %v1287
    %v1289 = vmul.f32 %v1286, 1.442695
    %v1290 = vpow.pop %v1289
    %v1291 = vsel %vm589, %v1288, 0.0
    %1292 = vadd.xlane.f32.xlu0 %v1291
    %v1293 = vpop.xlane.xlu0 %1292
    %v1294 = vsel %vm589, %v1290, 0.0
    %1295 = vadd.xlane.f32.xlu0 %v1294
    %v1296 = vpop.xlane.xlu0 %1295
    %v1297 = vrcp.pop %v1293
    %v1298 = vrcp.pop %v1296
    %v1299 = vmul.f32 %v1288, %v1297
    %v1300 = vmul.f32 %v1290, %v1298
    %v1301 = vpack.c.bf16 %v1299, %v1299
    %v1302 = vpack.c.bf16 %v1300, %v1300
    %1303 = vrot.lane.b32.xlu0 %v614, 32
    %v1304 = vpop.permute.xlu0 %1303
    %v1306 = vsel %vm589, %v1301, 0
    %v1309 = vsel %vm619, %v1304, 0
    %1311 = vmatprep.subr.bf16.mxu0 0
    %1312 = vmatpush1.bf16.msra.mxu0 %v1309
    %1313 = vmatprep.subr.bf16.mxu0 0
    %1314 = vmatpush1.bf16.msra.mxu0 0
    %1315 = vmatprep.subr.bf16.mxu0 0
    %1316 = vmatpush1.bf16.msra.mxu0 0
    %1317 = vmatprep.subr.bf16.mxu0 0
    %1318 = vmatpush1.bf16.msra.mxu0 0
    %1319 = vmatprep.subr.bf16.mxu0 0
    %1320 = vmatpush1.bf16.msra.mxu0 0
    %1321 = vmatprep.subr.bf16.mxu0 0
    %1322 = vmatpush1.bf16.msra.mxu0 0
    %1323 = vmatprep.subr.bf16.mxu0 0
    %1324 = vmatpush1.bf16.msra.mxu0 0
    %1325 = vmatprep.subr.bf16.mxu0 0
    %1326 = vmatpush1.bf16.msra.mxu0 0
    %1327 = vmatprep.subr.bf16.mxu0 0
    %1328 = vmatpush1.bf16.msra.mxu0 0
    %1329 = vmatprep.subr.bf16.mxu0 0
    %1330 = vmatpush1.bf16.msra.mxu0 0
    %1331 = vmatprep.subr.bf16.mxu0 0
    %1332 = vmatpush1.bf16.msra.mxu0 0
    %1333 = vmatprep.subr.bf16.mxu0 0
    %1334 = vmatpush1.bf16.msra.mxu0 0
    %1335 = vmatprep.subr.bf16.mxu0 0
    %1336 = vmatpush1.bf16.msra.mxu0 0
    %1337 = vmatprep.subr.bf16.mxu0 0
    %1338 = vmatpush1.bf16.msra.mxu0 0
    %1339 = vmatprep.subr.bf16.mxu0 0
    %1340 = vmatpush1.bf16.msra.mxu0 0
    %1341 = vmatprep.subr.bf16.mxu0 0
    %1342 = vmatpush1.bf16.msra.mxu0 0
    %1343 = vmatprep.mubr.bf16.mxu0 0
    %1344 = vmatmul.mubr.bf16.gmra.mrb[0].mxu0 %v1306
    %v1345 = vpop.f32.mrb[0].mxu0
    %v1346 = vadd.f32 0.0, %v1345
    %v1347 = vpop.f32.mrb[0].mxu0
    %v1348 = vpop.f32.mrb[0].mxu0
    %v1349 = vpop.f32.mrb[0].mxu0
    %1350 = vdwg.mxu0
    %1351 = vrot.lane.b32.xlu0 %v615, 32
    %v1352 = vpop.permute.xlu0 %1351
    %v1354 = vsel %vm589, %v1302, 0
    %v1357 = vsel %vm619, %v1352, 0
    %1359 = vmatprep.subr.bf16.mxu0 0
    %1360 = vmatpush1.bf16.msra.mxu0 %v1357
    %1361 = vmatprep.subr.bf16.mxu0 0
    %1362 = vmatpush1.bf16.msra.mxu0 0
    %1363 = vmatprep.subr.bf16.mxu0 0
    %1364 = vmatpush1.bf16.msra.mxu0 0
    %1365 = vmatprep.subr.bf16.mxu0 0
    %1366 = vmatpush1.bf16.msra.mxu0 0
    %1367 = vmatprep.subr.bf16.mxu0 0
    %1368 = vmatpush1.bf16.msra.mxu0 0
    %1369 = vmatprep.subr.bf16.mxu0 0
    %1370 = vmatpush1.bf16.msra.mxu0 0
    %1371 = vmatprep.subr.bf16.mxu0 0
    %1372 = vmatpush1.bf16.msra.mxu0 0
    %1373 = vmatprep.subr.bf16.mxu0 0
    %1374 = vmatpush1.bf16.msra.mxu0 0
    %1375 = vmatprep.subr.bf16.mxu0 0
    %1376 = vmatpush1.bf16.msra.mxu0 0
    %1377 = vmatprep.subr.bf16.mxu0 0
    %1378 = vmatpush1.bf16.msra.mxu0 0
    %1379 = vmatprep.subr.bf16.mxu0 0
    %1380 = vmatpush1.bf16.msra.mxu0 0
    %1381 = vmatprep.subr.bf16.mxu0 0
    %1382 = vmatpush1.bf16.msra.mxu0 0
    %1383 = vmatprep.subr.bf16.mxu0 0
    %1384 = vmatpush1.bf16.msra.mxu0 0
    %1385 = vmatprep.subr.bf16.mxu0 0
    %1386 = vmatpush1.bf16.msra.mxu0 0
    %1387 = vmatprep.subr.bf16.mxu0 0
    %1388 = vmatpush1.bf16.msra.mxu0 0
    %1389 = vmatprep.subr.bf16.mxu0 0
    %1390 = vmatpush1.bf16.msra.mxu0 0
    %1391 = vmatprep.mubr.bf16.mxu0 0
    %1392 = vmatmul.mubr.bf16.gmra.mrb[0].mxu0 %v1354
    %v1393 = vpop.f32.mrb[0].mxu0
    %v1394 = vadd.f32 0.0, %v1393
    %v1395 = vpop.f32.mrb[0].mxu0
    %v1396 = vpop.f32.mrb[0].mxu0
    %v1397 = vpop.f32.mrb[0].mxu0
    %1398 = vdwg.mxu0
    %1401 = vrot.lane.b32.xlu0 %v1346, 96
    %v1402 = vpop.permute.xlu0 %1401
    %1403 = vrot.lane.b32.xlu0 %v1394, 96
    %v1404 = vpop.permute.xlu0 %1403
    %vm1407 = vcmask 1048320
    %1408 = vst.msk [vmem:[#allocation2] sm:$0xff] %vm1407, %v1402
    %1409 = vst.msk [vmem:[#allocation2 + $0x8] sm:$0xff] %vm1407, %v1404
    %v1410 = vld [vmem:[#allocation2] sm:$0xff]
    %v1411 = vld [vmem:[#allocation2 + $0x8] sm:$0xff]
    %v1412 = vpack.c.bf16 %v1411, %v1410
    %v1413 = vld [vmem:[#allocation3] sm:$0xf]
    %v1414 = vld [vmem:[#allocation3 + $0x4] sm:$0xf]
    %v1415 = vld [vmem:[#allocation3 + $0x8] sm:$0xf]
    %v1416 = vld [vmem:[#allocation3 + $0xc] sm:$0xf]
    %v1417 = vld [vmem:[#allocation3 + $0x10] sm:$0xf]
    %v1418 = vld [vmem:[#allocation3 + $0x14] sm:$0xf]
    %v1419 = vld [vmem:[#allocation3 + $0x18] sm:$0xf]
    %v1420 = vld [vmem:[#allocation3 + $0x1c] sm:$0xf]
    %v1421 = vld [vmem:[#allocation3 + $0x20] sm:$0xf]
    %v1422 = vld [vmem:[#allocation3 + $0x24] sm:$0xf]
    %v1423 = vld [vmem:[#allocation3 + $0x28] sm:$0xf]
    %v1424 = vld [vmem:[#allocation3 + $0x2c] sm:$0xf]
    %v1425 = vld [vmem:[#allocation3 + $0x30] sm:$0xf]
    %v1426 = vld [vmem:[#allocation3 + $0x34] sm:$0xf]
    %v1427 = vld [vmem:[#allocation3 + $0x38] sm:$0xf]
    %v1428 = vld [vmem:[#allocation3 + $0x3c] sm:$0xf]
    %v1429 = vld [vmem:[%s7] sm:$0x1]
    %v1431 = vlaneseq
    %v1432 = vshrl.u32 %v1431, 7
    %v1433 = vsub.s32 0, %v1432
    %v1434 = vrot.slane %v1429, %v1433
    %v1452 = vunpack.c.l.b16 %v1413
    %v1453 = vunpack.c.l.b16 %v1414
    %v1454 = vunpack.c.l.b16 %v1415
    %v1455 = vunpack.c.l.b16 %v1416
    %v1456 = vunpack.c.l.b16 %v1417
    %v1457 = vunpack.c.l.b16 %v1418
    %v1458 = vunpack.c.l.b16 %v1419
    %v1459 = vunpack.c.l.b16 %v1420
    %v1460 = vunpack.c.l.b16 %v1421
    %v1461 = vunpack.c.l.b16 %v1422
    %v1462 = vunpack.c.l.b16 %v1423
    %v1463 = vunpack.c.l.b16 %v1424
    %v1464 = vunpack.c.l.b16 %v1425
    %v1465 = vunpack.c.l.b16 %v1426
    %v1466 = vunpack.c.l.b16 %v1427
    %v1467 = vunpack.c.l.b16 %v1428
    %v1468 = vpack.c.b16 %v1453, %v1452
    %v1469 = vpack.c.b16 %v1455, %v1454
    %v1470 = vpack.c.b16 %v1457, %v1456
    %v1471 = vpack.c.b16 %v1459, %v1458
    %v1472 = vpack.c.b16 %v1461, %v1460
    %v1473 = vpack.c.b16 %v1463, %v1462
    %v1474 = vpack.c.b16 %v1465, %v1464
    %v1475 = vpack.c.b16 %v1467, %v1466
    %1484 = vmatprep.subr.bf16.mxu0 0
    %1485 = vmatpush1.bf16.msra.mxu0 %v1468
    %1486 = vmatprep.subr.bf16.mxu0 0
    %1487 = vmatpush1.bf16.msra.mxu0 %v1469
    %1488 = vmatprep.subr.bf16.mxu0 0
    %1489 = vmatpush1.bf16.msra.mxu0 %v1470
    %1490 = vmatprep.subr.bf16.mxu0 0
    %1491 = vmatpush1.bf16.msra.mxu0 %v1471
    %1492 = vmatprep.subr.bf16.mxu0 0
    %1493 = vmatpush1.bf16.msra.mxu0 %v1472
    %1494 = vmatprep.subr.bf16.mxu0 0
    %1495 = vmatpush1.bf16.msra.mxu0 %v1473
    %1496 = vmatprep.subr.bf16.mxu0 0
    %1497 = vmatpush1.bf16.msra.mxu0 %v1474
    %1498 = vmatprep.subr.bf16.mxu0 0
    %1499 = vmatpush1.bf16.msra.mxu0 %v1475
    %1500 = vmatprep.subr.bf16.mxu0 0
    %1501 = vmatpush1.bf16.msra.mxu0 0
    %1502 = vmatprep.subr.bf16.mxu0 0
    %1503 = vmatpush1.bf16.msra.mxu0 0
    %1504 = vmatprep.subr.bf16.mxu0 0
    %1505 = vmatpush1.bf16.msra.mxu0 0
    %1506 = vmatprep.subr.bf16.mxu0 0
    %1507 = vmatpush1.bf16.msra.mxu0 0
    %1508 = vmatprep.subr.bf16.mxu0 0
    %1509 = vmatpush1.bf16.msra.mxu0 0
    %1510 = vmatprep.subr.bf16.mxu0 0
    %1511 = vmatpush1.bf16.msra.mxu0 0
    %1512 = vmatprep.subr.bf16.mxu0 0
    %1513 = vmatpush1.bf16.msra.mxu0 0
    %1514 = vmatprep.subr.bf16.mxu0 0
    %1515 = vmatpush1.bf16.msra.mxu0 0
    %1516 = vmatprep.mubr.bf16.mxu0 0
    %1517 = vmatmul.mubr.bf16.gmra.mrb[0].mxu0 %v1412
    %v1518 = vpop.f32.mrb[0].mxu0
    %v1519 = vadd.f32 %v1434, %v1518
    %v1520 = vpop.f32.mrb[0].mxu0
    %v1521 = vpop.f32.mrb[0].mxu0
    %v1522 = vadd.f32 %v1434, %v1521
    %v1523 = vpop.f32.mrb[0].mxu0
    %1524 = vdwg.mxu0
    %v1525 = vadd.f32 %v214, %v1519
    %v1526 = vadd.f32 %v215, %v1522
    %v1527 = vld [vmem:[%s8] sm:$0x1]
    %v1528 = vld [vmem:[%s9] sm:$0x1]
    %1529 = vadd.xlane.f32.xlu0 %v1525
    %v1530 = vpop.xlane.xlu0 %1529
    %1531 = vadd.xlane.f32.xlu0 %v1526
    %v1532 = vpop.xlane.xlu0 %1531
    %v1533 = vmul.f32 %v1530, %v181
    %v1534 = vmul.f32 %v1532, %v181
    %v1535 = vsub.f32 %v1525, %v1533
    %v1536 = vsub.f32 %v1526, %v1534
    %v1537 = vmul.f32 %v1535, %v1535
    %v1538 = vmul.f32 %v1536, %v1536
    %1539 = vadd.xlane.f32.xlu0 %v1537
    %v1540 = vpop.xlane.xlu0 %1539
    %1541 = vadd.xlane.f32.xlu0 %v1538
    %v1542 = vpop.xlane.xlu0 %1541
    %v1543 = vmul.f32 %v1540, %v181
    %v1544 = vmul.f32 %v1542, %v181
    %v1545 = vadd.f32 %v1543, 1e-05
    %v1546 = vadd.f32 %v1544, 1e-05
    %v1547 = vrsqrt.pop %v1545
    %v1548 = vrsqrt.pop %v1546
    %v1549 = vmul.f32 %v1535, %v1547
    %v1550 = vmul.f32 %v1536, %v1548
    %v1552 = vlaneseq
    %v1553 = vshrl.u32 %v1552, 7
    %v1554 = vsub.s32 0, %v1553
    %v1555 = vrot.slane %v1527, %v1554
    %v1557 = vmul.f32 %v1549, %v1555
    %v1558 = vmul.f32 %v1550, %v1555
    %v1560 = vlaneseq
    %v1561 = vshrl.u32 %v1560, 7
    %v1562 = vsub.s32 0, %v1561
    %v1563 = vrot.slane %v1528, %v1562
    %v1565 = vadd.f32 %v1557, %v1563
    %v1566 = vadd.f32 %v1558, %v1563
    %v1567 = vpack.c.bf16 %v1566, %v1565
    %v1568 = vld [vmem:[#allocation5] sm:$0xff]
    %v1569 = vld [vmem:[#allocation5 + $0x8] sm:$0xff]
    %v1570 = vld [vmem:[#allocation5 + $0x10] sm:$0xff]
    %v1571 = vld [vmem:[#allocation5 + $0x18] sm:$0xff]
    %v1572 = vld [vmem:[#allocation5 + $0x20] sm:$0xff]
    %v1573 = vld [vmem:[#allocation5 + $0x28] sm:$0xff]
    %v1574 = vld [vmem:[#allocation5 + $0x30] sm:$0xff]
    %v1575 = vld [vmem:[#allocation5 + $0x38] sm:$0xff]
    %v1576 = vld [vmem:[#allocation5 + $0x40] sm:$0xff]
    %v1577 = vld [vmem:[#allocation5 + $0x48] sm:$0xff]
    %v1578 = vld [vmem:[#allocation5 + $0x50] sm:$0xff]
    %v1579 = vld [vmem:[#allocation5 + $0x58] sm:$0xff]
    %v1580 = vld [vmem:[#allocation5 + $0x60] sm:$0xff]
    %v1581 = vld [vmem:[#allocation5 + $0x68] sm:$0xff]
    %v1582 = vld [vmem:[#allocation5 + $0x70] sm:$0xff]
    %v1583 = vld [vmem:[#allocation5 + $0x78] sm:$0xff]
    %v1584 = vld [vmem:[#allocation5 + $0x80] sm:$0xff]
    %v1585 = vld [vmem:[#allocation5 + $0x88] sm:$0xff]
    %v1586 = vld [vmem:[#allocation5 + $0x90] sm:$0xff]
    %v1587 = vld [vmem:[#allocation5 + $0x98] sm:$0xff]
    %v1588 = vld [vmem:[#allocation5 + $0xa0] sm:$0xff]
    %v1589 = vld [vmem:[#allocation5 + $0xa8] sm:$0xff]
    %v1590 = vld [vmem:[#allocation5 + $0xb0] sm:$0xff]
    %v1591 = vld [vmem:[#allocation5 + $0xb8] sm:$0xff]
    %v1592 = vld [vmem:[#allocation5 + $0xc0] sm:$0xff]
    %v1593 = vld [vmem:[#allocation5 + $0xc8] sm:$0xff]
    %v1594 = vld [vmem:[#allocation5 + $0xd0] sm:$0xff]
    %v1595 = vld [vmem:[#allocation5 + $0xd8] sm:$0xff]
    %v1596 = vld [vmem:[#allocation5 + $0xe0] sm:$0xff]
    %v1597 = vld [vmem:[#allocation5 + $0xe8] sm:$0xff]
    %v1598 = vld [vmem:[#allocation5 + $0xf0] sm:$0xff]
    %v1599 = vld [vmem:[#allocation5 + $0xf8] sm:$0xff]
    %v1600 = vld [vmem:[%s11] sm:$0xf]
    %v1602 = vlaneseq
    %v1603 = vshrl.u32 %v1602, 7
    %v1604 = vsub.s32 0, %v1603
    %v1605 = vrot.slane %v1600, %v1604
    %v1606 = vlaneseq
    %v1607 = vshrl.u32 %v1606, 7
    %v1608 = vsub.s32 1, %v1607
    %v1609 = vrot.slane %v1600, %v1608
    %v1610 = vlaneseq
    %v1611 = vshrl.u32 %v1610, 7
    %v1612 = vsub.s32 2, %v1611
    %v1613 = vrot.slane %v1600, %v1612
    %v1614 = vlaneseq
    %v1615 = vshrl.u32 %v1614, 7
    %v1616 = vsub.s32 3, %v1615
    %v1617 = vrot.slane %v1600, %v1616
    %v1654 = vunpack.c.l.b16 %v1568
    %v1655 = vunpack.c.h.b16 %v1568
    %v1656 = vunpack.c.l.b16 %v1569
    %v1657 = vunpack.c.h.b16 %v1569
    %v1658 = vunpack.c.l.b16 %v1570
    %v1659 = vunpack.c.h.b16 %v1570
    %v1660 = vunpack.c.l.b16 %v1571
    %v1661 = vunpack.c.h.b16 %v1571
    %v1662 = vunpack.c.l.b16 %v1572
    %v1663 = vunpack.c.h.b16 %v1572
    %v1664 = vunpack.c.l.b16 %v1573
    %v1665 = vunpack.c.h.b16 %v1573
    %v1666 = vunpack.c.l.b16 %v1574
    %v1667 = vunpack.c.h.b16 %v1574
    %v1668 = vunpack.c.l.b16 %v1575
    %v1669 = vunpack.c.h.b16 %v1575
    %v1670 = vunpack.c.l.b16 %v1576
    %v1671 = vunpack.c.h.b16 %v1576
    %v1672 = vunpack.c.l.b16 %v1577
    %v1673 = vunpack.c.h.b16 %v1577
    %v1674 = vunpack.c.l.b16 %v1578
    %v1675 = vunpack.c.h.b16 %v1578
    %v1676 = vunpack.c.l.b16 %v1579
    %v1677 = vunpack.c.h.b16 %v1579
    %v1678 = vunpack.c.l.b16 %v1580
    %v1679 = vunpack.c.h.b16 %v1580
    %v1680 = vunpack.c.l.b16 %v1581
    %v1681 = vunpack.c.h.b16 %v1581
    %v1682 = vunpack.c.l.b16 %v1582
    %v1683 = vunpack.c.h.b16 %v1582
    %v1684 = vunpack.c.l.b16 %v1583
    %v1685 = vunpack.c.h.b16 %v1583
    %v1686 = vunpack.c.l.b16 %v1584
    %v1687 = vunpack.c.h.b16 %v1584
    %v1688 = vunpack.c.l.b16 %v1585
    %v1689 = vunpack.c.h.b16 %v1585
    %v1690 = vunpack.c.l.b16 %v1586
    %v1691 = vunpack.c.h.b16 %v1586
    %v1692 = vunpack.c.l.b16 %v1587
    %v1693 = vunpack.c.h.b16 %v1587
    %v1694 = vunpack.c.l.b16 %v1588
    %v1695 = vunpack.c.h.b16 %v1588
    %v1696 = vunpack.c.l.b16 %v1589
    %v1697 = vunpack.c.h.b16 %v1589
    %v1698 = vunpack.c.l.b16 %v1590
    %v1699 = vunpack.c.h.b16 %v1590
    %v1700 = vunpack.c.l.b16 %v1591
    %v1701 = vunpack.c.h.b16 %v1591
    %v1702 = vunpack.c.l.b16 %v1592
    %v1703 = vunpack.c.h.b16 %v1592
    %v1704 = vunpack.c.l.b16 %v1593
    %v1705 = vunpack.c.h.b16 %v1593
    %v1706 = vunpack.c.l.b16 %v1594
    %v1707 = vunpack.c.h.b16 %v1594
    %v1708 = vunpack.c.l.b16 %v1595
    %v1709 = vunpack.c.h.b16 %v1595
    %v1710 = vunpack.c.l.b16 %v1596
    %v1711 = vunpack.c.h.b16 %v1596
    %v1712 = vunpack.c.l.b16 %v1597
    %v1713 = vunpack.c.h.b16 %v1597
    %v1714 = vunpack.c.l.b16 %v1598
    %v1715 = vunpack.c.h.b16 %v1598
    %v1716 = vunpack.c.l.b16 %v1599
    %v1717 = vunpack.c.h.b16 %v1599
    %v1718 = vpack.c.b16 %v1658, %v1654
    %v1719 = vpack.c.b16 %v1659, %v1655
    %v1720 = vpack.c.b16 %v1660, %v1656
    %v1721 = vpack.c.b16 %v1661, %v1657
    %v1722 = vpack.c.b16 %v1666, %v1662
    %v1723 = vpack.c.b16 %v1667, %v1663
    %v1724 = vpack.c.b16 %v1668, %v1664
    %v1725 = vpack.c.b16 %v1669, %v1665
    %v1726 = vpack.c.b16 %v1674, %v1670
    %v1727 = vpack.c.b16 %v1675, %v1671
    %v1728 = vpack.c.b16 %v1676, %v1672
    %v1729 = vpack.c.b16 %v1677, %v1673
    %v1730 = vpack.c.b16 %v1682, %v1678
    %v1731 = vpack.c.b16 %v1683, %v1679
    %v1732 = vpack.c.b16 %v1684, %v1680
    %v1733 = vpack.c.b16 %v1685, %v1681
    %v1734 = vpack.c.b16 %v1690, %v1686
    %v1735 = vpack.c.b16 %v1691, %v1687
    %v1736 = vpack.c.b16 %v1692, %v1688
    %v1737 = vpack.c.b16 %v1693, %v1689
    %v1738 = vpack.c.b16 %v1698, %v1694
    %v1739 = vpack.c.b16 %v1699, %v1695
    %v1740 = vpack.c.b16 %v1700, %v1696
    %v1741 = vpack.c.b16 %v1701, %v1697
    %v1742 = vpack.c.b16 %v1706, %v1702
    %v1743 = vpack.c.b16 %v1707, %v1703
    %v1744 = vpack.c.b16 %v1708, %v1704
    %v1745 = vpack.c.b16 %v1709, %v1705
    %v1746 = vpack.c.b16 %v1714, %v1710
    %v1747 = vpack.c.b16 %v1715, %v1711
    %v1748 = vpack.c.b16 %v1716, %v1712
    %v1749 = vpack.c.b16 %v1717, %v1713
    %1782 = vmatprep.subr.bf16.mxu0 %v1719
    %1783 = vmatpush1.bf16.msra.mxu0 %v1718
    %1784 = vmatprep.subr.bf16.mxu0 %v1723
    %1785 = vmatpush1.bf16.msra.mxu0 %v1722
    %1786 = vmatprep.subr.bf16.mxu0 %v1727
    %1787 = vmatpush1.bf16.msra.mxu0 %v1726
    %1788 = vmatprep.subr.bf16.mxu0 %v1731
    %1789 = vmatpush1.bf16.msra.mxu0 %v1730
    %1790 = vmatprep.subr.bf16.mxu0 %v1735
    %1791 = vmatpush1.bf16.msra.mxu0 %v1734
    %1792 = vmatprep.subr.bf16.mxu0 %v1739
    %1793 = vmatpush1.bf16.msra.mxu0 %v1738
    %1794 = vmatprep.subr.bf16.mxu0 %v1743
    %1795 = vmatpush1.bf16.msra.mxu0 %v1742
    %1796 = vmatprep.subr.bf16.mxu0 %v1747
    %1797 = vmatpush1.bf16.msra.mxu0 %v1746
    %1798 = vmatprep.subr.bf16.mxu0 0
    %1799 = vmatpush1.bf16.msra.mxu0 0
    %1800 = vmatprep.subr.bf16.mxu0 0
    %1801 = vmatpush1.bf16.msra.mxu0 0
    %1802 = vmatprep.subr.bf16.mxu0 0
    %1803 = vmatpush1.bf16.msra.mxu0 0
    %1804 = vmatprep.subr.bf16.mxu0 0
    %1805 = vmatpush1.bf16.msra.mxu0 0
    %1806 = vmatprep.subr.bf16.mxu0 0
    %1807 = vmatpush1.bf16.msra.mxu0 0
    %1808 = vmatprep.subr.bf16.mxu0 0
    %1809 = vmatpush1.bf16.msra.mxu0 0
    %1810 = vmatprep.subr.bf16.mxu0 0
    %1811 = vmatpush1.bf16.msra.mxu0 0
    %1812 = vmatprep.subr.bf16.mxu0 0
    %1813 = vmatpush1.bf16.msra.mxu0 0
    %1814 = vmatprep.mubr.bf16.mxu0 0
    %1815 = vmatmul.mubr.bf16.gmra.mrb[0].mxu0 %v1567
    %v1816 = vpop.f32.mrb[0].mxu0
    %v1817 = vadd.f32 %v1605, %v1816
    %v1818 = vpop.f32.mrb[0].mxu0
    %v1819 = vadd.f32 %v1609, %v1818
    %v1820 = vpop.f32.mrb[0].mxu0
    %v1821 = vadd.f32 %v1605, %v1820
    %v1822 = vpop.f32.mrb[0].mxu0
    %v1823 = vadd.f32 %v1609, %v1822
    %1824 = vdwg.mxu0
    %1825 = vmatprep.subr.bf16.mxu0 %v1721
    %1826 = vmatpush1.bf16.msra.mxu0 %v1720
    %1827 = vmatprep.subr.bf16.mxu0 %v1725
    %1828 = vmatpush1.bf16.msra.mxu0 %v1724
    %1829 = vmatprep.subr.bf16.mxu0 %v1729
    %1830 = vmatpush1.bf16.msra.mxu0 %v1728
    %1831 = vmatprep.subr.bf16.mxu0 %v1733
    %1832 = vmatpush1.bf16.msra.mxu0 %v1732
    %1833 = vmatprep.subr.bf16.mxu0 %v1737
    %1834 = vmatpush1.bf16.msra.mxu0 %v1736
    %1835 = vmatprep.subr.bf16.mxu0 %v1741
    %1836 = vmatpush1.bf16.msra.mxu0 %v1740
    %1837 = vmatprep.subr.bf16.mxu0 %v1745
    %1838 = vmatpush1.bf16.msra.mxu0 %v1744
    %1839 = vmatprep.subr.bf16.mxu0 %v1749
    %1840 = vmatpush1.bf16.msra.mxu0 %v1748
    %1841 = vmatprep.subr.bf16.mxu0 0
    %1842 = vmatpush1.bf16.msra.mxu0 0
    %1843 = vmatprep.subr.bf16.mxu0 0
    %1844 = vmatpush1.bf16.msra.mxu0 0
    %1845 = vmatprep.subr.bf16.mxu0 0
    %1846 = vmatpush1.bf16.msra.mxu0 0
    %1847 = vmatprep.subr.bf16.mxu0 0
    %1848 = vmatpush1.bf16.msra.mxu0 0
    %1849 = vmatprep.subr.bf16.mxu0 0
    %1850 = vmatpush1.bf16.msra.mxu0 0
    %1851 = vmatprep.subr.bf16.mxu0 0
    %1852 = vmatpush1.bf16.msra.mxu0 0
    %1853 = vmatprep.subr.bf16.mxu0 0
    %1854 = vmatpush1.bf16.msra.mxu0 0
    %1855 = vmatprep.subr.bf16.mxu0 0
    %1856 = vmatpush1.bf16.msra.mxu0 0
    %1857 = vmatprep.mubr.bf16.mxu0 0
    %1858 = vmatmul.mubr.bf16.gmra.mrb[0].mxu0 %v1567
    %v1859 = vpop.f32.mrb[0].mxu0
    %v1860 = vadd.f32 %v1613, %v1859
    %v1861 = vpop.f32.mrb[0].mxu0
    %v1862 = vadd.f32 %v1617, %v1861
    %v1863 = vpop.f32.mrb[0].mxu0
    %v1864 = vadd.f32 %v1613, %v1863
    %v1865 = vpop.f32.mrb[0].mxu0
    %v1866 = vadd.f32 %v1617, %v1865
    %1867 = vdwg.mxu0
    %v1868 = vmul.f32 %v1817, %v1817
    %v1869 = vmul.f32 %v1819, %v1819
    %v1870 = vmul.f32 %v1860, %v1860
    %v1871 = vmul.f32 %v1862, %v1862
    %v1872 = vmul.f32 %v1821, %v1821
    %v1873 = vmul.f32 %v1823, %v1823
    %v1874 = vmul.f32 %v1864, %v1864
    %v1875 = vmul.f32 %v1866, %v1866
    %v1876 = vmul.f32 %v1817, %v1868
    %v1877 = vmul.f32 %v1819, %v1869
    %v1878 = vmul.f32 %v1860, %v1870
    %v1879 = vmul.f32 %v1862, %v1871
    %v1880 = vmul.f32 %v1821, %v1872
    %v1881 = vmul.f32 %v1823, %v1873
    %v1882 = vmul.f32 %v1864, %v1874
    %v1883 = vmul.f32 %v1866, %v1875
    %v1884 = vmul.f32 %v1876, 0.044715
    %v1885 = vmul.f32 %v1877, 0.044715
    %v1886 = vmul.f32 %v1878, 0.044715
    %v1887 = vmul.f32 %v1879, 0.044715
    %v1888 = vmul.f32 %v1880, 0.044715
    %v1889 = vmul.f32 %v1881, 0.044715
    %v1890 = vmul.f32 %v1882, 0.044715
    %v1891 = vmul.f32 %v1883, 0.044715
    %v1892 = vadd.f32 %v1817, %v1884
    %v1893 = vadd.f32 %v1819, %v1885
    %v1894 = vadd.f32 %v1860, %v1886
    %v1895 = vadd.f32 %v1862, %v1887
    %v1896 = vadd.f32 %v1821, %v1888
    %v1897 = vadd.f32 %v1823, %v1889
    %v1898 = vadd.f32 %v1864, %v1890
    %v1899 = vadd.f32 %v1866, %v1891
    %v1900 = vmul.f32 %v1892, 0.7978846
    %v1901 = vmul.f32 %v1893, 0.7978846
    %v1902 = vmul.f32 %v1894, 0.7978846
    %v1903 = vmul.f32 %v1895, 0.7978846
    %v1904 = vmul.f32 %v1896, 0.7978846
    %v1905 = vmul.f32 %v1897, 0.7978846
    %v1906 = vmul.f32 %v1898, 0.7978846
    %v1907 = vmul.f32 %v1899, 0.7978846
    %v1908 = vtanh.pop %v1900
    %v1909 = vtanh.pop %v1901
    %v1910 = vtanh.pop %v1902
    %v1911 = vtanh.pop %v1903
    %v1912 = vtanh.pop %v1904
    %v1913 = vtanh.pop %v1905
    %v1914 = vtanh.pop %v1906
    %v1915 = vtanh.pop %v1907
    %v1916 = vadd.f32 %v1908, 1.0
    %v1917 = vadd.f32 %v1909, 1.0
    %v1918 = vadd.f32 %v1910, 1.0
    %v1919 = vadd.f32 %v1911, 1.0
    %v1920 = vadd.f32 %v1912, 1.0
    %v1921 = vadd.f32 %v1913, 1.0
    %v1922 = vadd.f32 %v1914, 1.0
    %v1923 = vadd.f32 %v1915, 1.0
    %v1924 = vmul.f32 %v1916, 0.5
    %v1925 = vmul.f32 %v1917, 0.5
    %v1926 = vmul.f32 %v1918, 0.5
    %v1927 = vmul.f32 %v1919, 0.5
    %v1928 = vmul.f32 %v1920, 0.5
    %v1929 = vmul.f32 %v1921, 0.5
    %v1930 = vmul.f32 %v1922, 0.5
    %v1931 = vmul.f32 %v1923, 0.5
    %v1932 = vmul.f32 %v1817, %v1924
    %v1933 = vmul.f32 %v1819, %v1925
    %v1934 = vmul.f32 %v1860, %v1926
    %v1935 = vmul.f32 %v1862, %v1927
    %v1936 = vmul.f32 %v1821, %v1928
    %v1937 = vmul.f32 %v1823, %v1929
    %v1938 = vmul.f32 %v1864, %v1930
    %v1939 = vmul.f32 %v1866, %v1931
    %v1940 = vpack.c.bf16 %v1936, %v1932
    %v1941 = vpack.c.bf16 %v1937, %v1933
    %v1942 = vpack.c.bf16 %v1938, %v1934
    %v1943 = vpack.c.bf16 %v1939, %v1935
    %v1944 = vld [vmem:[#allocation7] sm:$0xf]
    %v1945 = vld [vmem:[#allocation7 + $0x4] sm:$0xf]
    %v1946 = vld [vmem:[#allocation7 + $0x8] sm:$0xf]
    %v1947 = vld [vmem:[#allocation7 + $0xc] sm:$0xf]
    %v1948 = vld [vmem:[#allocation7 + $0x10] sm:$0xf]
    %v1949 = vld [vmem:[#allocation7 + $0x14] sm:$0xf]
    %v1950 = vld [vmem:[#allocation7 + $0x18] sm:$0xf]
    %v1951 = vld [vmem:[#allocation7 + $0x1c] sm:$0xf]
    %v1952 = vld [vmem:[#allocation7 + $0x20] sm:$0xf]
    %v1953 = vld [vmem:[#allocation7 + $0x24] sm:$0xf]
    %v1954 = vld [vmem:[#allocation7 + $0x28] sm:$0xf]
    %v1955 = vld [vmem:[#allocation7 + $0x2c] sm:$0xf]
    %v1956 = vld [vmem:[#allocation7 + $0x30] sm:$0xf]
    %v1957 = vld [vmem:[#allocation7 + $0x34] sm:$0xf]
    %v1958 = vld [vmem:[#allocation7 + $0x38] sm:$0xf]
    %v1959 = vld [vmem:[#allocation7 + $0x3c] sm:$0xf]
    %v1960 = vld [vmem:[#allocation7 + $0x40] sm:$0xf]
    %v1961 = vld [vmem:[#allocation7 + $0x44] sm:$0xf]
    %v1962 = vld [vmem:[#allocation7 + $0x48] sm:$0xf]
    %v1963 = vld [vmem:[#allocation7 + $0x4c] sm:$0xf]
    %v1964 = vld [vmem:[#allocation7 + $0x50] sm:$0xf]
    %v1965 = vld [vmem:[#allocation7 + $0x54] sm:$0xf]
    %v1966 = vld [vmem:[#allocation7 + $0x58] sm:$0xf]
    %v1967 = vld [vmem:[#allocation7 + $0x5c] sm:$0xf]
    %v1968 = vld [vmem:[#allocation7 + $0x60] sm:$0xf]
    %v1969 = vld [vmem:[#allocation7 + $0x64] sm:$0xf]
    %v1970 = vld [vmem:[#allocation7 + $0x68] sm:$0xf]
    %v1971 = vld [vmem:[#allocation7 + $0x6c] sm:$0xf]
    %v1972 = vld [vmem:[#allocation7 + $0x70] sm:$0xf]
    %v1973 = vld [vmem:[#allocation7 + $0x74] sm:$0xf]
    %v1974 = vld [vmem:[#allocation7 + $0x78] sm:$0xf]
    %v1975 = vld [vmem:[#allocation7 + $0x7c] sm:$0xf]
    %v1976 = vld [vmem:[#allocation7 + $0x80] sm:$0xf]
    %v1977 = vld [vmem:[#allocation7 + $0x84] sm:$0xf]
    %v1978 = vld [vmem:[#allocation7 + $0x88] sm:$0xf]
    %v1979 = vld [vmem:[#allocation7 + $0x8c] sm:$0xf]
    %v1980 = vld [vmem:[#allocation7 + $0x90] sm:$0xf]
    %v1981 = vld [vmem:[#allocation7 + $0x94] sm:$0xf]
    %v1982 = vld [vmem:[#allocation7 + $0x98] sm:$0xf]
    %v1983 = vld [vmem:[#allocation7 + $0x9c] sm:$0xf]
    %v1984 = vld [vmem:[#allocation7 + $0xa0] sm:$0xf]
    %v1985 = vld [vmem:[#allocation7 + $0xa4] sm:$0xf]
    %v1986 = vld [vmem:[#allocation7 + $0xa8] sm:$0xf]
    %v1987 = vld [vmem:[#allocation7 + $0xac] sm:$0xf]
    %v1988 = vld [vmem:[#allocation7 + $0xb0] sm:$0xf]
    %v1989 = vld [vmem:[#allocation7 + $0xb4] sm:$0xf]
    %v1990 = vld [vmem:[#allocation7 + $0xb8] sm:$0xf]
    %v1991 = vld [vmem:[#allocation7 + $0xbc] sm:$0xf]
    %v1992 = vld [vmem:[#allocation7 + $0xc0] sm:$0xf]
    %v1993 = vld [vmem:[#allocation7 + $0xc4] sm:$0xf]
    %v1994 = vld [vmem:[#allocation7 + $0xc8] sm:$0xf]
    %v1995 = vld [vmem:[#allocation7 + $0xcc] sm:$0xf]
    %v1996 = vld [vmem:[#allocation7 + $0xd0] sm:$0xf]
    %v1997 = vld [vmem:[#allocation7 + $0xd4] sm:$0xf]
    %v1998 = vld [vmem:[#allocation7 + $0xd8] sm:$0xf]
    %v1999 = vld [vmem:[#allocation7 + $0xdc] sm:$0xf]
    %v2000 = vld [vmem:[#allocation7 + $0xe0] sm:$0xf]
    %v2001 = vld [vmem:[#allocation7 + $0xe4] sm:$0xf]
    %v2002 = vld [vmem:[#allocation7 + $0xe8] sm:$0xf]
    %v2003 = vld [vmem:[#allocation7 + $0xec] sm:$0xf]
    %v2004 = vld [vmem:[#allocation7 + $0xf0] sm:$0xf]
    %v2005 = vld [vmem:[#allocation7 + $0xf4] sm:$0xf]
    %v2006 = vld [vmem:[#allocation7 + $0xf8] sm:$0xf]
    %v2007 = vld [vmem:[#allocation7 + $0xfc] sm:$0xf]
    %v2008 = vld [vmem:[%s13] sm:$0x1]
    %v2010 = vlaneseq
    %v2011 = vshrl.u32 %v2010, 7
    %v2012 = vsub.s32 0, %v2011
    %v2013 = vrot.slane %v2008, %v2012
    %v2079 = vunpack.c.l.b16 %v1944
    %v2080 = vunpack.c.l.b16 %v1945
    %v2081 = vunpack.c.l.b16 %v1946
    %v2082 = vunpack.c.l.b16 %v1947
    %v2083 = vunpack.c.l.b16 %v1948
    %v2084 = vunpack.c.l.b16 %v1949
    %v2085 = vunpack.c.l.b16 %v1950
    %v2086 = vunpack.c.l.b16 %v1951
    %v2087 = vunpack.c.l.b16 %v1952
    %v2088 = vunpack.c.l.b16 %v1953
    %v2089 = vunpack.c.l.b16 %v1954
    %v2090 = vunpack.c.l.b16 %v1955
    %v2091 = vunpack.c.l.b16 %v1956
    %v2092 = vunpack.c.l.b16 %v1957
    %v2093 = vunpack.c.l.b16 %v1958
    %v2094 = vunpack.c.l.b16 %v1959
    %v2095 = vunpack.c.l.b16 %v1960
    %v2096 = vunpack.c.l.b16 %v1961
    %v2097 = vunpack.c.l.b16 %v1962
    %v2098 = vunpack.c.l.b16 %v1963
    %v2099 = vunpack.c.l.b16 %v1964
    %v2100 = vunpack.c.l.b16 %v1965
    %v2101 = vunpack.c.l.b16 %v1966
    %v2102 = vunpack.c.l.b16 %v1967
    %v2103 = vunpack.c.l.b16 %v1968
    %v2104 = vunpack.c.l.b16 %v1969
    %v2105 = vunpack.c.l.b16 %v1970
    %v2106 = vunpack.c.l.b16 %v1971
    %v2107 = vunpack.c.l.b16 %v1972
    %v2108 = vunpack.c.l.b16 %v1973
    %v2109 = vunpack.c.l.b16 %v1974
    %v2110 = vunpack.c.l.b16 %v1975
    %v2111 = vunpack.c.l.b16 %v1976
    %v2112 = vunpack.c.l.b16 %v1977
    %v2113 = vunpack.c.l.b16 %v1978
    %v2114 = vunpack.c.l.b16 %v1979
    %v2115 = vunpack.c.l.b16 %v1980
    %v2116 = vunpack.c.l.b16 %v1981
    %v2117 = vunpack.c.l.b16 %v1982
    %v2118 = vunpack.c.l.b16 %v1983
    %v2119 = vunpack.c.l.b16 %v1984
    %v2120 = vunpack.c.l.b16 %v1985
    %v2121 = vunpack.c.l.b16 %v1986
    %v2122 = vunpack.c.l.b16 %v1987
    %v2123 = vunpack.c.l.b16 %v1988
    %v2124 = vunpack.c.l.b16 %v1989
    %v2125 = vunpack.c.l.b16 %v1990
    %v2126 = vunpack.c.l.b16 %v1991
    %v2127 = vunpack.c.l.b16 %v1992
    %v2128 = vunpack.c.l.b16 %v1993
    %v2129 = vunpack.c.l.b16 %v1994
    %v2130 = vunpack.c.l.b16 %v1995
    %v2131 = vunpack.c.l.b16 %v1996
    %v2132 = vunpack.c.l.b16 %v1997
    %v2133 = vunpack.c.l.b16 %v1998
    %v2134 = vunpack.c.l.b16 %v1999
    %v2135 = vunpack.c.l.b16 %v2000
    %v2136 = vunpack.c.l.b16 %v2001
    %v2137 = vunpack.c.l.b16 %v2002
    %v2138 = vunpack.c.l.b16 %v2003
    %v2139 = vunpack.c.l.b16 %v2004
    %v2140 = vunpack.c.l.b16 %v2005
    %v2141 = vunpack.c.l.b16 %v2006
    %v2142 = vunpack.c.l.b16 %v2007
    %v2143 = vpack.c.b16 %v2080, %v2079
    %v2144 = vpack.c.b16 %v2082, %v2081
    %v2145 = vpack.c.b16 %v2084, %v2083
    %v2146 = vpack.c.b16 %v2086, %v2085
    %v2147 = vpack.c.b16 %v2088, %v2087
    %v2148 = vpack.c.b16 %v2090, %v2089
    %v2149 = vpack.c.b16 %v2092, %v2091
    %v2150 = vpack.c.b16 %v2094, %v2093
    %v2151 = vpack.c.b16 %v2096, %v2095
    %v2152 = vpack.c.b16 %v2098, %v2097
    %v2153 = vpack.c.b16 %v2100, %v2099
    %v2154 = vpack.c.b16 %v2102, %v2101
    %v2155 = vpack.c.b16 %v2104, %v2103
    %v2156 = vpack.c.b16 %v2106, %v2105
    %v2157 = vpack.c.b16 %v2108, %v2107
    %v2158 = vpack.c.b16 %v2110, %v2109
    %v2159 = vpack.c.b16 %v2112, %v2111
    %v2160 = vpack.c.b16 %v2114, %v2113
    %v2161 = vpack.c.b16 %v2116, %v2115
    %v2162 = vpack.c.b16 %v2118, %v2117
    %v2163 = vpack.c.b16 %v2120, %v2119
    %v2164 = vpack.c.b16 %v2122, %v2121
    %v2165 = vpack.c.b16 %v2124, %v2123
    %v2166 = vpack.c.b16 %v2126, %v2125
    %v2167 = vpack.c.b16 %v2128, %v2127
    %v2168 = vpack.c.b16 %v2130, %v2129
    %v2169 = vpack.c.b16 %v2132, %v2131
    %v2170 = vpack.c.b16 %v2134, %v2133
    %v2171 = vpack.c.b16 %v2136, %v2135
    %v2172 = vpack.c.b16 %v2138, %v2137
    %v2173 = vpack.c.b16 %v2140, %v2139
    %v2174 = vpack.c.b16 %v2142, %v2141
    %2207 = vmatprep.subr.bf16.mxu0 0
    %2208 = vmatpush1.bf16.msra.mxu0 %v2143
    %2209 = vmatprep.subr.bf16.mxu0 0
    %2210 = vmatpush1.bf16.msra.mxu0 %v2144
    %2211 = vmatprep.subr.bf16.mxu0 0
    %2212 = vmatpush1.bf16.msra.mxu0 %v2145
    %2213 = vmatprep.subr.bf16.mxu0 0
    %2214 = vmatpush1.bf16.msra.mxu0 %v2146
    %2215 = vmatprep.subr.bf16.mxu0 0
    %2216 = vmatpush1.bf16.msra.mxu0 %v2147
    %2217 = vmatprep.subr.bf16.mxu0 0
    %2218 = vmatpush1.bf16.msra.mxu0 %v2148
    %2219 = vmatprep.subr.bf16.mxu0 0
    %2220 = vmatpush1.bf16.msra.mxu0 %v2149
    %2221 = vmatprep.subr.bf16.mxu0 0
    %2222 = vmatpush1.bf16.msra.mxu0 %v2150
    %2223 = vmatprep.subr.bf16.mxu0 0
    %2224 = vmatpush1.bf16.msra.mxu0 %v2151
    %2225 = vmatprep.subr.bf16.mxu0 0
    %2226 = vmatpush1.bf16.msra.mxu0 %v2152
    %2227 = vmatprep.subr.bf16.mxu0 0
    %2228 = vmatpush1.bf16.msra.mxu0 %v2153
    %2229 = vmatprep.subr.bf16.mxu0 0
    %2230 = vmatpush1.bf16.msra.mxu0 %v2154
    %2231 = vmatprep.subr.bf16.mxu0 0
    %2232 = vmatpush1.bf16.msra.mxu0 %v2155
    %2233 = vmatprep.subr.bf16.mxu0 0
    %2234 = vmatpush1.bf16.msra.mxu0 %v2156
    %2235 = vmatprep.subr.bf16.mxu0 0
    %2236 = vmatpush1.bf16.msra.mxu0 %v2157
    %2237 = vmatprep.subr.bf16.mxu0 0
    %2238 = vmatpush1.bf16.msra.mxu0 %v2158
    %2239 = vmatprep.mubr.bf16.mxu0 %v1941
    %2240 = vmatmul.mubr.bf16.gmra.mrb[0].mxu0 %v1940
    %v2241 = vpop.f32.mrb[0].mxu0
    %v2242 = vadd.f32 %v2013, %v2241
    %v2243 = vpop.f32.mrb[0].mxu0
    %v2244 = vpop.f32.mrb[0].mxu0
    %v2245 = vadd.f32 %v2013, %v2244
    %v2246 = vpop.f32.mrb[0].mxu0
    %2247 = vdwg.mxu0
    %2248 = vmatprep.subr.bf16.mxu0 0
    %2249 = vmatpush1.bf16.msra.mxu0 %v2159
    %2250 = vmatprep.subr.bf16.mxu0 0
    %2251 = vmatpush1.bf16.msra.mxu0 %v2160
    %2252 = vmatprep.subr.bf16.mxu0 0
    %2253 = vmatpush1.bf16.msra.mxu0 %v2161
    %2254 = vmatprep.subr.bf16.mxu0 0
    %2255 = vmatpush1.bf16.msra.mxu0 %v2162
    %2256 = vmatprep.subr.bf16.mxu0 0
    %2257 = vmatpush1.bf16.msra.mxu0 %v2163
    %2258 = vmatprep.subr.bf16.mxu0 0
    %2259 = vmatpush1.bf16.msra.mxu0 %v2164
    %2260 = vmatprep.subr.bf16.mxu0 0
    %2261 = vmatpush1.bf16.msra.mxu0 %v2165
    %2262 = vmatprep.subr.bf16.mxu0 0
    %2263 = vmatpush1.bf16.msra.mxu0 %v2166
    %2264 = vmatprep.subr.bf16.mxu0 0
    %2265 = vmatpush1.bf16.msra.mxu0 %v2167
    %2266 = vmatprep.subr.bf16.mxu0 0
    %2267 = vmatpush1.bf16.msra.mxu0 %v2168
    %2268 = vmatprep.subr.bf16.mxu0 0
    %2269 = vmatpush1.bf16.msra.mxu0 %v2169
    %2270 = vmatprep.subr.bf16.mxu0 0
    %2271 = vmatpush1.bf16.msra.mxu0 %v2170
    %2272 = vmatprep.subr.bf16.mxu0 0
    %2273 = vmatpush1.bf16.msra.mxu0 %v2171
    %2274 = vmatprep.subr.bf16.mxu0 0
    %2275 = vmatpush1.bf16.msra.mxu0 %v2172
    %2276 = vmatprep.subr.bf16.mxu0 0
    %2277 = vmatpush1.bf16.msra.mxu0 %v2173
    %2278 = vmatprep.subr.bf16.mxu0 0
    %2279 = vmatpush1.bf16.msra.mxu0 %v2174
    %2280 = vmatprep.mubr.bf16.mxu0 %v1943
    %2281 = vmatmul.mubr.bf16.gmra.mrb[0].mxu0 %v1942
    %v2282 = vpop.f32.mrb[0].mxu0
    %v2283 = vadd.f32 %v2242, %v2282
    %v2284 = vpop.f32.mrb[0].mxu0
    %v2285 = vpop.f32.mrb[0].mxu0
    %v2286 = vadd.f32 %v2245, %v2285
    %v2287 = vpop.f32.mrb[0].mxu0
    %2288 = vdwg.mxu0
    %v2289 = vadd.f32 %v1565, %v2283
    %v2290 = vadd.f32 %v1566, %v2286
    %v2291 = vld [vmem:[#allocation8] sm:$0x1]
    %v2292 = vld [vmem:[#allocation10] sm:$0x1]
    %2293 = vadd.xlane.f32.xlu0 %v2289
    %v2294 = vpop.xlane.xlu0 %2293
    %2295 = vadd.xlane.f32.xlu0 %v2290
    %v2296 = vpop.xlane.xlu0 %2295
    %v2297 = vmul.f32 %v2294, %v181
    %v2298 = vmul.f32 %v2296, %v181
    %v2299 = vsub.f32 %v2289, %v2297
    %v2300 = vsub.f32 %v2290, %v2298
    %v2301 = vmul.f32 %v2299, %v2299
    %v2302 = vmul.f32 %v2300, %v2300
    %2303 = vadd.xlane.f32.xlu0 %v2301
    %v2304 = vpop.xlane.xlu0 %2303
    %2305 = vadd.xlane.f32.xlu0 %v2302
    %v2306 = vpop.xlane.xlu0 %2305
    %v2307 = vmul.f32 %v2304, %v181
    %v2308 = vmul.f32 %v2306, %v181
    %v2309 = vadd.f32 %v2307, 1e-05
    %v2310 = vadd.f32 %v2308, 1e-05
    %v2311 = vrsqrt.pop %v2309
    %v2312 = vrsqrt.pop %v2310
    %v2313 = vmul.f32 %v2299, %v2311
    %v2314 = vmul.f32 %v2300, %v2312
    %v2316 = vlaneseq
    %v2317 = vshrl.u32 %v2316, 7
    %v2318 = vsub.s32 0, %v2317
    %v2319 = vrot.slane %v2291, %v2318
    %v2321 = vmul.f32 %v2313, %v2319
    %v2322 = vmul.f32 %v2314, %v2319
    %v2324 = vlaneseq
    %v2325 = vshrl.u32 %v2324, 7
    %v2326 = vsub.s32 0, %v2325
    %v2327 = vrot.slane %v2292, %v2326
    %v2329 = vadd.f32 %v2321, %v2327
    %v2330 = vadd.f32 %v2322, %v2327
    %v2331 = vpack.c.bf16 %v2330, %v2329
    %s2332 = scalar_lea.vmem %s4, 192
    %v2333 = vld [vmem:[%s2332] sm:$0xff]
    %v2334 = vld [vmem:[%s2332 + $0x8] sm:$0xf]
    %v2335 = vld [vmem:[%s2332 + $0xc] sm:$0xff]
    %v2336 = vld [vmem:[%s2332 + $0x14] sm:$0xf]
    %v2337 = vld [vmem:[%s2332 + $0x18] sm:$0xff]
    %v2338 = vld [vmem:[%s2332 + $0x20] sm:$0xf]
    %v2339 = vld [vmem:[%s2332 + $0x24] sm:$0xff]
    %v2340 = vld [vmem:[%s2332 + $0x2c] sm:$0xf]
    %v2341 = vld [vmem:[%s2332 + $0x30] sm:$0xff]
    %v2342 = vld [vmem:[%s2332 + $0x38] sm:$0xf]
    %v2343 = vld [vmem:[%s2332 + $0x3c] sm:$0xff]
    %v2344 = vld [vmem:[%s2332 + $0x44] sm:$0xf]
    %v2345 = vld [vmem:[%s2332 + $0x48] sm:$0xff]
    %v2346 = vld [vmem:[%s2332 + $0x50] sm:$0xf]
    %v2347 = vld [vmem:[%s2332 + $0x54] sm:$0xff]
    %v2348 = vld [vmem:[%s2332 + $0x5c] sm:$0xf]
    %v2349 = vld [vmem:[%s2332 + $0x60] sm:$0xff]
    %v2350 = vld [vmem:[%s2332 + $0x68] sm:$0xf]
    %v2351 = vld [vmem:[%s2332 + $0x6c] sm:$0xff]
    %v2352 = vld [vmem:[%s2332 + $0x74] sm:$0xf]
    %v2353 = vld [vmem:[%s2332 + $0x78] sm:$0xff]
    %v2354 = vld [vmem:[%s2332 + $0x80] sm:$0xf]
    %v2355 = vld [vmem:[%s2332 + $0x84] sm:$0xff]
    %v2356 = vld [vmem:[%s2332 + $0x8c] sm:$0xf]
    %v2357 = vld [vmem:[%s2332 + $0x90] sm:$0xff]
    %v2358 = vld [vmem:[%s2332 + $0x98] sm:$0xf]
    %v2359 = vld [vmem:[%s2332 + $0x9c] sm:$0xff]
    %v2360 = vld [vmem:[%s2332 + $0xa4] sm:$0xf]
    %v2361 = vld [vmem:[%s2332 + $0xa8] sm:$0xff]
    %v2362 = vld [vmem:[%s2332 + $0xb0] sm:$0xf]
    %v2363 = vld [vmem:[%s2332 + $0xb4] sm:$0xff]
    %v2364 = vld [vmem:[%s2332 + $0xbc] sm:$0xf]
    %s2365 = scalar_lea.vmem %s5, 3
    %v2366 = vld [vmem:[%s2365] sm:$0x7]
    %v2368 = vlaneseq
    %v2369 = vshrl.u32 %v2368, 7
    %v2370 = vsub.s32 0, %v2369
    %v2371 = vrot.slane %v2366, %v2370
    %v2372 = vlaneseq
    %v2373 = vshrl.u32 %v2372, 7
    %v2374 = vsub.s32 1, %v2373
    %v2375 = vrot.slane %v2366, %v2374
    %v2376 = vlaneseq
    %v2377 = vshrl.u32 %v2376, 7
    %v2378 = vsub.s32 2, %v2377
    %v2379 = vrot.slane %v2366, %v2378
    %v2415 = vunpack.c.l.b16 %v2333
    %v2416 = vunpack.c.h.b16 %v2333
    %v2417 = vunpack.c.l.b16 %v2334
    %v2418 = vunpack.c.l.b16 %v2335
    %v2419 = vunpack.c.h.b16 %v2335
    %v2420 = vunpack.c.l.b16 %v2336
    %v2421 = vunpack.c.l.b16 %v2337
    %v2422 = vunpack.c.h.b16 %v2337
    %v2423 = vunpack.c.l.b16 %v2338
    %v2424 = vunpack.c.l.b16 %v2339
    %v2425 = vunpack.c.h.b16 %v2339
    %v2426 = vunpack.c.l.b16 %v2340
    %v2427 = vunpack.c.l.b16 %v2341
    %v2428 = vunpack.c.h.b16 %v2341
    %v2429 = vunpack.c.l.b16 %v2342
    %v2430 = vunpack.c.l.b16 %v2343
    %v2431 = vunpack.c.h.b16 %v2343
    %v2432 = vunpack.c.l.b16 %v2344
    %v2433 = vunpack.c.l.b16 %v2345
    %v2434 = vunpack.c.h.b16 %v2345
    %v2435 = vunpack.c.l.b16 %v2346
    %v2436 = vunpack.c.l.b16 %v2347
    %v2437 = vunpack.c.h.b16 %v2347
    %v2438 = vunpack.c.l.b16 %v2348
    %v2439 = vunpack.c.l.b16 %v2349
    %v2440 = vunpack.c.h.b16 %v2349
    %v2441 = vunpack.c.l.b16 %v2350
    %v2442 = vunpack.c.l.b16 %v2351
    %v2443 = vunpack.c.h.b16 %v2351
    %v2444 = vunpack.c.l.b16 %v2352
    %v2445 = vunpack.c.l.b16 %v2353
    %v2446 = vunpack.c.h.b16 %v2353
    %v2447 = vunpack.c.l.b16 %v2354
    %v2448 = vunpack.c.l.b16 %v2355
    %v2449 = vunpack.c.h.b16 %v2355
    %v2450 = vunpack.c.l.b16 %v2356
    %v2451 = vunpack.c.l.b16 %v2357
    %v2452 = vunpack.c.h.b16 %v2357
    %v2453 = vunpack.c.l.b16 %v2358
    %v2454 = vunpack.c.l.b16 %v2359
    %v2455 = vunpack.c.h.b16 %v2359
    %v2456 = vunpack.c.l.b16 %v2360
    %v2457 = vunpack.c.l.b16 %v2361
    %v2458 = vunpack.c.h.b16 %v2361
    %v2459 = vunpack.c.l.b16 %v2362
    %v2460 = vunpack.c.l.b16 %v2363
    %v2461 = vunpack.c.h.b16 %v2363
    %v2462 = vunpack.c.l.b16 %v2364
    %v2463 = vpack.c.b16 %v2418, %v2415
    %v2464 = vpack.c.b16 %v2419, %v2416
    %v2465 = vpack.c.b16 %v2420, %v2417
    %v2466 = vpack.c.b16 %v2424, %v2421
    %v2467 = vpack.c.b16 %v2425, %v2422
    %v2468 = vpack.c.b16 %v2426, %v2423
    %v2469 = vpack.c.b16 %v2430, %v2427
    %v2470 = vpack.c.b16 %v2431, %v2428
    %v2471 = vpack.c.b16 %v2432, %v2429
    %v2472 = vpack.c.b16 %v2436, %v2433
    %v2473 = vpack.c.b16 %v2437, %v2434
    %v2474 = vpack.c.b16 %v2438, %v2435
    %v2475 = vpack.c.b16 %v2442, %v2439
    %v2476 = vpack.c.b16 %v2443, %v2440
    %v2477 = vpack.c.b16 %v2444, %v2441
    %v2478 = vpack.c.b16 %v2448, %v2445
    %v2479 = vpack.c.b16 %v2449, %v2446
    %v2480 = vpack.c.b16 %v2450, %v2447
    %v2481 = vpack.c.b16 %v2454, %v2451
    %v2482 = vpack.c.b16 %v2455, %v2452
    %v2483 = vpack.c.b16 %v2456, %v2453
    %v2484 = vpack.c.b16 %v2460, %v2457
    %v2485 = vpack.c.b16 %v2461, %v2458
    %v2486 = vpack.c.b16 %v2462, %v2459
    %2511 = vmatprep.subr.bf16.mxu0 %v2464
    %2512 = vmatpush1.bf16.msra.mxu0 %v2463
    %2513 = vmatprep.subr.bf16.mxu0 %v2467
    %2514 = vmatpush1.bf16.msra.mxu0 %v2466
    %2515 = vmatprep.subr.bf16.mxu0 %v2470
    %2516 = vmatpush1.bf16.msra.mxu0 %v2469
    %2517 = vmatprep.subr.bf16.mxu0 %v2473
    %2518 = vmatpush1.bf16.msra.mxu0 %v2472
    %2519 = vmatprep.subr.bf16.mxu0 %v2476
    %2520 = vmatpush1.bf16.msra.mxu0 %v2475
    %2521 = vmatprep.subr.bf16.mxu0 %v2479
    %2522 = vmatpush1.bf16.msra.mxu0 %v2478
    %2523 = vmatprep.subr.bf16.mxu0 %v2482
    %2524 = vmatpush1.bf16.msra.mxu0 %v2481
    %2525 = vmatprep.subr.bf16.mxu0 %v2485
    %2526 = vmatpush1.bf16.msra.mxu0 %v2484
    %2527 = vmatprep.subr.bf16.mxu0 0
    %2528 = vmatpush1.bf16.msra.mxu0 0
    %2529 = vmatprep.subr.bf16.mxu0 0
    %2530 = vmatpush1.bf16.msra.mxu0 0
    %2531 = vmatprep.subr.bf16.mxu0 0
    %2532 = vmatpush1.bf16.msra.mxu0 0
    %2533 = vmatprep.subr.bf16.mxu0 0
    %2534 = vmatpush1.bf16.msra.mxu0 0
    %2535 = vmatprep.subr.bf16.mxu0 0
    %2536 = vmatpush1.bf16.msra.mxu0 0
    %2537 = vmatprep.subr.bf16.mxu0 0
    %2538 = vmatpush1.bf16.msra.mxu0 0
    %2539 = vmatprep.subr.bf16.mxu0 0
    %2540 = vmatpush1.bf16.msra.mxu0 0
    %2541 = vmatprep.subr.bf16.mxu0 0
    %2542 = vmatpush1.bf16.msra.mxu0 0
    %2543 = vmatprep.mubr.bf16.mxu0 0
    %2544 = vmatmul.mubr.bf16.gmra.mrb[0].mxu0 %v2331
    %v2545 = vpop.f32.mrb[0].mxu0
    %v2546 = vadd.f32 %v2371, %v2545
    %v2547 = vpop.f32.mrb[0].mxu0
    %v2548 = vadd.f32 %v2375, %v2547
    %v2549 = vpop.f32.mrb[0].mxu0
    %v2550 = vadd.f32 %v2371, %v2549
    %v2551 = vpop.f32.mrb[0].mxu0
    %v2552 = vadd.f32 %v2375, %v2551
    %2553 = vdwg.mxu0
    %2554 = vmatprep.subr.bf16.mxu0 0
    %2555 = vmatpush1.bf16.msra.mxu0 %v2465
    %2556 = vmatprep.subr.bf16.mxu0 0
    %2557 = vmatpush1.bf16.msra.mxu0 %v2468
    %2558 = vmatprep.subr.bf16.mxu0 0
    %2559 = vmatpush1.bf16.msra.mxu0 %v2471
    %2560 = vmatprep.subr.bf16.mxu0 0
    %2561 = vmatpush1.bf16.msra.mxu0 %v2474
    %2562 = vmatprep.subr.bf16.mxu0 0
    %2563 = vmatpush1.bf16.msra.mxu0 %v2477
    %2564 = vmatprep.subr.bf16.mxu0 0
    %2565 = vmatpush1.bf16.msra.mxu0 %v2480
    %2566 = vmatprep.subr.bf16.mxu0 0
    %2567 = vmatpush1.bf16.msra.mxu0 %v2483
    %2568 = vmatprep.subr.bf16.mxu0 0
    %2569 = vmatpush1.bf16.msra.mxu0 %v2486
    %2570 = vmatprep.subr.bf16.mxu0 0
    %2571 = vmatpush1.bf16.msra.mxu0 0
    %2572 = vmatprep.subr.bf16.mxu0 0
    %2573 = vmatpush1.bf16.msra.mxu0 0
    %2574 = vmatprep.subr.bf16.mxu0 0
    %2575 = vmatpush1.bf16.msra.mxu0 0
    %2576 = vmatprep.subr.bf16.mxu0 0
    %2577 = vmatpush1.bf16.msra.mxu0 0
    %2578 = vmatprep.subr.bf16.mxu0 0
    %2579 = vmatpush1.bf16.msra.mxu0 0
    %2580 = vmatprep.subr.bf16.mxu0 0
    %2581 = vmatpush1.bf16.msra.mxu0 0
    %2582 = vmatprep.subr.bf16.mxu0 0
    %2583 = vmatpush1.bf16.msra.mxu0 0
    %2584 = vmatprep.subr.bf16.mxu0 0
    %2585 = vmatpush1.bf16.msra.mxu0 0
    %2586 = vmatprep.mubr.bf16.mxu0 0
    %2587 = vmatmul.mubr.bf16.gmra.mrb[0].mxu0 %v2331
    %v2588 = vpop.f32.mrb[0].mxu0
    %v2589 = vadd.f32 %v2379, %v2588
    %v2590 = vpop.f32.mrb[0].mxu0
    %v2591 = vpop.f32.mrb[0].mxu0
    %v2592 = vadd.f32 %v2379, %v2591
    %v2593 = vpop.f32.mrb[0].mxu0
    %2594 = vdwg.mxu0
    %v2595 = vpack.c.bf16 %v2546, %v2546
    %v2596 = vpack.c.bf16 %v2550, %v2550
    %v2597 = vpack.c.bf16 %v2548, %v2548
    %v2598 = vpack.c.bf16 %v2552, %v2552
    %v2600 = vsel %vm496, %v2595, 0
    %v2603 = vsel %vm496, %v2597, 0
    %2605 = vmatprep.subr.bf16.mxu0 0
    %2606 = vmatpush1.bf16.xpose.msra.mxu0 %v2603
    %2607 = vmatprep.subr.bf16.mxu0 0
    %2608 = vmatpush1.bf16.xpose.msra.mxu0 0
    %2609 = vmatprep.subr.bf16.mxu0 0
    %2610 = vmatpush1.bf16.xpose.msra.mxu0 0
    %2611 = vmatprep.subr.bf16.mxu0 0
    %2612 = vmatpush1.bf16.xpose.msra.mxu0 0
    %2613 = vmatprep.subr.bf16.mxu0 0
    %2614 = vmatpush1.bf16.xpose.msra.mxu0 0
    %2615 = vmatprep.subr.bf16.mxu0 0
    %2616 = vmatpush1.bf16.xpose.msra.mxu0 0
    %2617 = vmatprep.subr.bf16.mxu0 0
    %2618 = vmatpush1.bf16.xpose.msra.mxu0 0
    %2619 = vmatprep.subr.bf16.mxu0 0
    %2620 = vmatpush1.bf16.xpose.msra.mxu0 0
    %2621 = vmatprep.subr.bf16.mxu0 0
    %2622 = vmatpush1.bf16.xpose.msra.mxu0 0
    %2623 = vmatprep.subr.bf16.mxu0 0
    %2624 = vmatpush1.bf16.xpose.msra.mxu0 0
    %2625 = vmatprep.subr.bf16.mxu0 0
    %2626 = vmatpush1.bf16.xpose.msra.mxu0 0
    %2627 = vmatprep.subr.bf16.mxu0 0
    %2628 = vmatpush1.bf16.xpose.msra.mxu0 0
    %2629 = vmatprep.subr.bf16.mxu0 0
    %2630 = vmatpush1.bf16.xpose.msra.mxu0 0
    %2631 = vmatprep.subr.bf16.mxu0 0
    %2632 = vmatpush1.bf16.xpose.msra.mxu0 0
    %2633 = vmatprep.subr.bf16.mxu0 0
    %2634 = vmatpush1.bf16.xpose.msra.mxu0 0
    %2635 = vmatprep.subr.bf16.mxu0 0
    %2636 = vmatpush1.bf16.xpose.msra.mxu0 0
    %2637 = vmatprep.mubr.bf16.mxu0 0
    %2638 = vmatmul.mubr.bf16.gmra.mrb[0].mxu0 %v2600
    %v2639 = vpop.f32.mrb[0].mxu0
    %v2640 = vadd.f32 %v489, %v2639
    %v2641 = vpop.f32.mrb[0].mxu0
    %v2642 = vpop.f32.mrb[0].mxu0
    %v2643 = vpop.f32.mrb[0].mxu0
    %2644 = vdwg.mxu0
    %v2646 = vsel %vm496, %v2596, 0
    %v2649 = vsel %vm496, %v2598, 0
    %2651 = vmatprep.subr.bf16.mxu0 0
    %2652 = vmatpush1.bf16.xpose.msra.mxu0 %v2649
    %2653 = vmatprep.subr.bf16.mxu0 0
    %2654 = vmatpush1.bf16.xpose.msra.mxu0 0
    %2655 = vmatprep.subr.bf16.mxu0 0
    %2656 = vmatpush1.bf16.xpose.msra.mxu0 0
    %2657 = vmatprep.subr.bf16.mxu0 0
    %2658 = vmatpush1.bf16.xpose.msra.mxu0 0
    %2659 = vmatprep.subr.bf16.mxu0 0
    %2660 = vmatpush1.bf16.xpose.msra.mxu0 0
    %2661 = vmatprep.subr.bf16.mxu0 0
    %2662 = vmatpush1.bf16.xpose.msra.mxu0 0
    %2663 = vmatprep.subr.bf16.mxu0 0
    %2664 = vmatpush1.bf16.xpose.msra.mxu0 0
    %2665 = vmatprep.subr.bf16.mxu0 0
    %2666 = vmatpush1.bf16.xpose.msra.mxu0 0
    %2667 = vmatprep.subr.bf16.mxu0 0
    %2668 = vmatpush1.bf16.xpose.msra.mxu0 0
    %2669 = vmatprep.subr.bf16.mxu0 0
    %2670 = vmatpush1.bf16.xpose.msra.mxu0 0
    %2671 = vmatprep.subr.bf16.mxu0 0
    %2672 = vmatpush1.bf16.xpose.msra.mxu0 0
    %2673 = vmatprep.subr.bf16.mxu0 0
    %2674 = vmatpush1.bf16.xpose.msra.mxu0 0
    %2675 = vmatprep.subr.bf16.mxu0 0
    %2676 = vmatpush1.bf16.xpose.msra.mxu0 0
    %2677 = vmatprep.subr.bf16.mxu0 0
    %2678 = vmatpush1.bf16.xpose.msra.mxu0 0
    %2679 = vmatprep.subr.bf16.mxu0 0
    %2680 = vmatpush1.bf16.xpose.msra.mxu0 0
    %2681 = vmatprep.subr.bf16.mxu0 0
    %2682 = vmatpush1.bf16.xpose.msra.mxu0 0
    %2683 = vmatprep.mubr.bf16.mxu0 0
    %2684 = vmatmul.mubr.bf16.gmra.mrb[0].mxu0 %v2646
    %v2685 = vpop.f32.mrb[0].mxu0
    %v2686 = vadd.f32 %v493, %v2685
    %v2687 = vpop.f32.mrb[0].mxu0
    %v2688 = vpop.f32.mrb[0].mxu0
    %v2689 = vpop.f32.mrb[0].mxu0
    %2690 = vdwg.mxu0
    %v2691 = vsel %vm589, %v2640, -inf
    %2692 = vmax.xlane.f32.xlu0 %v2691
    %v2693 = vpop.xlane.xlu0 %2692
    %v2694 = vsel %vm589, %v2686, -inf
    %2695 = vmax.xlane.f32.xlu0 %v2694
    %v2696 = vpop.xlane.xlu0 %2695
    %v2697 = vsub.f32 %v2640, %v2693
    %v2698 = vsub.f32 %v2686, %v2696
    %v2699 = vmul.f32 %v2697, 1.442695
    %v2700 = vpow.pop %v2699
    %v2701 = vmul.f32 %v2698, 1.442695
    %v2702 = vpow.pop %v2701
    %v2703 = vsel %vm589, %v2700, 0.0
    %2704 = vadd.xlane.f32.xlu0 %v2703
    %v2705 = vpop.xlane.xlu0 %2704
    %v2706 = vsel %vm589, %v2702, 0.0
    %2707 = vadd.xlane.f32.xlu0 %v2706
    %v2708 = vpop.xlane.xlu0 %2707
    %v2709 = vrcp.pop %v2705
    %v2710 = vrcp.pop %v2708
    %v2711 = vmul.f32 %v2700, %v2709
    %v2712 = vmul.f32 %v2702, %v2710
    %v2713 = vpack.c.bf16 %v2711, %v2711
    %v2714 = vpack.c.bf16 %v2712, %v2712
    %v2715 = vpack.c.bf16 %v2589, %v2589
    %v2716 = vpack.c.bf16 %v2592, %v2592
    %v2718 = vsel %vm589, %v2713, 0
    %v2721 = vsel %vm619, %v2715, 0
    %2723 = vmatprep.subr.bf16.mxu0 0
    %2724 = vmatpush1.bf16.msra.mxu0 %v2721
    %2725 = vmatprep.subr.bf16.mxu0 0
    %2726 = vmatpush1.bf16.msra.mxu0 0
    %2727 = vmatprep.subr.bf16.mxu0 0
    %2728 = vmatpush1.bf16.msra.mxu0 0
    %2729 = vmatprep.subr.bf16.mxu0 0
    %2730 = vmatpush1.bf16.msra.mxu0 0
    %2731 = vmatprep.subr.bf16.mxu0 0
    %2732 = vmatpush1.bf16.msra.mxu0 0
    %2733 = vmatprep.subr.bf16.mxu0 0
    %2734 = vmatpush1.bf16.msra.mxu0 0
    %2735 = vmatprep.subr.bf16.mxu0 0
    %2736 = vmatpush1.bf16.msra.mxu0 0
    %2737 = vmatprep.subr.bf16.mxu0 0
    %2738 = vmatpush1.bf16.msra.mxu0 0
    %2739 = vmatprep.subr.bf16.mxu0 0
    %2740 = vmatpush1.bf16.msra.mxu0 0
    %2741 = vmatprep.subr.bf16.mxu0 0
    %2742 = vmatpush1.bf16.msra.mxu0 0
    %2743 = vmatprep.subr.bf16.mxu0 0
    %2744 = vmatpush1.bf16.msra.mxu0 0
    %2745 = vmatprep.subr.bf16.mxu0 0
    %2746 = vmatpush1.bf16.msra.mxu0 0
    %2747 = vmatprep.subr.bf16.mxu0 0
    %2748 = vmatpush1.bf16.msra.mxu0 0
    %2749 = vmatprep.subr.bf16.mxu0 0
    %2750 = vmatpush1.bf16.msra.mxu0 0
    %2751 = vmatprep.subr.bf16.mxu0 0
    %2752 = vmatpush1.bf16.msra.mxu0 0
    %2753 = vmatprep.subr.bf16.mxu0 0
    %2754 = vmatpush1.bf16.msra.mxu0 0
    %2755 = vmatprep.mubr.bf16.mxu0 0
    %2756 = vmatmul.mubr.bf16.gmra.mrb[0].mxu0 %v2718
    %v2757 = vpop.f32.mrb[0].mxu0
    %v2758 = vadd.f32 0.0, %v2757
    %v2759 = vpop.f32.mrb[0].mxu0
    %v2760 = vpop.f32.mrb[0].mxu0
    %v2761 = vpop.f32.mrb[0].mxu0
    %2762 = vdwg.mxu0
    %v2764 = vsel %vm589, %v2714, 0
    %v2767 = vsel %vm619, %v2716, 0
    %2769 = vmatprep.subr.bf16.mxu0 0
    %2770 = vmatpush1.bf16.msra.mxu0 %v2767
    %2771 = vmatprep.subr.bf16.mxu0 0
    %2772 = vmatpush1.bf16.msra.mxu0 0
    %2773 = vmatprep.subr.bf16.mxu0 0
    %2774 = vmatpush1.bf16.msra.mxu0 0
    %2775 = vmatprep.subr.bf16.mxu0 0
    %2776 = vmatpush1.bf16.msra.mxu0 0
    %2777 = vmatprep.subr.bf16.mxu0 0
    %2778 = vmatpush1.bf16.msra.mxu0 0
    %2779 = vmatprep.subr.bf16.mxu0 0
    %2780 = vmatpush1.bf16.msra.mxu0 0
    %2781 = vmatprep.subr.bf16.mxu0 0
    %2782 = vmatpush1.bf16.msra.mxu0 0
    %2783 = vmatprep.subr.bf16.mxu0 0
    %2784 = vmatpush1.bf16.msra.mxu0 0
    %2785 = vmatprep.subr.bf16.mxu0 0
    %2786 = vmatpush1.bf16.msra.mxu0 0
    %2787 = vmatprep.subr.bf16.mxu0 0
    %2788 = vmatpush1.bf16.msra.mxu0 0
    %2789 = vmatprep.subr.bf16.mxu0 0
    %2790 = vmatpush1.bf16.msra.mxu0 0
    %2791 = vmatprep.subr.bf16.mxu0 0
    %2792 = vmatpush1.bf16.msra.mxu0 0
    %2793 = vmatprep.subr.bf16.mxu0 0
    %2794 = vmatpush1.bf16.msra.mxu0 0
    %2795 = vmatprep.subr.bf16.mxu0 0
    %2796 = vmatpush1.bf16.msra.mxu0 0
    %2797 = vmatprep.subr.bf16.mxu0 0
    %2798 = vmatpush1.bf16.msra.mxu0 0
    %2799 = vmatprep.subr.bf16.mxu0 0
    %2800 = vmatpush1.bf16.msra.mxu0 0
    %2801 = vmatprep.mubr.bf16.mxu0 0
    %2802 = vmatmul.mubr.bf16.gmra.mrb[0].mxu0 %v2764
    %v2803 = vpop.f32.mrb[0].mxu0
    %v2804 = vadd.f32 0.0, %v2803
    %v2805 = vpop.f32.mrb[0].mxu0
    %v2806 = vpop.f32.mrb[0].mxu0
    %v2807 = vpop.f32.mrb[0].mxu0
    %2808 = vdwg.mxu0
    %2809 = vst.msk [vmem:[#allocation2] sm:$0xff] %vm496, %v2758
    %2810 = vst.msk [vmem:[#allocation2 + $0x8] sm:$0xff] %vm496, %v2804
    %2812 = vrot.lane.b32.xlu0 %v2595, 96
    %v2813 = vpop.permute.xlu0 %2812
    %2815 = vrot.lane.b32.xlu0 %v2597, 96
    %v2816 = vpop.permute.xlu0 %2815
    %v2818 = vsel %vm496, %v2813, 0
    %v2821 = vsel %vm496, %v2816, 0
    %2823 = vmatprep.subr.bf16.mxu0 0
    %2824 = vmatpush1.bf16.xpose.msra.mxu0 %v2821
    %2825 = vmatprep.subr.bf16.mxu0 0
    %2826 = vmatpush1.bf16.xpose.msra.mxu0 0
    %2827 = vmatprep.subr.bf16.mxu0 0
    %2828 = vmatpush1.bf16.xpose.msra.mxu0 0
    %2829 = vmatprep.subr.bf16.mxu0 0
    %2830 = vmatpush1.bf16.xpose.msra.mxu0 0
    %2831 = vmatprep.subr.bf16.mxu0 0
    %2832 = vmatpush1.bf16.xpose.msra.mxu0 0
    %2833 = vmatprep.subr.bf16.mxu0 0
    %2834 = vmatpush1.bf16.xpose.msra.mxu0 0
    %2835 = vmatprep.subr.bf16.mxu0 0
    %2836 = vmatpush1.bf16.xpose.msra.mxu0 0
    %2837 = vmatprep.subr.bf16.mxu0 0
    %2838 = vmatpush1.bf16.xpose.msra.mxu0 0
    %2839 = vmatprep.subr.bf16.mxu0 0
    %2840 = vmatpush1.bf16.xpose.msra.mxu0 0
    %2841 = vmatprep.subr.bf16.mxu0 0
    %2842 = vmatpush1.bf16.xpose.msra.mxu0 0
    %2843 = vmatprep.subr.bf16.mxu0 0
    %2844 = vmatpush1.bf16.xpose.msra.mxu0 0
    %2845 = vmatprep.subr.bf16.mxu0 0
    %2846 = vmatpush1.bf16.xpose.msra.mxu0 0
    %2847 = vmatprep.subr.bf16.mxu0 0
    %2848 = vmatpush1.bf16.xpose.msra.mxu0 0
    %2849 = vmatprep.subr.bf16.mxu0 0
    %2850 = vmatpush1.bf16.xpose.msra.mxu0 0
    %2851 = vmatprep.subr.bf16.mxu0 0
    %2852 = vmatpush1.bf16.xpose.msra.mxu0 0
    %2853 = vmatprep.subr.bf16.mxu0 0
    %2854 = vmatpush1.bf16.xpose.msra.mxu0 0
    %2855 = vmatprep.mubr.bf16.mxu0 0
    %2856 = vmatmul.mubr.bf16.gmra.mrb[0].mxu0 %v2818
    %v2857 = vpop.f32.mrb[0].mxu0
    %v2858 = vadd.f32 %v489, %v2857
    %v2859 = vpop.f32.mrb[0].mxu0
    %v2860 = vpop.f32.mrb[0].mxu0
    %v2861 = vpop.f32.mrb[0].mxu0
    %2862 = vdwg.mxu0
    %2864 = vrot.lane.b32.xlu0 %v2596, 96
    %v2865 = vpop.permute.xlu0 %2864
    %2867 = vrot.lane.b32.xlu0 %v2598, 96
    %v2868 = vpop.permute.xlu0 %2867
    %v2870 = vsel %vm496, %v2865, 0
    %v2873 = vsel %vm496, %v2868, 0
    %2875 = vmatprep.subr.bf16.mxu0 0
    %2876 = vmatpush1.bf16.xpose.msra.mxu0 %v2873
    %2877 = vmatprep.subr.bf16.mxu0 0
    %2878 = vmatpush1.bf16.xpose.msra.mxu0 0
    %2879 = vmatprep.subr.bf16.mxu0 0
    %2880 = vmatpush1.bf16.xpose.msra.mxu0 0
    %2881 = vmatprep.subr.bf16.mxu0 0
    %2882 = vmatpush1.bf16.xpose.msra.mxu0 0
    %2883 = vmatprep.subr.bf16.mxu0 0
    %2884 = vmatpush1.bf16.xpose.msra.mxu0 0
    %2885 = vmatprep.subr.bf16.mxu0 0
    %2886 = vmatpush1.bf16.xpose.msra.mxu0 0
    %2887 = vmatprep.subr.bf16.mxu0 0
    %2888 = vmatpush1.bf16.xpose.msra.mxu0 0
    %2889 = vmatprep.subr.bf16.mxu0 0
    %2890 = vmatpush1.bf16.xpose.msra.mxu0 0
    %2891 = vmatprep.subr.bf16.mxu0 0
    %2892 = vmatpush1.bf16.xpose.msra.mxu0 0
    %2893 = vmatprep.subr.bf16.mxu0 0
    %2894 = vmatpush1.bf16.xpose.msra.mxu0 0
    %2895 = vmatprep.subr.bf16.mxu0 0
    %2896 = vmatpush1.bf16.xpose.msra.mxu0 0
    %2897 = vmatprep.subr.bf16.mxu0 0
    %2898 = vmatpush1.bf16.xpose.msra.mxu0 0
    %2899 = vmatprep.subr.bf16.mxu0 0
    %2900 = vmatpush1.bf16.xpose.msra.mxu0 0
    %2901 = vmatprep.subr.bf16.mxu0 0
    %2902 = vmatpush1.bf16.xpose.msra.mxu0 0
    %2903 = vmatprep.subr.bf16.mxu0 0
    %2904 = vmatpush1.bf16.xpose.msra.mxu0 0
    %2905 = vmatprep.subr.bf16.mxu0 0
    %2906 = vmatpush1.bf16.xpose.msra.mxu0 0
    %2907 = vmatprep.mubr.bf16.mxu0 0
    %2908 = vmatmul.mubr.bf16.gmra.mrb[0].mxu0 %v2870
    %v2909 = vpop.f32.mrb[0].mxu0
    %v2910 = vadd.f32 %v493, %v2909
    %v2911 = vpop.f32.mrb[0].mxu0
    %v2912 = vpop.f32.mrb[0].mxu0
    %v2913 = vpop.f32.mrb[0].mxu0
    %2914 = vdwg.mxu0
    %v2915 = vsel %vm589, %v2858, -inf
    %2916 = vmax.xlane.f32.xlu0 %v2915
    %v2917 = vpop.xlane.xlu0 %2916
    %v2918 = vsel %vm589, %v2910, -inf
    %2919 = vmax.xlane.f32.xlu0 %v2918
    %v2920 = vpop.xlane.xlu0 %2919
    %v2921 = vsub.f32 %v2858, %v2917
    %v2922 = vsub.f32 %v2910, %v2920
    %v2923 = vmul.f32 %v2921, 1.442695
    %v2924 = vpow.pop %v2923
    %v2925 = vmul.f32 %v2922, 1.442695
    %v2926 = vpow.pop %v2925
    %v2927 = vsel %vm589, %v2924, 0.0
    %2928 = vadd.xlane.f32.xlu0 %v2927
    %v2929 = vpop.xlane.xlu0 %2928
    %v2930 = vsel %vm589, %v2926, 0.0
    %2931 = vadd.xlane.f32.xlu0 %v2930
    %v2932 = vpop.xlane.xlu0 %2931
    %v2933 = vrcp.pop %v2929
    %v2934 = vrcp.pop %v2932
    %v2935 = vmul.f32 %v2924, %v2933
    %v2936 = vmul.f32 %v2926, %v2934
    %v2937 = vpack.c.bf16 %v2935, %v2935
    %v2938 = vpack.c.bf16 %v2936, %v2936
    %2940 = vrot.lane.b32.xlu0 %v2715, 96
    %v2941 = vpop.permute.xlu0 %2940
    %v2943 = vsel %vm589, %v2937, 0
    %v2946 = vsel %vm619, %v2941, 0
    %2948 = vmatprep.subr.bf16.mxu0 0
    %2949 = vmatpush1.bf16.msra.mxu0 %v2946
    %2950 = vmatprep.subr.bf16.mxu0 0
    %2951 = vmatpush1.bf16.msra.mxu0 0
    %2952 = vmatprep.subr.bf16.mxu0 0
    %2953 = vmatpush1.bf16.msra.mxu0 0
    %2954 = vmatprep.subr.bf16.mxu0 0
    %2955 = vmatpush1.bf16.msra.mxu0 0
    %2956 = vmatprep.subr.bf16.mxu0 0
    %2957 = vmatpush1.bf16.msra.mxu0 0
    %2958 = vmatprep.subr.bf16.mxu0 0
    %2959 = vmatpush1.bf16.msra.mxu0 0
    %2960 = vmatprep.subr.bf16.mxu0 0
    %2961 = vmatpush1.bf16.msra.mxu0 0
    %2962 = vmatprep.subr.bf16.mxu0 0
    %2963 = vmatpush1.bf16.msra.mxu0 0
    %2964 = vmatprep.subr.bf16.mxu0 0
    %2965 = vmatpush1.bf16.msra.mxu0 0
    %2966 = vmatprep.subr.bf16.mxu0 0
    %2967 = vmatpush1.bf16.msra.mxu0 0
    %2968 = vmatprep.subr.bf16.mxu0 0
    %2969 = vmatpush1.bf16.msra.mxu0 0
    %2970 = vmatprep.subr.bf16.mxu0 0
    %2971 = vmatpush1.bf16.msra.mxu0 0
    %2972 = vmatprep.subr.bf16.mxu0 0
    %2973 = vmatpush1.bf16.msra.mxu0 0
    %2974 = vmatprep.subr.bf16.mxu0 0
    %2975 = vmatpush1.bf16.msra.mxu0 0
    %2976 = vmatprep.subr.bf16.mxu0 0
    %2977 = vmatpush1.bf16.msra.mxu0 0
    %2978 = vmatprep.subr.bf16.mxu0 0
    %2979 = vmatpush1.bf16.msra.mxu0 0
    %2980 = vmatprep.mubr.bf16.mxu0 0
    %2981 = vmatmul.mubr.bf16.gmra.mrb[0].mxu0 %v2943
    %v2982 = vpop.f32.mrb[0].mxu0
    %v2983 = vadd.f32 0.0, %v2982
    %v2984 = vpop.f32.mrb[0].mxu0
    %v2985 = vpop.f32.mrb[0].mxu0
    %v2986 = vpop.f32.mrb[0].mxu0
    %2987 = vdwg.mxu0
    %2989 = vrot.lane.b32.xlu0 %v2716, 96
    %v2990 = vpop.permute.xlu0 %2989
    %v2992 = vsel %vm589, %v2938, 0
    %v2995 = vsel %vm619, %v2990, 0
    %2997 = vmatprep.subr.bf16.mxu0 0
    %2998 = vmatpush1.bf16.msra.mxu0 %v2995
    %2999 = vmatprep.subr.bf16.mxu0 0
    %3000 = vmatpush1.bf16.msra.mxu0 0
    %3001 = vmatprep.subr.bf16.mxu0 0
    %3002 = vmatpush1.bf16.msra.mxu0 0
    %3003 = vmatprep.subr.bf16.mxu0 0
    %3004 = vmatpush1.bf16.msra.mxu0 0
    %3005 = vmatprep.subr.bf16.mxu0 0
    %3006 = vmatpush1.bf16.msra.mxu0 0
    %3007 = vmatprep.subr.bf16.mxu0 0
    %3008 = vmatpush1.bf16.msra.mxu0 0
    %3009 = vmatprep.subr.bf16.mxu0 0
    %3010 = vmatpush1.bf16.msra.mxu0 0
    %3011 = vmatprep.subr.bf16.mxu0 0
    %3012 = vmatpush1.bf16.msra.mxu0 0
    %3013 = vmatprep.subr.bf16.mxu0 0
    %3014 = vmatpush1.bf16.msra.mxu0 0
    %3015 = vmatprep.subr.bf16.mxu0 0
    %3016 = vmatpush1.bf16.msra.mxu0 0
    %3017 = vmatprep.subr.bf16.mxu0 0
    %3018 = vmatpush1.bf16.msra.mxu0 0
    %3019 = vmatprep.subr.bf16.mxu0 0
    %3020 = vmatpush1.bf16.msra.mxu0 0
    %3021 = vmatprep.subr.bf16.mxu0 0
    %3022 = vmatpush1.bf16.msra.mxu0 0
    %3023 = vmatprep.subr.bf16.mxu0 0
    %3024 = vmatpush1.bf16.msra.mxu0 0
    %3025 = vmatprep.subr.bf16.mxu0 0
    %3026 = vmatpush1.bf16.msra.mxu0 0
    %3027 = vmatprep.subr.bf16.mxu0 0
    %3028 = vmatpush1.bf16.msra.mxu0 0
    %3029 = vmatprep.mubr.bf16.mxu0 0
    %3030 = vmatmul.mubr.bf16.gmra.mrb[0].mxu0 %v2992
    %v3031 = vpop.f32.mrb[0].mxu0
    %v3032 = vadd.f32 0.0, %v3031
    %v3033 = vpop.f32.mrb[0].mxu0
    %v3034 = vpop.f32.mrb[0].mxu0
    %v3035 = vpop.f32.mrb[0].mxu0
    %3036 = vdwg.mxu0
    %3039 = vrot.lane.b32.xlu0 %v2983, 32
    %v3040 = vpop.permute.xlu0 %3039
    %3041 = vrot.lane.b32.xlu0 %v3032, 32
    %v3042 = vpop.permute.xlu0 %3041
    %3045 = vst.msk [vmem:[#allocation2] sm:$0xff] %vm945, %v3040
    %3046 = vst.msk [vmem:[#allocation2 + $0x8] sm:$0xff] %vm945, %v3042
    %3047 = vrot.lane.b32.xlu0 %v2595, 64
    %v3048 = vpop.permute.xlu0 %3047
    %3049 = vrot.lane.b32.xlu0 %v2597, 64
    %v3050 = vpop.permute.xlu0 %3049
    %v3052 = vsel %vm496, %v3048, 0
    %v3055 = vsel %vm496, %v3050, 0
    %3057 = vmatprep.subr.bf16.mxu0 0
    %3058 = vmatpush1.bf16.xpose.msra.mxu0 %v3055
    %3059 = vmatprep.subr.bf16.mxu0 0
    %3060 = vmatpush1.bf16.xpose.msra.mxu0 0
    %3061 = vmatprep.subr.bf16.mxu0 0
    %3062 = vmatpush1.bf16.xpose.msra.mxu0 0
    %3063 = vmatprep.subr.bf16.mxu0 0
    %3064 = vmatpush1.bf16.xpose.msra.mxu0 0
    %3065 = vmatprep.subr.bf16.mxu0 0
    %3066 = vmatpush1.bf16.xpose.msra.mxu0 0
    %3067 = vmatprep.subr.bf16.mxu0 0
    %3068 = vmatpush1.bf16.xpose.msra.mxu0 0
    %3069 = vmatprep.subr.bf16.mxu0 0
    %3070 = vmatpush1.bf16.xpose.msra.mxu0 0
    %3071 = vmatprep.subr.bf16.mxu0 0
    %3072 = vmatpush1.bf16.xpose.msra.mxu0 0
    %3073 = vmatprep.subr.bf16.mxu0 0
    %3074 = vmatpush1.bf16.xpose.msra.mxu0 0
    %3075 = vmatprep.subr.bf16.mxu0 0
    %3076 = vmatpush1.bf16.xpose.msra.mxu0 0
    %3077 = vmatprep.subr.bf16.mxu0 0
    %3078 = vmatpush1.bf16.xpose.msra.mxu0 0
    %3079 = vmatprep.subr.bf16.mxu0 0
    %3080 = vmatpush1.bf16.xpose.msra.mxu0 0
    %3081 = vmatprep.subr.bf16.mxu0 0
    %3082 = vmatpush1.bf16.xpose.msra.mxu0 0
    %3083 = vmatprep.subr.bf16.mxu0 0
    %3084 = vmatpush1.bf16.xpose.msra.mxu0 0
    %3085 = vmatprep.subr.bf16.mxu0 0
    %3086 = vmatpush1.bf16.xpose.msra.mxu0 0
    %3087 = vmatprep.subr.bf16.mxu0 0
    %3088 = vmatpush1.bf16.xpose.msra.mxu0 0
    %3089 = vmatprep.mubr.bf16.mxu0 0
    %3090 = vmatmul.mubr.bf16.gmra.mrb[0].mxu0 %v3052
    %v3091 = vpop.f32.mrb[0].mxu0
    %v3092 = vadd.f32 %v489, %v3091
    %v3093 = vpop.f32.mrb[0].mxu0
    %v3094 = vpop.f32.mrb[0].mxu0
    %v3095 = vpop.f32.mrb[0].mxu0
    %3096 = vdwg.mxu0
    %3097 = vrot.lane.b32.xlu0 %v2596, 64
    %v3098 = vpop.permute.xlu0 %3097
    %3099 = vrot.lane.b32.xlu0 %v2598, 64
    %v3100 = vpop.permute.xlu0 %3099
    %v3102 = vsel %vm496, %v3098, 0
    %v3105 = vsel %vm496, %v3100, 0
    %3107 = vmatprep.subr.bf16.mxu0 0
    %3108 = vmatpush1.bf16.xpose.msra.mxu0 %v3105
    %3109 = vmatprep.subr.bf16.mxu0 0
    %3110 = vmatpush1.bf16.xpose.msra.mxu0 0
    %3111 = vmatprep.subr.bf16.mxu0 0
    %3112 = vmatpush1.bf16.xpose.msra.mxu0 0
    %3113 = vmatprep.subr.bf16.mxu0 0
    %3114 = vmatpush1.bf16.xpose.msra.mxu0 0
    %3115 = vmatprep.subr.bf16.mxu0 0
    %3116 = vmatpush1.bf16.xpose.msra.mxu0 0
    %3117 = vmatprep.subr.bf16.mxu0 0
    %3118 = vmatpush1.bf16.xpose.msra.mxu0 0
    %3119 = vmatprep.subr.bf16.mxu0 0
    %3120 = vmatpush1.bf16.xpose.msra.mxu0 0
    %3121 = vmatprep.subr.bf16.mxu0 0
    %3122 = vmatpush1.bf16.xpose.msra.mxu0 0
    %3123 = vmatprep.subr.bf16.mxu0 0
    %3124 = vmatpush1.bf16.xpose.msra.mxu0 0
    %3125 = vmatprep.subr.bf16.mxu0 0
    %3126 = vmatpush1.bf16.xpose.msra.mxu0 0
    %3127 = vmatprep.subr.bf16.mxu0 0
    %3128 = vmatpush1.bf16.xpose.msra.mxu0 0
    %3129 = vmatprep.subr.bf16.mxu0 0
    %3130 = vmatpush1.bf16.xpose.msra.mxu0 0
    %3131 = vmatprep.subr.bf16.mxu0 0
    %3132 = vmatpush1.bf16.xpose.msra.mxu0 0
    %3133 = vmatprep.subr.bf16.mxu0 0
    %3134 = vmatpush1.bf16.xpose.msra.mxu0 0
    %3135 = vmatprep.subr.bf16.mxu0 0
    %3136 = vmatpush1.bf16.xpose.msra.mxu0 0
    %3137 = vmatprep.subr.bf16.mxu0 0
    %3138 = vmatpush1.bf16.xpose.msra.mxu0 0
    %3139 = vmatprep.mubr.bf16.mxu0 0
    %3140 = vmatmul.mubr.bf16.gmra.mrb[0].mxu0 %v3102
    %v3141 = vpop.f32.mrb[0].mxu0
    %v3142 = vadd.f32 %v493, %v3141
    %v3143 = vpop.f32.mrb[0].mxu0
    %v3144 = vpop.f32.mrb[0].mxu0
    %v3145 = vpop.f32.mrb[0].mxu0
    %3146 = vdwg.mxu0
    %v3147 = vsel %vm589, %v3092, -inf
    %3148 = vmax.xlane.f32.xlu0 %v3147
    %v3149 = vpop.xlane.xlu0 %3148
    %v3150 = vsel %vm589, %v3142, -inf
    %3151 = vmax.xlane.f32.xlu0 %v3150
    %v3152 = vpop.xlane.xlu0 %3151
    %v3153 = vsub.f32 %v3092, %v3149
    %v3154 = vsub.f32 %v3142, %v3152
    %v3155 = vmul.f32 %v3153, 1.442695
    %v3156 = vpow.pop %v3155
    %v3157 = vmul.f32 %v3154, 1.442695
    %v3158 = vpow.pop %v3157
    %v3159 = vsel %vm589, %v3156, 0.0
    %3160 = vadd.xlane.f32.xlu0 %v3159
    %v3161 = vpop.xlane.xlu0 %3160
    %v3162 = vsel %vm589, %v3158, 0.0
    %3163 = vadd.xlane.f32.xlu0 %v3162
    %v3164 = vpop.xlane.xlu0 %3163
    %v3165 = vrcp.pop %v3161
    %v3166 = vrcp.pop %v3164
    %v3167 = vmul.f32 %v3156, %v3165
    %v3168 = vmul.f32 %v3158, %v3166
    %v3169 = vpack.c.bf16 %v3167, %v3167
    %v3170 = vpack.c.bf16 %v3168, %v3168
    %3171 = vrot.lane.b32.xlu0 %v2715, 64
    %v3172 = vpop.permute.xlu0 %3171
    %v3174 = vsel %vm589, %v3169, 0
    %v3177 = vsel %vm619, %v3172, 0
    %3179 = vmatprep.subr.bf16.mxu0 0
    %3180 = vmatpush1.bf16.msra.mxu0 %v3177
    %3181 = vmatprep.subr.bf16.mxu0 0
    %3182 = vmatpush1.bf16.msra.mxu0 0
    %3183 = vmatprep.subr.bf16.mxu0 0
    %3184 = vmatpush1.bf16.msra.mxu0 0
    %3185 = vmatprep.subr.bf16.mxu0 0
    %3186 = vmatpush1.bf16.msra.mxu0 0
    %3187 = vmatprep.subr.bf16.mxu0 0
    %3188 = vmatpush1.bf16.msra.mxu0 0
    %3189 = vmatprep.subr.bf16.mxu0 0
    %3190 = vmatpush1.bf16.msra.mxu0 0
    %3191 = vmatprep.subr.bf16.mxu0 0
    %3192 = vmatpush1.bf16.msra.mxu0 0
    %3193 = vmatprep.subr.bf16.mxu0 0
    %3194 = vmatpush1.bf16.msra.mxu0 0
    %3195 = vmatprep.subr.bf16.mxu0 0
    %3196 = vmatpush1.bf16.msra.mxu0 0
    %3197 = vmatprep.subr.bf16.mxu0 0
    %3198 = vmatpush1.bf16.msra.mxu0 0
    %3199 = vmatprep.subr.bf16.mxu0 0
    %3200 = vmatpush1.bf16.msra.mxu0 0
    %3201 = vmatprep.subr.bf16.mxu0 0
    %3202 = vmatpush1.bf16.msra.mxu0 0
    %3203 = vmatprep.subr.bf16.mxu0 0
    %3204 = vmatpush1.bf16.msra.mxu0 0
    %3205 = vmatprep.subr.bf16.mxu0 0
    %3206 = vmatpush1.bf16.msra.mxu0 0
    %3207 = vmatprep.subr.bf16.mxu0 0
    %3208 = vmatpush1.bf16.msra.mxu0 0
    %3209 = vmatprep.subr.bf16.mxu0 0
    %3210 = vmatpush1.bf16.msra.mxu0 0
    %3211 = vmatprep.mubr.bf16.mxu0 0
    %3212 = vmatmul.mubr.bf16.gmra.mrb[0].mxu0 %v3174
    %v3213 = vpop.f32.mrb[0].mxu0
    %v3214 = vadd.f32 0.0, %v3213
    %v3215 = vpop.f32.mrb[0].mxu0
    %v3216 = vpop.f32.mrb[0].mxu0
    %v3217 = vpop.f32.mrb[0].mxu0
    %3218 = vdwg.mxu0
    %3219 = vrot.lane.b32.xlu0 %v2716, 64
    %v3220 = vpop.permute.xlu0 %3219
    %v3222 = vsel %vm589, %v3170, 0
    %v3225 = vsel %vm619, %v3220, 0
    %3227 = vmatprep.subr.bf16.mxu0 0
    %3228 = vmatpush1.bf16.msra.mxu0 %v3225
    %3229 = vmatprep.subr.bf16.mxu0 0
    %3230 = vmatpush1.bf16.msra.mxu0 0
    %3231 = vmatprep.subr.bf16.mxu0 0
    %3232 = vmatpush1.bf16.msra.mxu0 0
    %3233 = vmatprep.subr.bf16.mxu0 0
    %3234 = vmatpush1.bf16.msra.mxu0 0
    %3235 = vmatprep.subr.bf16.mxu0 0
    %3236 = vmatpush1.bf16.msra.mxu0 0
    %3237 = vmatprep.subr.bf16.mxu0 0
    %3238 = vmatpush1.bf16.msra.mxu0 0
    %3239 = vmatprep.subr.bf16.mxu0 0
    %3240 = vmatpush1.bf16.msra.mxu0 0
    %3241 = vmatprep.subr.bf16.mxu0 0
    %3242 = vmatpush1.bf16.msra.mxu0 0
    %3243 = vmatprep.subr.bf16.mxu0 0
    %3244 = vmatpush1.bf16.msra.mxu0 0
    %3245 = vmatprep.subr.bf16.mxu0 0
    %3246 = vmatpush1.bf16.msra.mxu0 0
    %3247 = vmatprep.subr.bf16.mxu0 0
    %3248 = vmatpush1.bf16.msra.mxu0 0
    %3249 = vmatprep.subr.bf16.mxu0 0
    %3250 = vmatpush1.bf16.msra.mxu0 0
    %3251 = vmatprep.subr.bf16.mxu0 0
    %3252 = vmatpush1.bf16.msra.mxu0 0
    %3253 = vmatprep.subr.bf16.mxu0 0
    %3254 = vmatpush1.bf16.msra.mxu0 0
    %3255 = vmatprep.subr.bf16.mxu0 0
    %3256 = vmatpush1.bf16.msra.mxu0 0
    %3257 = vmatprep.subr.bf16.mxu0 0
    %3258 = vmatpush1.bf16.msra.mxu0 0
    %3259 = vmatprep.mubr.bf16.mxu0 0
    %3260 = vmatmul.mubr.bf16.gmra.mrb[0].mxu0 %v3222
    %v3261 = vpop.f32.mrb[0].mxu0
    %v3262 = vadd.f32 0.0, %v3261
    %v3263 = vpop.f32.mrb[0].mxu0
    %v3264 = vpop.f32.mrb[0].mxu0
    %v3265 = vpop.f32.mrb[0].mxu0
    %3266 = vdwg.mxu0
    %3269 = vrot.lane.b32.xlu0 %v3214, 64
    %v3270 = vpop.permute.xlu0 %3269
    %3271 = vrot.lane.b32.xlu0 %v3262, 64
    %v3272 = vpop.permute.xlu0 %3271
    %3275 = vst.msk [vmem:[#allocation2] sm:$0xff] %vm1176, %v3270
    %3276 = vst.msk [vmem:[#allocation2 + $0x8] sm:$0xff] %vm1176, %v3272
    %3277 = vrot.lane.b32.xlu0 %v2595, 32
    %v3278 = vpop.permute.xlu0 %3277
    %3279 = vrot.lane.b32.xlu0 %v2597, 32
    %v3280 = vpop.permute.xlu0 %3279
    %v3282 = vsel %vm496, %v3278, 0
    %v3285 = vsel %vm496, %v3280, 0
    %3287 = vmatprep.subr.bf16.mxu0 0
    %3288 = vmatpush1.bf16.xpose.msra.mxu0 %v3285
    %3289 = vmatprep.subr.bf16.mxu0 0
    %3290 = vmatpush1.bf16.xpose.msra.mxu0 0
    %3291 = vmatprep.subr.bf16.mxu0 0
    %3292 = vmatpush1.bf16.xpose.msra.mxu0 0
    %3293 = vmatprep.subr.bf16.mxu0 0
    %3294 = vmatpush1.bf16.xpose.msra.mxu0 0
    %3295 = vmatprep.subr.bf16.mxu0 0
    %3296 = vmatpush1.bf16.xpose.msra.mxu0 0
    %3297 = vmatprep.subr.bf16.mxu0 0
    %3298 = vmatpush1.bf16.xpose.msra.mxu0 0
    %3299 = vmatprep.subr.bf16.mxu0 0
    %3300 = vmatpush1.bf16.xpose.msra.mxu0 0
    %3301 = vmatprep.subr.bf16.mxu0 0
    %3302 = vmatpush1.bf16.xpose.msra.mxu0 0
    %3303 = vmatprep.subr.bf16.mxu0 0
    %3304 = vmatpush1.bf16.xpose.msra.mxu0 0
    %3305 = vmatprep.subr.bf16.mxu0 0
    %3306 = vmatpush1.bf16.xpose.msra.mxu0 0
    %3307 = vmatprep.subr.bf16.mxu0 0
    %3308 = vmatpush1.bf16.xpose.msra.mxu0 0
    %3309 = vmatprep.subr.bf16.mxu0 0
    %3310 = vmatpush1.bf16.xpose.msra.mxu0 0
    %3311 = vmatprep.subr.bf16.mxu0 0
    %3312 = vmatpush1.bf16.xpose.msra.mxu0 0
    %3313 = vmatprep.subr.bf16.mxu0 0
    %3314 = vmatpush1.bf16.xpose.msra.mxu0 0
    %3315 = vmatprep.subr.bf16.mxu0 0
    %3316 = vmatpush1.bf16.xpose.msra.mxu0 0
    %3317 = vmatprep.subr.bf16.mxu0 0
    %3318 = vmatpush1.bf16.xpose.msra.mxu0 0
    %3319 = vmatprep.mubr.bf16.mxu0 0
    %3320 = vmatmul.mubr.bf16.gmra.mrb[0].mxu0 %v3282
    %v3321 = vpop.f32.mrb[0].mxu0
    %v3322 = vadd.f32 %v489, %v3321
    %v3323 = vpop.f32.mrb[0].mxu0
    %v3324 = vpop.f32.mrb[0].mxu0
    %v3325 = vpop.f32.mrb[0].mxu0
    %3326 = vdwg.mxu0
    %3327 = vrot.lane.b32.xlu0 %v2596, 32
    %v3328 = vpop.permute.xlu0 %3327
    %3329 = vrot.lane.b32.xlu0 %v2598, 32
    %v3330 = vpop.permute.xlu0 %3329
    %v3332 = vsel %vm496, %v3328, 0
    %v3335 = vsel %vm496, %v3330, 0
    %3337 = vmatprep.subr.bf16.mxu0 0
    %3338 = vmatpush1.bf16.xpose.msra.mxu0 %v3335
    %3339 = vmatprep.subr.bf16.mxu0 0
    %3340 = vmatpush1.bf16.xpose.msra.mxu0 0
    %3341 = vmatprep.subr.bf16.mxu0 0
    %3342 = vmatpush1.bf16.xpose.msra.mxu0 0
    %3343 = vmatprep.subr.bf16.mxu0 0
    %3344 = vmatpush1.bf16.xpose.msra.mxu0 0
    %3345 = vmatprep.subr.bf16.mxu0 0
    %3346 = vmatpush1.bf16.xpose.msra.mxu0 0
    %3347 = vmatprep.subr.bf16.mxu0 0
    %3348 = vmatpush1.bf16.xpose.msra.mxu0 0
    %3349 = vmatprep.subr.bf16.mxu0 0
    %3350 = vmatpush1.bf16.xpose.msra.mxu0 0
    %3351 = vmatprep.subr.bf16.mxu0 0
    %3352 = vmatpush1.bf16.xpose.msra.mxu0 0
    %3353 = vmatprep.subr.bf16.mxu0 0
    %3354 = vmatpush1.bf16.xpose.msra.mxu0 0
    %3355 = vmatprep.subr.bf16.mxu0 0
    %3356 = vmatpush1.bf16.xpose.msra.mxu0 0
    %3357 = vmatprep.subr.bf16.mxu0 0
    %3358 = vmatpush1.bf16.xpose.msra.mxu0 0
    %3359 = vmatprep.subr.bf16.mxu0 0
    %3360 = vmatpush1.bf16.xpose.msra.mxu0 0
    %3361 = vmatprep.subr.bf16.mxu0 0
    %3362 = vmatpush1.bf16.xpose.msra.mxu0 0
    %3363 = vmatprep.subr.bf16.mxu0 0
    %3364 = vmatpush1.bf16.xpose.msra.mxu0 0
    %3365 = vmatprep.subr.bf16.mxu0 0
    %3366 = vmatpush1.bf16.xpose.msra.mxu0 0
    %3367 = vmatprep.subr.bf16.mxu0 0
    %3368 = vmatpush1.bf16.xpose.msra.mxu0 0
    %3369 = vmatprep.mubr.bf16.mxu0 0
    %3370 = vmatmul.mubr.bf16.gmra.mrb[0].mxu0 %v3332
    %v3371 = vpop.f32.mrb[0].mxu0
    %v3372 = vadd.f32 %v493, %v3371
    %v3373 = vpop.f32.mrb[0].mxu0
    %v3374 = vpop.f32.mrb[0].mxu0
    %v3375 = vpop.f32.mrb[0].mxu0
    %3376 = vdwg.mxu0
    %v3377 = vsel %vm589, %v3322, -inf
    %3378 = vmax.xlane.f32.xlu0 %v3377
    %v3379 = vpop.xlane.xlu0 %3378
    %v3380 = vsel %vm589, %v3372, -inf
    %3381 = vmax.xlane.f32.xlu0 %v3380
    %v3382 = vpop.xlane.xlu0 %3381
    %v3383 = vsub.f32 %v3322, %v3379
    %v3384 = vsub.f32 %v3372, %v3382
    %v3385 = vmul.f32 %v3383, 1.442695
    %v3386 = vpow.pop %v3385
    %v3387 = vmul.f32 %v3384, 1.442695
    %v3388 = vpow.pop %v3387
    %v3389 = vsel %vm589, %v3386, 0.0
    %3390 = vadd.xlane.f32.xlu0 %v3389
    %v3391 = vpop.xlane.xlu0 %3390
    %v3392 = vsel %vm589, %v3388, 0.0
    %3393 = vadd.xlane.f32.xlu0 %v3392
    %v3394 = vpop.xlane.xlu0 %3393
    %v3395 = vrcp.pop %v3391
    %v3396 = vrcp.pop %v3394
    %v3397 = vmul.f32 %v3386, %v3395
    %v3398 = vmul.f32 %v3388, %v3396
    %v3399 = vpack.c.bf16 %v3397, %v3397
    %v3400 = vpack.c.bf16 %v3398, %v3398
    %3401 = vrot.lane.b32.xlu0 %v2715, 32
    %v3402 = vpop.permute.xlu0 %3401
    %v3404 = vsel %vm589, %v3399, 0
    %v3407 = vsel %vm619, %v3402, 0
    %3409 = vmatprep.subr.bf16.mxu0 0
    %3410 = vmatpush1.bf16.msra.mxu0 %v3407
    %3411 = vmatprep.subr.bf16.mxu0 0
    %3412 = vmatpush1.bf16.msra.mxu0 0
    %3413 = vmatprep.subr.bf16.mxu0 0
    %3414 = vmatpush1.bf16.msra.mxu0 0
    %3415 = vmatprep.subr.bf16.mxu0 0
    %3416 = vmatpush1.bf16.msra.mxu0 0
    %3417 = vmatprep.subr.bf16.mxu0 0
    %3418 = vmatpush1.bf16.msra.mxu0 0
    %3419 = vmatprep.subr.bf16.mxu0 0
    %3420 = vmatpush1.bf16.msra.mxu0 0
    %3421 = vmatprep.subr.bf16.mxu0 0
    %3422 = vmatpush1.bf16.msra.mxu0 0
    %3423 = vmatprep.subr.bf16.mxu0 0
    %3424 = vmatpush1.bf16.msra.mxu0 0
    %3425 = vmatprep.subr.bf16.mxu0 0
    %3426 = vmatpush1.bf16.msra.mxu0 0
    %3427 = vmatprep.subr.bf16.mxu0 0
    %3428 = vmatpush1.bf16.msra.mxu0 0
    %3429 = vmatprep.subr.bf16.mxu0 0
    %3430 = vmatpush1.bf16.msra.mxu0 0
    %3431 = vmatprep.subr.bf16.mxu0 0
    %3432 = vmatpush1.bf16.msra.mxu0 0
    %3433 = vmatprep.subr.bf16.mxu0 0
    %3434 = vmatpush1.bf16.msra.mxu0 0
    %3435 = vmatprep.subr.bf16.mxu0 0
    %3436 = vmatpush1.bf16.msra.mxu0 0
    %3437 = vmatprep.subr.bf16.mxu0 0
    %3438 = vmatpush1.bf16.msra.mxu0 0
    %3439 = vmatprep.subr.bf16.mxu0 0
    %3440 = vmatpush1.bf16.msra.mxu0 0
    %3441 = vmatprep.mubr.bf16.mxu0 0
    %3442 = vmatmul.mubr.bf16.gmra.mrb[0].mxu0 %v3404
    %v3443 = vpop.f32.mrb[0].mxu0
    %v3444 = vadd.f32 0.0, %v3443
    %v3445 = vpop.f32.mrb[0].mxu0
    %v3446 = vpop.f32.mrb[0].mxu0
    %v3447 = vpop.f32.mrb[0].mxu0
    %3448 = vdwg.mxu0
    %3449 = vrot.lane.b32.xlu0 %v2716, 32
    %v3450 = vpop.permute.xlu0 %3449
    %v3452 = vsel %vm589, %v3400, 0
    %v3455 = vsel %vm619, %v3450, 0
    %3457 = vmatprep.subr.bf16.mxu0 0
    %3458 = vmatpush1.bf16.msra.mxu0 %v3455
    %3459 = vmatprep.subr.bf16.mxu0 0
    %3460 = vmatpush1.bf16.msra.mxu0 0
    %3461 = vmatprep.subr.bf16.mxu0 0
    %3462 = vmatpush1.bf16.msra.mxu0 0
    %3463 = vmatprep.subr.bf16.mxu0 0
    %3464 = vmatpush1.bf16.msra.mxu0 0
    %3465 = vmatprep.subr.bf16.mxu0 0
    %3466 = vmatpush1.bf16.msra.mxu0 0
    %3467 = vmatprep.subr.bf16.mxu0 0
    %3468 = vmatpush1.bf16.msra.mxu0 0
    %3469 = vmatprep.subr.bf16.mxu0 0
    %3470 = vmatpush1.bf16.msra.mxu0 0
    %3471 = vmatprep.subr.bf16.mxu0 0
    %3472 = vmatpush1.bf16.msra.mxu0 0
    %3473 = vmatprep.subr.bf16.mxu0 0
    %3474 = vmatpush1.bf16.msra.mxu0 0
    %3475 = vmatprep.subr.bf16.mxu0 0
    %3476 = vmatpush1.bf16.msra.mxu0 0
    %3477 = vmatprep.subr.bf16.mxu0 0
    %3478 = vmatpush1.bf16.msra.mxu0 0
    %3479 = vmatprep.subr.bf16.mxu0 0
    %3480 = vmatpush1.bf16.msra.mxu0 0
    %3481 = vmatprep.subr.bf16.mxu0 0
    %3482 = vmatpush1.bf16.msra.mxu0 0
    %3483 = vmatprep.subr.bf16.mxu0 0
    %3484 = vmatpush1.bf16.msra.mxu0 0
    %3485 = vmatprep.subr.bf16.mxu0 0
    %3486 = vmatpush1.bf16.msra.mxu0 0
    %3487 = vmatprep.subr.bf16.mxu0 0
    %3488 = vmatpush1.bf16.msra.mxu0 0
    %3489 = vmatprep.mubr.bf16.mxu0 0
    %3490 = vmatmul.mubr.bf16.gmra.mrb[0].mxu0 %v3452
    %v3491 = vpop.f32.mrb[0].mxu0
    %v3492 = vadd.f32 0.0, %v3491
    %v3493 = vpop.f32.mrb[0].mxu0
    %v3494 = vpop.f32.mrb[0].mxu0
    %v3495 = vpop.f32.mrb[0].mxu0
    %3496 = vdwg.mxu0
    %3499 = vrot.lane.b32.xlu0 %v3444, 96
    %v3500 = vpop.permute.xlu0 %3499
    %3501 = vrot.lane.b32.xlu0 %v3492, 96
    %v3502 = vpop.permute.xlu0 %3501
    %3505 = vst.msk [vmem:[#allocation2] sm:$0xff] %vm1407, %v3500
    %3506 = vst.msk [vmem:[#allocation2 + $0x8] sm:$0xff] %vm1407, %v3502
    %v3507 = vld [vmem:[#allocation2] sm:$0xff]
    %v3508 = vld [vmem:[#allocation2 + $0x8] sm:$0xff]
    %v3509 = vpack.c.bf16 %v3508, %v3507
    %s3510 = scalar_lea.vmem [#allocation3], 64
    %v3511 = vld [vmem:[%s3510] sm:$0xf]
    %v3512 = vld [vmem:[%s3510 + $0x4] sm:$0xf]
    %v3513 = vld [vmem:[%s3510 + $0x8] sm:$0xf]
    %v3514 = vld [vmem:[%s3510 + $0xc] sm:$0xf]
    %v3515 = vld [vmem:[%s3510 + $0x10] sm:$0xf]
    %v3516 = vld [vmem:[%s3510 + $0x14] sm:$0xf]
    %v3517 = vld [vmem:[%s3510 + $0x18] sm:$0xf]
    %v3518 = vld [vmem:[%s3510 + $0x1c] sm:$0xf]
    %v3519 = vld [vmem:[%s3510 + $0x20] sm:$0xf]
    %v3520 = vld [vmem:[%s3510 + $0x24] sm:$0xf]
    %v3521 = vld [vmem:[%s3510 + $0x28] sm:$0xf]
    %v3522 = vld [vmem:[%s3510 + $0x2c] sm:$0xf]
    %v3523 = vld [vmem:[%s3510 + $0x30] sm:$0xf]
    %v3524 = vld [vmem:[%s3510 + $0x34] sm:$0xf]
    %v3525 = vld [vmem:[%s3510 + $0x38] sm:$0xf]
    %v3526 = vld [vmem:[%s3510 + $0x3c] sm:$0xf]
    %s3527 = scalar_lea.vmem %s7, 1
    %v3528 = vld [vmem:[%s3527] sm:$0x1]
    %v3530 = vlaneseq
    %v3531 = vshrl.u32 %v3530, 7
    %v3532 = vsub.s32 0, %v3531
    %v3533 = vrot.slane %v3528, %v3532
    %v3551 = vunpack.c.l.b16 %v3511
    %v3552 = vunpack.c.l.b16 %v3512
    %v3553 = vunpack.c.l.b16 %v3513
    %v3554 = vunpack.c.l.b16 %v3514
    %v3555 = vunpack.c.l.b16 %v3515
    %v3556 = vunpack.c.l.b16 %v3516
    %v3557 = vunpack.c.l.b16 %v3517
    %v3558 = vunpack.c.l.b16 %v3518
    %v3559 = vunpack.c.l.b16 %v3519
    %v3560 = vunpack.c.l.b16 %v3520
    %v3561 = vunpack.c.l.b16 %v3521
    %v3562 = vunpack.c.l.b16 %v3522
    %v3563 = vunpack.c.l.b16 %v3523
    %v3564 = vunpack.c.l.b16 %v3524
    %v3565 = vunpack.c.l.b16 %v3525
    %v3566 = vunpack.c.l.b16 %v3526
    %v3567 = vpack.c.b16 %v3552, %v3551
    %v3568 = vpack.c.b16 %v3554, %v3553
    %v3569 = vpack.c.b16 %v3556, %v3555
    %v3570 = vpack.c.b16 %v3558, %v3557
    %v3571 = vpack.c.b16 %v3560, %v3559
    %v3572 = vpack.c.b16 %v3562, %v3561
    %v3573 = vpack.c.b16 %v3564, %v3563
    %v3574 = vpack.c.b16 %v3566, %v3565
    %3583 = vmatprep.subr.bf16.mxu0 0
    %3584 = vmatpush1.bf16.msra.mxu0 %v3567
    %3585 = vmatprep.subr.bf16.mxu0 0
    %3586 = vmatpush1.bf16.msra.mxu0 %v3568
    %3587 = vmatprep.subr.bf16.mxu0 0
    %3588 = vmatpush1.bf16.msra.mxu0 %v3569
    %3589 = vmatprep.subr.bf16.mxu0 0
    %3590 = vmatpush1.bf16.msra.mxu0 %v3570
    %3591 = vmatprep.subr.bf16.mxu0 0
    %3592 = vmatpush1.bf16.msra.mxu0 %v3571
    %3593 = vmatprep.subr.bf16.mxu0 0
    %3594 = vmatpush1.bf16.msra.mxu0 %v3572
    %3595 = vmatprep.subr.bf16.mxu0 0
    %3596 = vmatpush1.bf16.msra.mxu0 %v3573
    %3597 = vmatprep.subr.bf16.mxu0 0
    %3598 = vmatpush1.bf16.msra.mxu0 %v3574
    %3599 = vmatprep.subr.bf16.mxu0 0
    %3600 = vmatpush1.bf16.msra.mxu0 0
    %3601 = vmatprep.subr.bf16.mxu0 0
    %3602 = vmatpush1.bf16.msra.mxu0 0
    %3603 = vmatprep.subr.bf16.mxu0 0
    %3604 = vmatpush1.bf16.msra.mxu0 0
    %3605 = vmatprep.subr.bf16.mxu0 0
    %3606 = vmatpush1.bf16.msra.mxu0 0
    %3607 = vmatprep.subr.bf16.mxu0 0
    %3608 = vmatpush1.bf16.msra.mxu0 0
    %3609 = vmatprep.subr.bf16.mxu0 0
    %3610 = vmatpush1.bf16.msra.mxu0 0
    %3611 = vmatprep.subr.bf16.mxu0 0
    %3612 = vmatpush1.bf16.msra.mxu0 0
    %3613 = vmatprep.subr.bf16.mxu0 0
    %3614 = vmatpush1.bf16.msra.mxu0 0
    %3615 = vmatprep.mubr.bf16.mxu0 0
    %3616 = vmatmul.mubr.bf16.gmra.mrb[0].mxu0 %v3509
    %v3617 = vpop.f32.mrb[0].mxu0
    %v3618 = vadd.f32 %v3533, %v3617
    %v3619 = vpop.f32.mrb[0].mxu0
    %v3620 = vpop.f32.mrb[0].mxu0
    %v3621 = vadd.f32 %v3533, %v3620
    %v3622 = vpop.f32.mrb[0].mxu0
    %3623 = vdwg.mxu0
    %v3624 = vadd.f32 %v2329, %v3618
    %v3625 = vadd.f32 %v2330, %v3621
    %s3626 = scalar_lea.vmem %s8, 1
    %v3627 = vld [vmem:[%s3626] sm:$0x1]
    %s3628 = scalar_lea.vmem %s9, 1
    %v3629 = vld [vmem:[%s3628] sm:$0x1]
    %3630 = vadd.xlane.f32.xlu0 %v3624
    %v3631 = vpop.xlane.xlu0 %3630
    %3632 = vadd.xlane.f32.xlu0 %v3625
    %v3633 = vpop.xlane.xlu0 %3632
    %v3634 = vmul.f32 %v3631, %v181
    %v3635 = vmul.f32 %v3633, %v181
    %v3636 = vsub.f32 %v3624, %v3634
    %v3637 = vsub.f32 %v3625, %v3635
    %v3638 = vmul.f32 %v3636, %v3636
    %v3639 = vmul.f32 %v3637, %v3637
    %3640 = vadd.xlane.f32.xlu0 %v3638
    %v3641 = vpop.xlane.xlu0 %3640
    %3642 = vadd.xlane.f32.xlu0 %v3639
    %v3643 = vpop.xlane.xlu0 %3642
    %v3644 = vmul.f32 %v3641, %v181
    %v3645 = vmul.f32 %v3643, %v181
    %v3646 = vadd.f32 %v3644, 1e-05
    %v3647 = vadd.f32 %v3645, 1e-05
    %v3648 = vrsqrt.pop %v3646
    %v3649 = vrsqrt.pop %v3647
    %v3650 = vmul.f32 %v3636, %v3648
    %v3651 = vmul.f32 %v3637, %v3649
    %v3653 = vlaneseq
    %v3654 = vshrl.u32 %v3653, 7
    %v3655 = vsub.s32 0, %v3654
    %v3656 = vrot.slane %v3627, %v3655
    %v3658 = vmul.f32 %v3650, %v3656
    %v3659 = vmul.f32 %v3651, %v3656
    %v3661 = vlaneseq
    %v3662 = vshrl.u32 %v3661, 7
    %v3663 = vsub.s32 0, %v3662
    %v3664 = vrot.slane %v3629, %v3663
    %v3666 = vadd.f32 %v3658, %v3664
    %v3667 = vadd.f32 %v3659, %v3664
    %v3668 = vpack.c.bf16 %v3667, %v3666
    %s3669 = scalar_lea.vmem [#allocation5], 256
    %v3670 = vld [vmem:[%s3669] sm:$0xff]
    %v3671 = vld [vmem:[%s3669 + $0x8] sm:$0xff]
    %v3672 = vld [vmem:[%s3669 + $0x10] sm:$0xff]
    %v3673 = vld [vmem:[%s3669 + $0x18] sm:$0xff]
    %v3674 = vld [vmem:[%s3669 + $0x20] sm:$0xff]
    %v3675 = vld [vmem:[%s3669 + $0x28] sm:$0xff]
    %v3676 = vld [vmem:[%s3669 + $0x30] sm:$0xff]
    %v3677 = vld [vmem:[%s3669 + $0x38] sm:$0xff]
    %v3678 = vld [vmem:[%s3669 + $0x40] sm:$0xff]
    %v3679 = vld [vmem:[%s3669 + $0x48] sm:$0xff]
    %v3680 = vld [vmem:[%s3669 + $0x50] sm:$0xff]
    %v3681 = vld [vmem:[%s3669 + $0x58] sm:$0xff]
    %v3682 = vld [vmem:[%s3669 + $0x60] sm:$0xff]
    %v3683 = vld [vmem:[%s3669 + $0x68] sm:$0xff]
    %v3684 = vld [vmem:[%s3669 + $0x70] sm:$0xff]
    %v3685 = vld [vmem:[%s3669 + $0x78] sm:$0xff]
    %v3686 = vld [vmem:[%s3669 + $0x80] sm:$0xff]
    %v3687 = vld [vmem:[%s3669 + $0x88] sm:$0xff]
    %v3688 = vld [vmem:[%s3669 + $0x90] sm:$0xff]
    %v3689 = vld [vmem:[%s3669 + $0x98] sm:$0xff]
    %v3690 = vld [vmem:[%s3669 + $0xa0] sm:$0xff]
    %v3691 = vld [vmem:[%s3669 + $0xa8] sm:$0xff]
    %v3692 = vld [vmem:[%s3669 + $0xb0] sm:$0xff]
    %v3693 = vld [vmem:[%s3669 + $0xb8] sm:$0xff]
    %v3694 = vld [vmem:[%s3669 + $0xc0] sm:$0xff]
    %v3695 = vld [vmem:[%s3669 + $0xc8] sm:$0xff]
    %v3696 = vld [vmem:[%s3669 + $0xd0] sm:$0xff]
    %v3697 = vld [vmem:[%s3669 + $0xd8] sm:$0xff]
    %v3698 = vld [vmem:[%s3669 + $0xe0] sm:$0xff]
    %v3699 = vld [vmem:[%s3669 + $0xe8] sm:$0xff]
    %v3700 = vld [vmem:[%s3669 + $0xf0] sm:$0xff]
    %v3701 = vld [vmem:[%s3669 + $0xf8] sm:$0xff]
    %s3702 = scalar_lea.vmem %s11, 4
    %v3703 = vld [vmem:[%s3702] sm:$0xf]
    %v3705 = vlaneseq
    %v3706 = vshrl.u32 %v3705, 7
    %v3707 = vsub.s32 0, %v3706
    %v3708 = vrot.slane %v3703, %v3707
    %v3709 = vlaneseq
    %v3710 = vshrl.u32 %v3709, 7
    %v3711 = vsub.s32 1, %v3710
    %v3712 = vrot.slane %v3703, %v3711
    %v3713 = vlaneseq
    %v3714 = vshrl.u32 %v3713, 7
    %v3715 = vsub.s32 2, %v3714
    %v3716 = vrot.slane %v3703, %v3715
    %v3717 = vlaneseq
    %v3718 = vshrl.u32 %v3717, 7
    %v3719 = vsub.s32 3, %v3718
    %v3720 = vrot.slane %v3703, %v3719
    %v3757 = vunpack.c.l.b16 %v3670
    %v3758 = vunpack.c.h.b16 %v3670
    %v3759 = vunpack.c.l.b16 %v3671
    %v3760 = vunpack.c.h.b16 %v3671
    %v3761 = vunpack.c.l.b16 %v3672
    %v3762 = vunpack.c.h.b16 %v3672
    %v3763 = vunpack.c.l.b16 %v3673
    %v3764 = vunpack.c.h.b16 %v3673
    %v3765 = vunpack.c.l.b16 %v3674
    %v3766 = vunpack.c.h.b16 %v3674
    %v3767 = vunpack.c.l.b16 %v3675
    %v3768 = vunpack.c.h.b16 %v3675
    %v3769 = vunpack.c.l.b16 %v3676
    %v3770 = vunpack.c.h.b16 %v3676
    %v3771 = vunpack.c.l.b16 %v3677
    %v3772 = vunpack.c.h.b16 %v3677
    %v3773 = vunpack.c.l.b16 %v3678
    %v3774 = vunpack.c.h.b16 %v3678
    %v3775 = vunpack.c.l.b16 %v3679
    %v3776 = vunpack.c.h.b16 %v3679
    %v3777 = vunpack.c.l.b16 %v3680
    %v3778 = vunpack.c.h.b16 %v3680
    %v3779 = vunpack.c.l.b16 %v3681
    %v3780 = vunpack.c.h.b16 %v3681
    %v3781 = vunpack.c.l.b16 %v3682
    %v3782 = vunpack.c.h.b16 %v3682
    %v3783 = vunpack.c.l.b16 %v3683
    %v3784 = vunpack.c.h.b16 %v3683
    %v3785 = vunpack.c.l.b16 %v3684
    %v3786 = vunpack.c.h.b16 %v3684
    %v3787 = vunpack.c.l.b16 %v3685
    %v3788 = vunpack.c.h.b16 %v3685
    %v3789 = vunpack.c.l.b16 %v3686
    %v3790 = vunpack.c.h.b16 %v3686
    %v3791 = vunpack.c.l.b16 %v3687
    %v3792 = vunpack.c.h.b16 %v3687
    %v3793 = vunpack.c.l.b16 %v3688
    %v3794 = vunpack.c.h.b16 %v3688
    %v3795 = vunpack.c.l.b16 %v3689
    %v3796 = vunpack.c.h.b16 %v3689
    %v3797 = vunpack.c.l.b16 %v3690
    %v3798 = vunpack.c.h.b16 %v3690
    %v3799 = vunpack.c.l.b16 %v3691
    %v3800 = vunpack.c.h.b16 %v3691
    %v3801 = vunpack.c.l.b16 %v3692
    %v3802 = vunpack.c.h.b16 %v3692
    %v3803 = vunpack.c.l.b16 %v3693
    %v3804 = vunpack.c.h.b16 %v3693
    %v3805 = vunpack.c.l.b16 %v3694
    %v3806 = vunpack.c.h.b16 %v3694
    %v3807 = vunpack.c.l.b16 %v3695
    %v3808 = vunpack.c.h.b16 %v3695
    %v3809 = vunpack.c.l.b16 %v3696
    %v3810 = vunpack.c.h.b16 %v3696
    %v3811 = vunpack.c.l.b16 %v3697
    %v3812 = vunpack.c.h.b16 %v3697
    %v3813 = vunpack.c.l.b16 %v3698
    %v3814 = vunpack.c.h.b16 %v3698
    %v3815 = vunpack.c.l.b16 %v3699
    %v3816 = vunpack.c.h.b16 %v3699
    %v3817 = vunpack.c.l.b16 %v3700
    %v3818 = vunpack.c.h.b16 %v3700
    %v3819 = vunpack.c.l.b16 %v3701
    %v3820 = vunpack.c.h.b16 %v3701
    %v3821 = vpack.c.b16 %v3761, %v3757
    %v3822 = vpack.c.b16 %v3762, %v3758
    %v3823 = vpack.c.b16 %v3763, %v3759
    %v3824 = vpack.c.b16 %v3764, %v3760
    %v3825 = vpack.c.b16 %v3769, %v3765
    %v3826 = vpack.c.b16 %v3770, %v3766
    %v3827 = vpack.c.b16 %v3771, %v3767
    %v3828 = vpack.c.b16 %v3772, %v3768
    %v3829 = vpack.c.b16 %v3777, %v3773
    %v3830 = vpack.c.b16 %v3778, %v3774
    %v3831 = vpack.c.b16 %v3779, %v3775
    %v3832 = vpack.c.b16 %v3780, %v3776
    %v3833 = vpack.c.b16 %v3785, %v3781
    %v3834 = vpack.c.b16 %v3786, %v3782
    %v3835 = vpack.c.b16 %v3787, %v3783
    %v3836 = vpack.c.b16 %v3788, %v3784
    %v3837 = vpack.c.b16 %v3793, %v3789
    %v3838 = vpack.c.b16 %v3794, %v3790
    %v3839 = vpack.c.b16 %v3795, %v3791
    %v3840 = vpack.c.b16 %v3796, %v3792
    %v3841 = vpack.c.b16 %v3801, %v3797
    %v3842 = vpack.c.b16 %v3802, %v3798
    %v3843 = vpack.c.b16 %v3803, %v3799
    %v3844 = vpack.c.b16 %v3804, %v3800
    %v3845 = vpack.c.b16 %v3809, %v3805
    %v3846 = vpack.c.b16 %v3810, %v3806
    %v3847 = vpack.c.b16 %v3811, %v3807
    %v3848 = vpack.c.b16 %v3812, %v3808
    %v3849 = vpack.c.b16 %v3817, %v3813
    %v3850 = vpack.c.b16 %v3818, %v3814
    %v3851 = vpack.c.b16 %v3819, %v3815
    %v3852 = vpack.c.b16 %v3820, %v3816
    %3885 = vmatprep.subr.bf16.mxu0 %v3822
    %3886 = vmatpush1.bf16.msra.mxu0 %v3821
    %3887 = vmatprep.subr.bf16.mxu0 %v3826
    %3888 = vmatpush1.bf16.msra.mxu0 %v3825
    %3889 = vmatprep.subr.bf16.mxu0 %v3830
    %3890 = vmatpush1.bf16.msra.mxu0 %v3829
    %3891 = vmatprep.subr.bf16.mxu0 %v3834
    %3892 = vmatpush1.bf16.msra.mxu0 %v3833
    %3893 = vmatprep.subr.bf16.mxu0 %v3838
    %3894 = vmatpush1.bf16.msra.mxu0 %v3837
    %3895 = vmatprep.subr.bf16.mxu0 %v3842
    %3896 = vmatpush1.bf16.msra.mxu0 %v3841
    %3897 = vmatprep.subr.bf16.mxu0 %v3846
    %3898 = vmatpush1.bf16.msra.mxu0 %v3845
    %3899 = vmatprep.subr.bf16.mxu0 %v3850
    %3900 = vmatpush1.bf16.msra.mxu0 %v3849
    %3901 = vmatprep.subr.bf16.mxu0 0
    %3902 = vmatpush1.bf16.msra.mxu0 0
    %3903 = vmatprep.subr.bf16.mxu0 0
    %3904 = vmatpush1.bf16.msra.mxu0 0
    %3905 = vmatprep.subr.bf16.mxu0 0
    %3906 = vmatpush1.bf16.msra.mxu0 0
    %3907 = vmatprep.subr.bf16.mxu0 0
    %3908 = vmatpush1.bf16.msra.mxu0 0
    %3909 = vmatprep.subr.bf16.mxu0 0
    %3910 = vmatpush1.bf16.msra.mxu0 0
    %3911 = vmatprep.subr.bf16.mxu0 0
    %3912 = vmatpush1.bf16.msra.mxu0 0
    %3913 = vmatprep.subr.bf16.mxu0 0
    %3914 = vmatpush1.bf16.msra.mxu0 0
    %3915 = vmatprep.subr.bf16.mxu0 0
    %3916 = vmatpush1.bf16.msra.mxu0 0
    %3917 = vmatprep.mubr.bf16.mxu0 0
    %3918 = vmatmul.mubr.bf16.gmra.mrb[0].mxu0 %v3668
    %v3919 = vpop.f32.mrb[0].mxu0
    %v3920 = vadd.f32 %v3708, %v3919
    %v3921 = vpop.f32.mrb[0].mxu0
    %v3922 = vadd.f32 %v3712, %v3921
    %v3923 = vpop.f32.mrb[0].mxu0
    %v3924 = vadd.f32 %v3708, %v3923
    %v3925 = vpop.f32.mrb[0].mxu0
    %v3926 = vadd.f32 %v3712, %v3925
    %3927 = vdwg.mxu0
    %3928 = vmatprep.subr.bf16.mxu0 %v3824
    %3929 = vmatpush1.bf16.msra.mxu0 %v3823
    %3930 = vmatprep.subr.bf16.mxu0 %v3828
    %3931 = vmatpush1.bf16.msra.mxu0 %v3827
    %3932 = vmatprep.subr.bf16.mxu0 %v3832
    %3933 = vmatpush1.bf16.msra.mxu0 %v3831
    %3934 = vmatprep.subr.bf16.mxu0 %v3836
    %3935 = vmatpush1.bf16.msra.mxu0 %v3835
    %3936 = vmatprep.subr.bf16.mxu0 %v3840
    %3937 = vmatpush1.bf16.msra.mxu0 %v3839
    %3938 = vmatprep.subr.bf16.mxu0 %v3844
    %3939 = vmatpush1.bf16.msra.mxu0 %v3843
    %3940 = vmatprep.subr.bf16.mxu0 %v3848
    %3941 = vmatpush1.bf16.msra.mxu0 %v3847
    %3942 = vmatprep.subr.bf16.mxu0 %v3852
    %3943 = vmatpush1.bf16.msra.mxu0 %v3851
    %3944 = vmatprep.subr.bf16.mxu0 0
    %3945 = vmatpush1.bf16.msra.mxu0 0
    %3946 = vmatprep.subr.bf16.mxu0 0
    %3947 = vmatpush1.bf16.msra.mxu0 0
    %3948 = vmatprep.subr.bf16.mxu0 0
    %3949 = vmatpush1.bf16.msra.mxu0 0
    %3950 = vmatprep.subr.bf16.mxu0 0
    %3951 = vmatpush1.bf16.msra.mxu0 0
    %3952 = vmatprep.subr.bf16.mxu0 0
    %3953 = vmatpush1.bf16.msra.mxu0 0
    %3954 = vmatprep.subr.bf16.mxu0 0
    %3955 = vmatpush1.bf16.msra.mxu0 0
    %3956 = vmatprep.subr.bf16.mxu0 0
    %3957 = vmatpush1.bf16.msra.mxu0 0
    %3958 = vmatprep.subr.bf16.mxu0 0
    %3959 = vmatpush1.bf16.msra.mxu0 0
    %3960 = vmatprep.mubr.bf16.mxu0 0
    %3961 = vmatmul.mubr.bf16.gmra.mrb[0].mxu0 %v3668
    %v3962 = vpop.f32.mrb[0].mxu0
    %v3963 = vadd.f32 %v3716, %v3962
    %v3964 = vpop.f32.mrb[0].mxu0
    %v3965 = vadd.f32 %v3720, %v3964
    %v3966 = vpop.f32.mrb[0].mxu0
    %v3967 = vadd.f32 %v3716, %v3966
    %v3968 = vpop.f32.mrb[0].mxu0
    %v3969 = vadd.f32 %v3720, %v3968
    %3970 = vdwg.mxu0
    %v3971 = vmul.f32 %v3920, %v3920
    %v3972 = vmul.f32 %v3922, %v3922
    %v3973 = vmul.f32 %v3963, %v3963
    %v3974 = vmul.f32 %v3965, %v3965
    %v3975 = vmul.f32 %v3924, %v3924
    %v3976 = vmul.f32 %v3926, %v3926
    %v3977 = vmul.f32 %v3967, %v3967
    %v3978 = vmul.f32 %v3969, %v3969
    %v3979 = vmul.f32 %v3920, %v3971
    %v3980 = vmul.f32 %v3922, %v3972
    %v3981 = vmul.f32 %v3963, %v3973
    %v3982 = vmul.f32 %v3965, %v3974
    %v3983 = vmul.f32 %v3924, %v3975
    %v3984 = vmul.f32 %v3926, %v3976
    %v3985 = vmul.f32 %v3967, %v3977
    %v3986 = vmul.f32 %v3969, %v3978
    %v3987 = vmul.f32 %v3979, 0.044715
    %v3988 = vmul.f32 %v3980, 0.044715
    %v3989 = vmul.f32 %v3981, 0.044715
    %v3990 = vmul.f32 %v3982, 0.044715
    %v3991 = vmul.f32 %v3983, 0.044715
    %v3992 = vmul.f32 %v3984, 0.044715
    %v3993 = vmul.f32 %v3985, 0.044715
    %v3994 = vmul.f32 %v3986, 0.044715
    %v3995 = vadd.f32 %v3920, %v3987
    %v3996 = vadd.f32 %v3922, %v3988
    %v3997 = vadd.f32 %v3963, %v3989
    %v3998 = vadd.f32 %v3965, %v3990
    %v3999 = vadd.f32 %v3924, %v3991
    %v4000 = vadd.f32 %v3926, %v3992
    %v4001 = vadd.f32 %v3967, %v3993
    %v4002 = vadd.f32 %v3969, %v3994
    %v4003 = vmul.f32 %v3995, 0.7978846
    %v4004 = vmul.f32 %v3996, 0.7978846
    %v4005 = vmul.f32 %v3997, 0.7978846
    %v4006 = vmul.f32 %v3998, 0.7978846
    %v4007 = vmul.f32 %v3999, 0.7978846
    %v4008 = vmul.f32 %v4000, 0.7978846
    %v4009 = vmul.f32 %v4001, 0.7978846
    %v4010 = vmul.f32 %v4002, 0.7978846
    %v4011 = vtanh.pop %v4003
    %v4012 = vtanh.pop %v4004
    %v4013 = vtanh.pop %v4005
    %v4014 = vtanh.pop %v4006
    %v4015 = vtanh.pop %v4007
    %v4016 = vtanh.pop %v4008
    %v4017 = vtanh.pop %v4009
    %v4018 = vtanh.pop %v4010
    %v4019 = vadd.f32 %v4011, 1.0
    %v4020 = vadd.f32 %v4012, 1.0
    %v4021 = vadd.f32 %v4013, 1.0
    %v4022 = vadd.f32 %v4014, 1.0
    %v4023 = vadd.f32 %v4015, 1.0
    %v4024 = vadd.f32 %v4016, 1.0
    %v4025 = vadd.f32 %v4017, 1.0
    %v4026 = vadd.f32 %v4018, 1.0
    %v4027 = vmul.f32 %v4019, 0.5
    %v4028 = vmul.f32 %v4020, 0.5
    %v4029 = vmul.f32 %v4021, 0.5
    %v4030 = vmul.f32 %v4022, 0.5
    %v4031 = vmul.f32 %v4023, 0.5
    %v4032 = vmul.f32 %v4024, 0.5
    %v4033 = vmul.f32 %v4025, 0.5
    %v4034 = vmul.f32 %v4026, 0.5
    %v4035 = vmul.f32 %v3920, %v4027
    %v4036 = vmul.f32 %v3922, %v4028
    %v4037 = vmul.f32 %v3963, %v4029
    %v4038 = vmul.f32 %v3965, %v4030
    %v4039 = vmul.f32 %v3924, %v4031
    %v4040 = vmul.f32 %v3926, %v4032
    %v4041 = vmul.f32 %v3967, %v4033
    %v4042 = vmul.f32 %v3969, %v4034
    %v4043 = vpack.c.bf16 %v4039, %v4035
    %v4044 = vpack.c.bf16 %v4040, %v4036
    %v4045 = vpack.c.bf16 %v4041, %v4037
    %v4046 = vpack.c.bf16 %v4042, %v4038
    %s4047 = scalar_lea.vmem [#allocation7], 256
    %v4048 = vld [vmem:[%s4047] sm:$0xf]
    %v4049 = vld [vmem:[%s4047 + $0x4] sm:$0xf]
    %v4050 = vld [vmem:[%s4047 + $0x8] sm:$0xf]
    %v4051 = vld [vmem:[%s4047 + $0xc] sm:$0xf]
    %v4052 = vld [vmem:[%s4047 + $0x10] sm:$0xf]
    %v4053 = vld [vmem:[%s4047 + $0x14] sm:$0xf]
    %v4054 = vld [vmem:[%s4047 + $0x18] sm:$0xf]
    %v4055 = vld [vmem:[%s4047 + $0x1c] sm:$0xf]
    %v4056 = vld [vmem:[%s4047 + $0x20] sm:$0xf]
    %v4057 = vld [vmem:[%s4047 + $0x24] sm:$0xf]
    %v4058 = vld [vmem:[%s4047 + $0x28] sm:$0xf]
    %v4059 = vld [vmem:[%s4047 + $0x2c] sm:$0xf]
    %v4060 = vld [vmem:[%s4047 + $0x30] sm:$0xf]
    %v4061 = vld [vmem:[%s4047 + $0x34] sm:$0xf]
    %v4062 = vld [vmem:[%s4047 + $0x38] sm:$0xf]
    %v4063 = vld [vmem:[%s4047 + $0x3c] sm:$0xf]
    %v4064 = vld [vmem:[%s4047 + $0x40] sm:$0xf]
    %v4065 = vld [vmem:[%s4047 + $0x44] sm:$0xf]
    %v4066 = vld [vmem:[%s4047 + $0x48] sm:$0xf]
    %v4067 = vld [vmem:[%s4047 + $0x4c] sm:$0xf]
    %v4068 = vld [vmem:[%s4047 + $0x50] sm:$0xf]
    %v4069 = vld [vmem:[%s4047 + $0x54] sm:$0xf]
    %v4070 = vld [vmem:[%s4047 + $0x58] sm:$0xf]
    %v4071 = vld [vmem:[%s4047 + $0x5c] sm:$0xf]
    %v4072 = vld [vmem:[%s4047 + $0x60] sm:$0xf]
    %v4073 = vld [vmem:[%s4047 + $0x64] sm:$0xf]
    %v4074 = vld [vmem:[%s4047 + $0x68] sm:$0xf]
    %v4075 = vld [vmem:[%s4047 + $0x6c] sm:$0xf]
    %v4076 = vld [vmem:[%s4047 + $0x70] sm:$0xf]
    %v4077 = vld [vmem:[%s4047 + $0x74] sm:$0xf]
    %v4078 = vld [vmem:[%s4047 + $0x78] sm:$0xf]
    %v4079 = vld [vmem:[%s4047 + $0x7c] sm:$0xf]
    %v4080 = vld [vmem:[%s4047 + $0x80] sm:$0xf]
    %v4081 = vld [vmem:[%s4047 + $0x84] sm:$0xf]
    %v4082 = vld [vmem:[%s4047 + $0x88] sm:$0xf]
    %v4083 = vld [vmem:[%s4047 + $0x8c] sm:$0xf]
    %v4084 = vld [vmem:[%s4047 + $0x90] sm:$0xf]
    %v4085 = vld [vmem:[%s4047 + $0x94] sm:$0xf]
    %v4086 = vld [vmem:[%s4047 + $0x98] sm:$0xf]
    %v4087 = vld [vmem:[%s4047 + $0x9c] sm:$0xf]
    %v4088 = vld [vmem:[%s4047 + $0xa0] sm:$0xf]
    %v4089 = vld [vmem:[%s4047 + $0xa4] sm:$0xf]
    %v4090 = vld [vmem:[%s4047 + $0xa8] sm:$0xf]
    %v4091 = vld [vmem:[%s4047 + $0xac] sm:$0xf]
    %v4092 = vld [vmem:[%s4047 + $0xb0] sm:$0xf]
    %v4093 = vld [vmem:[%s4047 + $0xb4] sm:$0xf]
    %v4094 = vld [vmem:[%s4047 + $0xb8] sm:$0xf]
    %v4095 = vld [vmem:[%s4047 + $0xbc] sm:$0xf]
    %v4096 = vld [vmem:[%s4047 + $0xc0] sm:$0xf]
    %v4097 = vld [vmem:[%s4047 + $0xc4] sm:$0xf]
    %v4098 = vld [vmem:[%s4047 + $0xc8] sm:$0xf]
    %v4099 = vld [vmem:[%s4047 + $0xcc] sm:$0xf]
    %v4100 = vld [vmem:[%s4047 + $0xd0] sm:$0xf]
    %v4101 = vld [vmem:[%s4047 + $0xd4] sm:$0xf]
    %v4102 = vld [vmem:[%s4047 + $0xd8] sm:$0xf]
    %v4103 = vld [vmem:[%s4047 + $0xdc] sm:$0xf]
    %v4104 = vld [vmem:[%s4047 + $0xe0] sm:$0xf]
    %v4105 = vld [vmem:[%s4047 + $0xe4] sm:$0xf]
    %v4106 = vld [vmem:[%s4047 + $0xe8] sm:$0xf]
    %v4107 = vld [vmem:[%s4047 + $0xec] sm:$0xf]
    %v4108 = vld [vmem:[%s4047 + $0xf0] sm:$0xf]
    %v4109 = vld [vmem:[%s4047 + $0xf4] sm:$0xf]
    %v4110 = vld [vmem:[%s4047 + $0xf8] sm:$0xf]
    %v4111 = vld [vmem:[%s4047 + $0xfc] sm:$0xf]
    %s4112 = scalar_lea.vmem %s13, 1
    %v4113 = vld [vmem:[%s4112] sm:$0x1]
    %v4115 = vlaneseq
    %v4116 = vshrl.u32 %v4115, 7
    %v4117 = vsub.s32 0, %v4116
    %v4118 = vrot.slane %v4113, %v4117
    %v4184 = vunpack.c.l.b16 %v4048
    %v4185 = vunpack.c.l.b16 %v4049
    %v4186 = vunpack.c.l.b16 %v4050
    %v4187 = vunpack.c.l.b16 %v4051
    %v4188 = vunpack.c.l.b16 %v4052
    %v4189 = vunpack.c.l.b16 %v4053
    %v4190 = vunpack.c.l.b16 %v4054
    %v4191 = vunpack.c.l.b16 %v4055
    %v4192 = vunpack.c.l.b16 %v4056
    %v4193 = vunpack.c.l.b16 %v4057
    %v4194 = vunpack.c.l.b16 %v4058
    %v4195 = vunpack.c.l.b16 %v4059
    %v4196 = vunpack.c.l.b16 %v4060
    %v4197 = vunpack.c.l.b16 %v4061
    %v4198 = vunpack.c.l.b16 %v4062
    %v4199 = vunpack.c.l.b16 %v4063
    %v4200 = vunpack.c.l.b16 %v4064
    %v4201 = vunpack.c.l.b16 %v4065
    %v4202 = vunpack.c.l.b16 %v4066
    %v4203 = vunpack.c.l.b16 %v4067
    %v4204 = vunpack.c.l.b16 %v4068
    %v4205 = vunpack.c.l.b16 %v4069
    %v4206 = vunpack.c.l.b16 %v4070
    %v4207 = vunpack.c.l.b16 %v4071
    %v4208 = vunpack.c.l.b16 %v4072
    %v4209 = vunpack.c.l.b16 %v4073
    %v4210 = vunpack.c.l.b16 %v4074
    %v4211 = vunpack.c.l.b16 %v4075
    %v4212 = vunpack.c.l.b16 %v4076
    %v4213 = vunpack.c.l.b16 %v4077
    %v4214 = vunpack.c.l.b16 %v4078
    %v4215 = vunpack.c.l.b16 %v4079
    %v4216 = vunpack.c.l.b16 %v4080
    %v4217 = vunpack.c.l.b16 %v4081
    %v4218 = vunpack.c.l.b16 %v4082
    %v4219 = vunpack.c.l.b16 %v4083
    %v4220 = vunpack.c.l.b16 %v4084
    %v4221 = vunpack.c.l.b16 %v4085
    %v4222 = vunpack.c.l.b16 %v4086
    %v4223 = vunpack.c.l.b16 %v4087
    %v4224 = vunpack.c.l.b16 %v4088
    %v4225 = vunpack.c.l.b16 %v4089
    %v4226 = vunpack.c.l.b16 %v4090
    %v4227 = vunpack.c.l.b16 %v4091
    %v4228 = vunpack.c.l.b16 %v4092
    %v4229 = vunpack.c.l.b16 %v4093
    %v4230 = vunpack.c.l.b16 %v4094
    %v4231 = vunpack.c.l.b16 %v4095
    %v4232 = vunpack.c.l.b16 %v4096
    %v4233 = vunpack.c.l.b16 %v4097
    %v4234 = vunpack.c.l.b16 %v4098
    %v4235 = vunpack.c.l.b16 %v4099
    %v4236 = vunpack.c.l.b16 %v4100
    %v4237 = vunpack.c.l.b16 %v4101
    %v4238 = vunpack.c.l.b16 %v4102
    %v4239 = vunpack.c.l.b16 %v4103
    %v4240 = vunpack.c.l.b16 %v4104
    %v4241 = vunpack.c.l.b16 %v4105
    %v4242 = vunpack.c.l.b16 %v4106
    %v4243 = vunpack.c.l.b16 %v4107
    %v4244 = vunpack.c.l.b16 %v4108
    %v4245 = vunpack.c.l.b16 %v4109
    %v4246 = vunpack.c.l.b16 %v4110
    %v4247 = vunpack.c.l.b16 %v4111
    %v4248 = vpack.c.b16 %v4185, %v4184
    %v4249 = vpack.c.b16 %v4187, %v4186
    %v4250 = vpack.c.b16 %v4189, %v4188
    %v4251 = vpack.c.b16 %v4191, %v4190
    %v4252 = vpack.c.b16 %v4193, %v4192
    %v4253 = vpack.c.b16 %v4195, %v4194
    %v4254 = vpack.c.b16 %v4197, %v4196
    %v4255 = vpack.c.b16 %v4199, %v4198
    %v4256 = vpack.c.b16 %v4201, %v4200
    %v4257 = vpack.c.b16 %v4203, %v4202
    %v4258 = vpack.c.b16 %v4205, %v4204
    %v4259 = vpack.c.b16 %v4207, %v4206
    %v4260 = vpack.c.b16 %v4209, %v4208
    %v4261 = vpack.c.b16 %v4211, %v4210
    %v4262 = vpack.c.b16 %v4213, %v4212
    %v4263 = vpack.c.b16 %v4215, %v4214
    %v4264 = vpack.c.b16 %v4217, %v4216
    %v4265 = vpack.c.b16 %v4219, %v4218
    %v4266 = vpack.c.b16 %v4221, %v4220
    %v4267 = vpack.c.b16 %v4223, %v4222
    %v4268 = vpack.c.b16 %v4225, %v4224
    %v4269 = vpack.c.b16 %v4227, %v4226
    %v4270 = vpack.c.b16 %v4229, %v4228
    %v4271 = vpack.c.b16 %v4231, %v4230
    %v4272 = vpack.c.b16 %v4233, %v4232
    %v4273 = vpack.c.b16 %v4235, %v4234
    %v4274 = vpack.c.b16 %v4237, %v4236
    %v4275 = vpack.c.b16 %v4239, %v4238
    %v4276 = vpack.c.b16 %v4241, %v4240
    %v4277 = vpack.c.b16 %v4243, %v4242
    %v4278 = vpack.c.b16 %v4245, %v4244
    %v4279 = vpack.c.b16 %v4247, %v4246
    %4312 = vmatprep.subr.bf16.mxu0 0
    %4313 = vmatpush1.bf16.msra.mxu0 %v4248
    %4314 = vmatprep.subr.bf16.mxu0 0
    %4315 = vmatpush1.bf16.msra.mxu0 %v4249
    %4316 = vmatprep.subr.bf16.mxu0 0
    %4317 = vmatpush1.bf16.msra.mxu0 %v4250
    %4318 = vmatprep.subr.bf16.mxu0 0
    %4319 = vmatpush1.bf16.msra.mxu0 %v4251
    %4320 = vmatprep.subr.bf16.mxu0 0
    %4321 = vmatpush1.bf16.msra.mxu0 %v4252
    %4322 = vmatprep.subr.bf16.mxu0 0
    %4323 = vmatpush1.bf16.msra.mxu0 %v4253
    %4324 = vmatprep.subr.bf16.mxu0 0
    %4325 = vmatpush1.bf16.msra.mxu0 %v4254
    %4326 = vmatprep.subr.bf16.mxu0 0
    %4327 = vmatpush1.bf16.msra.mxu0 %v4255
    %4328 = vmatprep.subr.bf16.mxu0 0
    %4329 = vmatpush1.bf16.msra.mxu0 %v4256
    %4330 = vmatprep.subr.bf16.mxu0 0
    %4331 = vmatpush1.bf16.msra.mxu0 %v4257
    %4332 = vmatprep.subr.bf16.mxu0 0
    %4333 = vmatpush1.bf16.msra.mxu0 %v4258
    %4334 = vmatprep.subr.bf16.mxu0 0
    %4335 = vmatpush1.bf16.msra.mxu0 %v4259
    %4336 = vmatprep.subr.bf16.mxu0 0
    %4337 = vmatpush1.bf16.msra.mxu0 %v4260
    %4338 = vmatprep.subr.bf16.mxu0 0
    %4339 = vmatpush1.bf16.msra.mxu0 %v4261
    %4340 = vmatprep.subr.bf16.mxu0 0
    %4341 = vmatpush1.bf16.msra.mxu0 %v4262
    %4342 = vmatprep.subr.bf16.mxu0 0
    %4343 = vmatpush1.bf16.msra.mxu0 %v4263
    %4344 = vmatprep.mubr.bf16.mxu0 %v4044
    %4345 = vmatmul.mubr.bf16.gmra.mrb[0].mxu0 %v4043
    %v4346 = vpop.f32.mrb[0].mxu0
    %v4347 = vadd.f32 %v4118, %v4346
    %v4348 = vpop.f32.mrb[0].mxu0
    %v4349 = vpop.f32.mrb[0].mxu0
    %v4350 = vadd.f32 %v4118, %v4349
    %v4351 = vpop.f32.mrb[0].mxu0
    %4352 = vdwg.mxu0
    %4353 = vmatprep.subr.bf16.mxu0 0
    %4354 = vmatpush1.bf16.msra.mxu0 %v4264
    %4355 = vmatprep.subr.bf16.mxu0 0
    %4356 = vmatpush1.bf16.msra.mxu0 %v4265
    %4357 = vmatprep.subr.bf16.mxu0 0
    %4358 = vmatpush1.bf16.msra.mxu0 %v4266
    %4359 = vmatprep.subr.bf16.mxu0 0
    %4360 = vmatpush1.bf16.msra.mxu0 %v4267
    %4361 = vmatprep.subr.bf16.mxu0 0
    %4362 = vmatpush1.bf16.msra.mxu0 %v4268
    %4363 = vmatprep.subr.bf16.mxu0 0
    %4364 = vmatpush1.bf16.msra.mxu0 %v4269
    %4365 = vmatprep.subr.bf16.mxu0 0
    %4366 = vmatpush1.bf16.msra.mxu0 %v4270
    %4367 = vmatprep.subr.bf16.mxu0 0
    %4368 = vmatpush1.bf16.msra.mxu0 %v4271
    %4369 = vmatprep.subr.bf16.mxu0 0
    %4370 = vmatpush1.bf16.msra.mxu0 %v4272
    %4371 = vmatprep.subr.bf16.mxu0 0
    %4372 = vmatpush1.bf16.msra.mxu0 %v4273
    %4373 = vmatprep.subr.bf16.mxu0 0
    %4374 = vmatpush1.bf16.msra.mxu0 %v4274
    %4375 = vmatprep.subr.bf16.mxu0 0
    %4376 = vmatpush1.bf16.msra.mxu0 %v4275
    %4377 = vmatprep.subr.bf16.mxu0 0
    %4378 = vmatpush1.bf16.msra.mxu0 %v4276
    %4379 = vmatprep.subr.bf16.mxu0 0
    %4380 = vmatpush1.bf16.msra.mxu0 %v4277
    %4381 = vmatprep.subr.bf16.mxu0 0
    %4382 = vmatpush1.bf16.msra.mxu0 %v4278
    %4383 = vmatprep.subr.bf16.mxu0 0
    %4384 = vmatpush1.bf16.msra.mxu0 %v4279
    %4385 = vmatprep.mubr.bf16.mxu0 %v4046
    %4386 = vmatmul.mubr.bf16.gmra.mrb[0].mxu0 %v4045
    %v4387 = vpop.f32.mrb[0].mxu0
    %v4388 = vadd.f32 %v4347, %v4387
    %v4389 = vpop.f32.mrb[0].mxu0
    %v4390 = vpop.f32.mrb[0].mxu0
    %v4391 = vadd.f32 %v4350, %v4390
    %v4392 = vpop.f32.mrb[0].mxu0
    %4393 = vdwg.mxu0
    %v4394 = vadd.f32 %v3666, %v4388
    %v4395 = vadd.f32 %v3667, %v4391
    %s4396 = scalar_lea.vmem [#allocation8], 1
    %v4397 = vld [vmem:[%s4396] sm:$0x1]
    %s4398 = scalar_lea.vmem [#allocation10], 1
    %v4399 = vld [vmem:[%s4398] sm:$0x1]
    %4400 = vadd.xlane.f32.xlu0 %v4394
    %v4401 = vpop.xlane.xlu0 %4400
    %4402 = vadd.xlane.f32.xlu0 %v4395
    %v4403 = vpop.xlane.xlu0 %4402
    %v4404 = vmul.f32 %v4401, %v181
    %v4405 = vmul.f32 %v4403, %v181
    %v4406 = vsub.f32 %v4394, %v4404
    %v4407 = vsub.f32 %v4395, %v4405
    %v4408 = vmul.f32 %v4406, %v4406
    %v4409 = vmul.f32 %v4407, %v4407
    %4410 = vadd.xlane.f32.xlu0 %v4408
    %v4411 = vpop.xlane.xlu0 %4410
    %4412 = vadd.xlane.f32.xlu0 %v4409
    %v4413 = vpop.xlane.xlu0 %4412
    %v4414 = vmul.f32 %v4411, %v181
    %v4415 = vmul.f32 %v4413, %v181
    %v4416 = vadd.f32 %v4414, 1e-05
    %v4417 = vadd.f32 %v4415, 1e-05
    %v4418 = vrsqrt.pop %v4416
    %v4419 = vrsqrt.pop %v4417
    %v4420 = vmul.f32 %v4406, %v4418
    %v4421 = vmul.f32 %v4407, %v4419
    %v4423 = vlaneseq
    %v4424 = vshrl.u32 %v4423, 7
    %v4425 = vsub.s32 0, %v4424
    %v4426 = vrot.slane %v4397, %v4425
    %v4428 = vmul.f32 %v4420, %v4426
    %v4429 = vmul.f32 %v4421, %v4426
    %v4431 = vlaneseq
    %v4432 = vshrl.u32 %v4431, 7
    %v4433 = vsub.s32 0, %v4432
    %v4434 = vrot.slane %v4399, %v4433
    %v4436 = vadd.f32 %v4428, %v4434
    %v4437 = vadd.f32 %v4429, %v4434
    %v4438 = vpack.c.bf16 %v4436, %v4436
    %v4439 = vpack.c.bf16 %v4437, %v4437
    %v4440 = vld [vmem:[#allocation11] sm:$0xf]
    %v4441 = vld [vmem:[#allocation11 + $0x4] sm:$0xf]
    %v4442 = vld [vmem:[#allocation11 + $0x8] sm:$0xf]
    %v4443 = vld [vmem:[#allocation11 + $0xc] sm:$0xf]
    %v4444 = vld [vmem:[#allocation11 + $0x10] sm:$0xf]
    %v4445 = vld [vmem:[#allocation11 + $0x14] sm:$0xf]
    %v4446 = vld [vmem:[#allocation11 + $0x18] sm:$0xf]
    %v4447 = vld [vmem:[#allocation11 + $0x1c] sm:$0xf]
    %v4448 = vld [vmem:[#allocation11 + $0x20] sm:$0xf]
    %v4449 = vld [vmem:[#allocation11 + $0x24] sm:$0xf]
    %v4450 = vld [vmem:[#allocation11 + $0x28] sm:$0xf]
    %v4451 = vld [vmem:[#allocation11 + $0x2c] sm:$0xf]
    %v4452 = vld [vmem:[#allocation11 + $0x30] sm:$0xf]
    %v4453 = vld [vmem:[#allocation11 + $0x34] sm:$0xf]
    %v4454 = vld [vmem:[#allocation11 + $0x38] sm:$0xf]
    %v4455 = vld [vmem:[#allocation11 + $0x3c] sm:$0xf]
    %v4456 = vld [vmem:[#allocation13] sm:$0x1]
    %v4458 = vlaneseq
    %v4459 = vshrl.u32 %v4458, 7
    %v4460 = vsub.s32 0, %v4459
    %v4461 = vrot.slane %v4456, %v4460
    %v4465 = vunpack.c.l.b16 %v4438
    %v4466 = vunpack.c.l.b16 %v4439
    %v4467 = vrot.slane %v4466, 7
    %vm4468 = vcmask 1041409
    %v4469 = vsel %vm4468, %v4467, %v4465
    %v4470 = vpack.c.b16 %v4469, %v4469
    %v4488 = vunpack.c.l.b16 %v4440
    %v4489 = vunpack.c.l.b16 %v4441
    %v4490 = vunpack.c.l.b16 %v4442
    %v4491 = vunpack.c.l.b16 %v4443
    %v4492 = vunpack.c.l.b16 %v4444
    %v4493 = vunpack.c.l.b16 %v4445
    %v4494 = vunpack.c.l.b16 %v4446
    %v4495 = vunpack.c.l.b16 %v4447
    %v4496 = vunpack.c.l.b16 %v4448
    %v4497 = vunpack.c.l.b16 %v4449
    %v4498 = vunpack.c.l.b16 %v4450
    %v4499 = vunpack.c.l.b16 %v4451
    %v4500 = vunpack.c.l.b16 %v4452
    %v4501 = vunpack.c.l.b16 %v4453
    %v4502 = vunpack.c.l.b16 %v4454
    %v4503 = vunpack.c.l.b16 %v4455
    %v4504 = vpack.c.b16 %v4489, %v4488
    %v4505 = vpack.c.b16 %v4491, %v4490
    %v4506 = vpack.c.b16 %v4493, %v4492
    %v4507 = vpack.c.b16 %v4495, %v4494
    %v4508 = vpack.c.b16 %v4497, %v4496
    %v4509 = vpack.c.b16 %v4499, %v4498
    %v4510 = vpack.c.b16 %v4501, %v4500
    %v4511 = vpack.c.b16 %v4503, %v4502
    %4520 = vmatprep.subr.bf16.mxu0 0
    %4521 = vmatpush1.bf16.msra.mxu0 %v4504
    %4522 = vmatprep.subr.bf16.mxu0 0
    %4523 = vmatpush1.bf16.msra.mxu0 %v4505
    %4524 = vmatprep.subr.bf16.mxu0 0
    %4525 = vmatpush1.bf16.msra.mxu0 %v4506
    %4526 = vmatprep.subr.bf16.mxu0 0
    %4527 = vmatpush1.bf16.msra.mxu0 %v4507
    %4528 = vmatprep.subr.bf16.mxu0 0
    %4529 = vmatpush1.bf16.msra.mxu0 %v4508
    %4530 = vmatprep.subr.bf16.mxu0 0
    %4531 = vmatpush1.bf16.msra.mxu0 %v4509
    %4532 = vmatprep.subr.bf16.mxu0 0
    %4533 = vmatpush1.bf16.msra.mxu0 %v4510
    %4534 = vmatprep.subr.bf16.mxu0 0
    %4535 = vmatpush1.bf16.msra.mxu0 %v4511
    %4536 = vmatprep.subr.bf16.mxu0 0
    %4537 = vmatpush1.bf16.msra.mxu0 0
    %4538 = vmatprep.subr.bf16.mxu0 0
    %4539 = vmatpush1.bf16.msra.mxu0 0
    %4540 = vmatprep.subr.bf16.mxu0 0
    %4541 = vmatpush1.bf16.msra.mxu0 0
    %4542 = vmatprep.subr.bf16.mxu0 0
    %4543 = vmatpush1.bf16.msra.mxu0 0
    %4544 = vmatprep.subr.bf16.mxu0 0
    %4545 = vmatpush1.bf16.msra.mxu0 0
    %4546 = vmatprep.subr.bf16.mxu0 0
    %4547 = vmatpush1.bf16.msra.mxu0 0
    %4548 = vmatprep.subr.bf16.mxu0 0
    %4549 = vmatpush1.bf16.msra.mxu0 0
    %4550 = vmatprep.subr.bf16.mxu0 0
    %4551 = vmatpush1.bf16.msra.mxu0 0
    %4552 = vmatprep.mubr.bf16.mxu0 0
    %4553 = vmatmul.mubr.bf16.gmra.mrb[0].mxu0 %v4470
    %v4554 = vpop.f32.mrb[0].mxu0
    %v4555 = vadd.f32 %v4461, %v4554
    %v4556 = vpop.f32.mrb[0].mxu0
    %v4557 = vpop.f32.mrb[0].mxu0
    %v4558 = vpop.f32.mrb[0].mxu0
    %4559 = vdwg.mxu0
    %v4560 = vtanh.pop %v4555
    %v4561 = vpack.c.bf16 %v4560, %v4560
    %v4562 = vld [vmem:[#allocation14] sm:$0xf]
    %v4563 = vld [vmem:[#allocation14 + $0x4] sm:$0xf]
    %v4564 = vld [vmem:[#allocation14 + $0x8] sm:$0xf]
    %v4565 = vld [vmem:[#allocation14 + $0xc] sm:$0xf]
    %v4566 = vld [vmem:[#allocation14 + $0x10] sm:$0xf]
    %v4567 = vld [vmem:[#allocation14 + $0x14] sm:$0xf]
    %v4568 = vld [vmem:[#allocation14 + $0x18] sm:$0xf]
    %v4569 = vld [vmem:[#allocation14 + $0x1c] sm:$0xf]
    %v4570 = vld [vmem:[#allocation14 + $0x20] sm:$0xf]
    %v4571 = vld [vmem:[#allocation14 + $0x24] sm:$0xf]
    %v4572 = vld [vmem:[#allocation14 + $0x28] sm:$0xf]
    %v4573 = vld [vmem:[#allocation14 + $0x2c] sm:$0xf]
    %v4574 = vld [vmem:[#allocation14 + $0x30] sm:$0xf]
    %v4575 = vld [vmem:[#allocation14 + $0x34] sm:$0xf]
    %v4576 = vld [vmem:[#allocation14 + $0x38] sm:$0xf]
    %v4577 = vld [vmem:[#allocation14 + $0x3c] sm:$0xf]
    %v4578 = vld [vmem:[%s19] sm:$0x1]
    %v4580 = vlaneseq
    %v4581 = vshrl.u32 %v4580, 7
    %v4582 = vsub.s32 0, %v4581
    %v4583 = vrot.slane %v4578, %v4582
    %v4601 = vunpack.c.l.b16 %v4562
    %v4602 = vunpack.c.l.b16 %v4563
    %v4603 = vunpack.c.l.b16 %v4564
    %v4604 = vunpack.c.l.b16 %v4565
    %v4605 = vunpack.c.l.b16 %v4566
    %v4606 = vunpack.c.l.b16 %v4567
    %v4607 = vunpack.c.l.b16 %v4568
    %v4608 = vunpack.c.l.b16 %v4569
    %v4609 = vunpack.c.l.b16 %v4570
    %v4610 = vunpack.c.l.b16 %v4571
    %v4611 = vunpack.c.l.b16 %v4572
    %v4612 = vunpack.c.l.b16 %v4573
    %v4613 = vunpack.c.l.b16 %v4574
    %v4614 = vunpack.c.l.b16 %v4575
    %v4615 = vunpack.c.l.b16 %v4576
    %v4616 = vunpack.c.l.b16 %v4577
    %v4617 = vpack.c.b16 %v4602, %v4601
    %v4618 = vpack.c.b16 %v4604, %v4603
    %v4619 = vpack.c.b16 %v4606, %v4605
    %v4620 = vpack.c.b16 %v4608, %v4607
    %v4621 = vpack.c.b16 %v4610, %v4609
    %v4622 = vpack.c.b16 %v4612, %v4611
    %v4623 = vpack.c.b16 %v4614, %v4613
    %v4624 = vpack.c.b16 %v4616, %v4615
    %4633 = vmatprep.subr.bf16.mxu0 0
    %4634 = vmatpush1.bf16.msra.mxu0 %v4617
    %4635 = vmatprep.subr.bf16.mxu0 0
    %4636 = vmatpush1.bf16.msra.mxu0 %v4618
    %4637 = vmatprep.subr.bf16.mxu0 0
    %4638 = vmatpush1.bf16.msra.mxu0 %v4619
    %4639 = vmatprep.subr.bf16.mxu0 0
    %4640 = vmatpush1.bf16.msra.mxu0 %v4620
    %4641 = vmatprep.subr.bf16.mxu0 0
    %4642 = vmatpush1.bf16.msra.mxu0 %v4621
    %4643 = vmatprep.subr.bf16.mxu0 0
    %4644 = vmatpush1.bf16.msra.mxu0 %v4622
    %4645 = vmatprep.subr.bf16.mxu0 0
    %4646 = vmatpush1.bf16.msra.mxu0 %v4623
    %4647 = vmatprep.subr.bf16.mxu0 0
    %4648 = vmatpush1.bf16.msra.mxu0 %v4624
    %4649 = vmatprep.subr.bf16.mxu0 0
    %4650 = vmatpush1.bf16.msra.mxu0 0
    %4651 = vmatprep.subr.bf16.mxu0 0
    %4652 = vmatpush1.bf16.msra.mxu0 0
    %4653 = vmatprep.subr.bf16.mxu0 0
    %4654 = vmatpush1.bf16.msra.mxu0 0
    %4655 = vmatprep.subr.bf16.mxu0 0
    %4656 = vmatpush1.bf16.msra.mxu0 0
    %4657 = vmatprep.subr.bf16.mxu0 0
    %4658 = vmatpush1.bf16.msra.mxu0 0
    %4659 = vmatprep.subr.bf16.mxu0 0
    %4660 = vmatpush1.bf16.msra.mxu0 0
    %4661 = vmatprep.subr.bf16.mxu0 0
    %4662 = vmatpush1.bf16.msra.mxu0 0
    %4663 = vmatprep.subr.bf16.mxu0 0
    %4664 = vmatpush1.bf16.msra.mxu0 0
    %4665 = vmatprep.mubr.bf16.mxu0 0
    %4666 = vmatmul.mubr.bf16.gmra.mrb[0].mxu0 %v4561
    %v4667 = vpop.f32.mrb[0].mxu0
    %v4668 = vadd.f32 %v4583, %v4667
    %v4669 = vpop.f32.mrb[0].mxu0
    %v4670 = vpop.f32.mrb[0].mxu0
    %v4671 = vpop.f32.mrb[0].mxu0
    %4672 = vdwg.mxu0
    %4673 = vst [vmem:[%s20] sm:$0x3] %v4668
    // Predicated region
    $region114: #{roberta_forward.1} parent=1 // pred_check
      _
    $region115: #{roberta_forward.1} parent=1 // pred_check_branch
      %4675 = sbr.rel (0) target = $region117
    $region116: #{roberta_forward.1} parent=1 // pred_region
      _
    $region117: #{roberta_forward.1} parent=1 // pred_fallthru
      _
    // Predicated region
    $region118: #{roberta_forward.1} parent=1 // pred_check
      _
    $region119: #{roberta_forward.1} parent=1 // pred_check_branch
      %4677 = sbr.rel (0) target = $region121
    $region120: #{roberta_forward.1} parent=1 // pred_region
      _
    $region121: #{roberta_forward.1} parent=1 // pred_fallthru
      _
    %4678 = vsyncpa [#allocation4], 1
    %4679 = vsyncpa [#allocation6], 1
    %4680 = vsyncpa [#allocation9], 1
    %4681 = vsyncpa [#allocation12], 1
    %4682 = vsyncpa [#allocation15], 1

</llo_original>
